<compile_context>
chip_gen: v5e
topology: v5e:2x2
jax: 0.10.0
libtpu: 0.0.40
codegen_flags: <defaults>
</compile_context>

<pallas_src>
import functools

import jax
import jax.numpy as jnp
from jax import lax
from jax.experimental import pallas as pl
from jax.experimental.pallas import tpu as pltpu


def _round_up(x, m):
    return (x + m - 1) // m * m


def _tpu_budgets():
    """Generation-aware VMEM / tile knobs (safe fallbacks if query fails)."""
    vmem_cap = 128 * 1024 * 1024
    try:
        vmem_cap = int(pltpu.get_tpu_info().vmem_capacity_bytes)
    except Exception:
        pass
    kind = ""
    try:
        kind = jax.devices()[0].device_kind.lower()
    except Exception:
        pass
    is_v5e = ("v5 lite" in kind) or ("v5e" in kind) or ("v5lite" in kind)
    # 64 MiB on v5e/v6e (128 MiB physical), ~40 MiB on v7x-class (64 MiB).
    vmem_limit = min(64 * 1024 * 1024, max(32 * 1024 * 1024, vmem_cap * 5 // 8))
    # Flattened-M budget per tile: larger now that there is no register-carried
    # accumulator; keep smaller on 64 MiB-VMEM chips.
    target_m = 512 if vmem_cap <= 64 * 1024 * 1024 else 1024
    return is_v5e, vmem_limit, target_m


# ----------------------------------------------------------------------------
# Pallas kernel: folded-K im2col conv block, single MXU matmul per tile
# ----------------------------------------------------------------------------
def _conv_im2col_kernel(x_ref, w_ref, b_ref, o_ref, patch_ref, *,
                        kh, kw, sh, sw, tr, w_out_p, c_in):
    """One (batch, output-row tile, C_out tile) block of the convolution.

    x_ref:     (n_ph, Ha, Wa, C_in)      bf16  phase-decomposed padded image
                                               (whole per-batch block)
    w_ref:     (kh*kw*C_in, tn)          bf16  folded weights for this C_out tile
    b_ref:     (1, tn)                   f32   bias slice
    o_ref:     (1, tr, W_out_p, tn)      bf16  output block
    patch_ref: (tr*W_out_p, kh*kw*C_in)  bf16  VMEM scratch im2col patch
    """
    m = pl.program_id(1)
    n = pl.program_id(2)
    row0 = m * tr

    # Build the im2col patch once per (b, m) tile; reuse across C_out tiles.
    @pl.when(n == 0)
    def _build_patch():
        for t in range(kh * kw):          # statically unrolled, all slices stride-1
            i, j = t // kw, t % kw
            ph = (i % sh) * sw + (j % sw)  # stride phase (static)
            qi, qj = i // sh, j // sw      # offset inside the phase (static)
            win = x_ref[ph, pl.ds(row0 + qi, tr), pl.ds(qj, w_out_p), :]
            patch_ref[:, t * c_in:(t + 1) * c_in] = win.reshape(tr * w_out_p, c_in)

    # Single MXU matmul with full K = kh*kw*C_in; f32 accumulation inside MXU.
    acc = jnp.dot(patch_ref[...], w_ref[...], preferred_element_type=jnp.float32)
    acc = acc + b_ref[...]                                      # bias once per tile
    o_ref[...] = acc.reshape(1, tr, w_out_p, o_ref.shape[-1]).astype(o_ref.dtype)


# ----------------------------------------------------------------------------
# Pallas wrapper: layout conversion, stride phase-decomposition, pallas_call
# ----------------------------------------------------------------------------
@functools.partial(jax.jit, static_argnames=("kh", "kw", "stride", "pad"))
def prunable_conv2d_pallas(x, weight, bias, *, kh, kw, stride, pad):
    """Pallas forward of the prunable Conv2d BonsaiModule.

    x:      (B, C_in, H, W)        float32, NCHW
    weight: (C_out, C_in, kh, kw)  float32
    bias:   (C_out,)               float32
    returns (B, C_out, H_out, W_out) float32
    """
    B, C_in, H, W = x.shape
    C_out = weight.shape[0]
    sh = sw = stride

    H_out = (H + 2 * pad - kh) // sh + 1
    W_out = (W + 2 * pad - kw) // sw + 1

    is_v5e, vmem_limit, target_m = _tpu_budgets()

    Np = _round_up(C_out, 128)
    tn = 128 if (is_v5e or Np % 256 != 0) else 256   # v5e MXU N=128; v6e/v7x 256

    W_out_p = _round_up(W_out, 8)                    # sublane-aligned reshape
    tr = max(1, min(H_out, max(1, target_m // W_out_p)))
    H_out_p = _round_up(H_out, tr)

    # Stride handled by phase decomposition (space-to-batch): for tap (i, j)
    # with i = sh*qi + ri, j = sw*qj + rj, the kernel reads phase (ri, rj) at
    # stride-1 offsets (qi, qj).  Every in-kernel slice is stride-1 and no
    # redundant stride-1 outputs are computed.
    qh, qw = (kh - 1) // sh, (kw - 1) // sw
    Ha = H_out_p + qh
    Wa = W_out_p + qw
    n_ph = sh * sw

    # One NCHW -> NHWC conversion + zero-pad + bf16 cast + phase split
    # (a single fused XLA pass over the 1x-sized activation; no host im2col).
    xp = jnp.transpose(x, (0, 2, 3, 1)).astype(jnp.bfloat16)
    xp = jnp.pad(xp, ((0, 0), (pad, pad), (pad, pad), (0, 0)))
    phases = []
    for ri in range(sh):
        for rj in range(sw):
            ph = xp[:, ri::sh, rj::sw, :]
            ph = ph[:, :Ha, :Wa, :]
            ph = jnp.pad(ph, ((0, 0),
                              (0, Ha - ph.shape[1]),
                              (0, Wa - ph.shape[2]),
                              (0, 0)))
            phases.append(ph)
    xph = jnp.stack(phases, axis=1).reshape(B * n_ph, Ha, Wa, C_in)

    # Weights folded along K = kh*kw*C_in (matches patch column order);
    # bias padded to Np.
    Kf = kh * kw * C_in
    w_f = jnp.transpose(weight, (2, 3, 1, 0)).reshape(Kf, C_out)
    w_f = jnp.pad(w_f, ((0, 0), (0, Np - C_out))).astype(jnp.bfloat16)
    b_p = jnp.pad(bias, (0, Np - C_out)).reshape(1, Np).astype(jnp.float32)

    kernel = functools.partial(_conv_im2col_kernel, kh=kh, kw=kw, sh=sh, sw=sw,
                               tr=tr, w_out_p=W_out_p, c_in=C_in)

    # TODO(synk): for very large activations (e.g. 224x224x256), switch the x
    # input to memory_space=pl.ANY and manually DMA (tr+kh-1)-row halo windows
    # per m-tile to avoid keeping the whole padded image double-buffered in
    # VMEM on 64 MiB-VMEM chips.
    out = pl.pallas_call(
        kernel,
        out_shape=jax.ShapeDtypeStruct((B, H_out_p, W_out_p, Np), jnp.bfloat16),
        grid=(B, H_out_p // tr, Np // tn),
        in_specs=[
            pl.BlockSpec((n_ph, Ha, Wa, C_in), lambda b, m, n: (b, 0, 0, 0)),
            pl.BlockSpec((Kf, tn), lambda b, m, n: (0, n)),
            pl.BlockSpec((1, tn), lambda b, m, n: (0, n)),
        ],
        out_specs=pl.BlockSpec((1, tr, W_out_p, tn), lambda b, m, n: (b, m, 0, n)),
        scratch_shapes=[pltpu.VMEM((tr * W_out_p, Kf), jnp.bfloat16)],
        compiler_params=pltpu.CompilerParams(
            # Patch scratch is carried across the (innermost) C_out axis.
            dimension_semantics=("parallel", "parallel", "arbitrary"),
            vmem_limit_bytes=vmem_limit,
        ),
        cost_estimate=pl.CostEstimate(
            flops=2 * B * H_out_p * W_out_p * Np * Kf,
            transcendentals=0,
            bytes_accessed=(xph.size * 2 + w_f.size * 2 + b_p.size * 4
                            + B * H_out_p * W_out_p * Np * 2),
        ),
    )(xph, w_f, b_p)

    # Drop row/col/channel padding and convert back to NCHW / f32 once at the
    # module boundary.
    out = out[:, :H_out, :W_out, :C_out]
    return jnp.transpose(out, (0, 3, 1, 2)).astype(jnp.float32)


# ----------------------------------------------------------------------------
# XLA fallback for tiny-channel layers (MXU occupancy < ~5% in the kernel)
# ----------------------------------------------------------------------------
@functools.partial(jax.jit, static_argnames=("stride", "pad"))
def _conv2d_xla(x, weight, bias, *, stride, pad):
    out = lax.conv_general_dilated(
        x, weight, window_strides=(stride, stride),
        padding=((pad, pad), (pad, pad)),
        dimension_numbers=("NCHW", "OIHW", "NCHW"))
    return out + bias.reshape(1, -1, 1, 1)


def prunable_conv2d_forward(x, weight, bias, *, kh, kw, stride, pad,
                            force_pallas=False):
    """Dispatch: Pallas kernel for real layers, XLA conv for tiny ones."""
    c_in = x.shape[1]
    c_out = weight.shape[0]
    if not force_pallas and (c_in * kh * kw < 64 or c_out < 16):
        return _conv2d_xla(x, weight, bias, stride=stride, pad=pad)
    return prunable_conv2d_pallas(x, weight, bias, kh=kh, kw=kw,
                                  stride=stride, pad=pad)


# ----------------------------------------------------------------------------
# Minimal Python-side analogue of the Prunable module bookkeeping
# ----------------------------------------------------------------------------
class PrunableConv2d:
    """Concrete Prunable BonsaiModule: Conv2d with pruning bookkeeping."""

    def __init__(self, module_cfg):
        self.module_cfg = module_cfg
        c_out = module_cfg["out_channels"]
        c_in = module_cfg["in_channels"]
        k = module_cfg["kernel_size"]
        self.kh = self.kw = k
        self.stride = module_cfg.get("stride", 1)
        self.pad = module_cfg.get("pad", k // 2)

        # Deterministic parameter init (synthetic; no checkpoint load).
        kw_key, kb_key = jax.random.split(jax.random.PRNGKey(42))
        fan_in = c_in * k * k
        self.weight = (jax.random.normal(kw_key, (c_out, c_in, k, k), jnp.float32)
                       / jnp.sqrt(fan_in))
        self.bias = jax.random.normal(kb_key, (c_out,), jnp.float32) * 0.01

        # Prunable.__init__ bookkeeping
        self.weights = None
        self.activation = None
        self.grad = None
        self.ranking = jnp.zeros((c_out,), jnp.float32)

    def reset(self):
        self.weights = None
        self.activation = None
        self.grad = None
        self.ranking = jnp.zeros((self.module_cfg["out_channels"],), jnp.float32)

    def get_weights(self):
        # Output channels already in the first dim, as the interface requires.
        return self.weight

    def calc_layer_output_size(self, input_size):
        c_in, h, w = input_size
        h_out = (h + 2 * self.pad - self.kh) // self.stride + 1
        w_out = (w + 2 * self.pad - self.kw) // self.stride + 1
        return (self.module_cfg["out_channels"], h_out, w_out)

    def forward(self, layer_input):
        out = prunable_conv2d_forward(layer_input, self.weight, self.bias,
                                      kh=self.kh, kw=self.kw,
                                      stride=self.stride, pad=self.pad)
        self.activation = out      # Prunable modules stash activation for ranking
        return out

    # TODO(synk): prune_output / prune_input / propagate_pruning_target /
    # prune_weights are host-side index-selection bookkeeping, no Pallas equivalent.


if __name__ == "__main__":
    # ---- Config 1: the spec shape (batch=2, C_in=4, 16x16), stride 1 ----
    module_cfg = {"in_channels": 4, "out_channels": 8, "kernel_size": 3,
                  "stride": 1, "pad": 1}
    module = PrunableConv2d(module_cfg)

    key = jax.random.PRNGKey(0)
    x = jax.random.normal(key, (2, 4, 16, 16), jnp.float32)   # NCHW

    # bf16-quantized reference (matches the kernel's intended numerics).
    xq = x.astype(jnp.bfloat16).astype(jnp.float32)
    wq = module.weight.astype(jnp.bfloat16).astype(jnp.float32)
    ref_bf16 = lax.conv_general_dilated(
        xq, wq, window_strides=(1, 1), padding=((1, 1), (1, 1)),
        dimension_numbers=("NCHW", "OIHW", "NCHW"),
        precision=lax.Precision.HIGHEST,
    ) + module.bias.reshape(1, -1, 1, 1)

    # (a) Exercise the Pallas kernel directly at the spec shape (small-channel
    # layers normally dispatch to the XLA fallback).
    out_pallas = jax.block_until_ready(
        prunable_conv2d_pallas(x, module.weight, module.bias,
                               kh=3, kw=3, stride=1, pad=1))
    assert out_pallas.shape == (2, 8, 16, 16)
    assert jnp.allclose(out_pallas, ref_bf16, atol=2e-2, rtol=2e-2)

    # (b) module.forward: tiny layer -> XLA fallback branch (per perf review).
    out1 = jax.block_until_ready(module.forward(x))
    assert out1.shape == (2, 8, 16, 16)
    ref_f32 = lax.conv_general_dilated(
        x, module.weight, window_strides=(1, 1), padding=((1, 1), (1, 1)),
        dimension_numbers=("NCHW", "OIHW", "NCHW"),
    ) + module.bias.reshape(1, -1, 1, 1)
    assert jnp.allclose(out1, ref_f32, atol=1e-4, rtol=1e-4)

    # ---- Config 2: strided conv with more channels -> Pallas path ----
    cfg2 = {"in_channels": 32, "out_channels": 64, "kernel_size": 3,
            "stride": 2, "pad": 1}
    module2 = PrunableConv2d(cfg2)
    x2 = jax.random.normal(jax.random.PRNGKey(1), (2, 32, 16, 16), jnp.float32)
    out2 = jax.block_until_ready(module2.forward(x2))
    assert out2.shape == (2, 64, 8, 8)

    xq2 = x2.astype(jnp.bfloat16).astype(jnp.float32)
    wq2 = module2.weight.astype(jnp.bfloat16).astype(jnp.float32)
    ref2 = lax.conv_general_dilated(
        xq2, wq2, window_strides=(2, 2), padding=((1, 1), (1, 1)),
        dimension_numbers=("NCHW", "OIHW", "NCHW"),
        precision=lax.Precision.HIGHEST,
    ) + module2.bias.reshape(1, -1, 1, 1)
    assert jnp.allclose(out2, ref2, atol=2e-2, rtol=2e-2)

    print("KERNEL_OK")
</pallas_src>

<mosaic_0001>
module attributes {stable_mosaic.version = 11 : i64} {
  func.func @_conv_im2col_kernel(%arg0: i32, %arg1: i32, %arg2: i32, %arg3: memref<1x18x18x4xbf16, #tpu.memory_space<vmem>>, %arg4: memref<36x128xbf16, #tpu.memory_space<vmem>>, %arg5: memref<1x128xf32, #tpu.memory_space<vmem>>, %arg6: memref<1x16x16x128xbf16, #tpu.memory_space<vmem>>, %arg7: memref<256x36xbf16, #tpu.memory_space<vmem>>) attributes {dimension_semantics = [#tpu.dimension_semantics<parallel>, #tpu.dimension_semantics<parallel>, #tpu.dimension_semantics<arbitrary>], iteration_bounds = array<i64: 2, 1, 1>, scalar_prefetch = 0 : i64, scratch_operands = 1 : i64, tpu.core_type = #tpu.core_type<tc>, window_params = [{transform_indices = @transform_0, window_bounds = array<i64: 1, 18, 18, 4>}, {transform_indices = @transform_1, window_bounds = array<i64: 36, 128>}, {transform_indices = @transform_2, window_bounds = array<i64: 1, 128>}, {transform_indices = @transform_3, window_bounds = array<i64: 1, 16, 16, 128>}]} {
    %c16_i32 = arith.constant 16 : i32
    %0 = arith.muli %arg1, %c16_i32 : i32
    %c0_i32 = arith.constant 0 : i32
    %1 = arith.cmpi eq, %arg2, %c0_i32 : i32
    %2 = arith.extui %1 : i1 to i32
    %c0_i32_0 = arith.constant 0 : i32
    %3 = arith.cmpi ne, %2, %c0_i32_0 : i32
    scf.if %3 {
      %c0_i32_10 = arith.constant 0 : i32
      %13 = arith.addi %0, %c0_i32_10 : i32
      %c0_11 = arith.constant 0 : index
      %14 = arith.index_cast %13 : i32 to index
      %c0_12 = arith.constant 0 : index
      %c0_13 = arith.constant 0 : index
      %15 = vector.load %arg3[%c0_11, %14, %c0_12, %c0_13] : memref<1x18x18x4xbf16, #tpu.memory_space<vmem>>, vector<1x16x16x4xbf16>
      %16 = vector.shape_cast %15 : vector<1x16x16x4xbf16> to vector<16x16x4xbf16>
      %17 = vector.shape_cast %16 : vector<16x16x4xbf16> to vector<256x4xbf16>
      %c0_14 = arith.constant 0 : index
      %c0_15 = arith.constant 0 : index
      %18 = vector.load %arg7[%c0_14, %c0_15] : memref<256x36xbf16, #tpu.memory_space<vmem>>, vector<256x4xbf16>
      tpu.vector_store %arg7[%c0_14, %c0_15], %17 {strides = array<i32>} : memref<256x36xbf16, #tpu.memory_space<vmem>>, vector<256x4xbf16>,
      %c0_i32_16 = arith.constant 0 : i32
      %19 = arith.addi %0, %c0_i32_16 : i32
      %c0_17 = arith.constant 0 : index
      %20 = arith.index_cast %19 : i32 to index
      %c1 = arith.constant 1 : index
      %c0_18 = arith.constant 0 : index
      %21 = vector.load %arg3[%c0_17, %20, %c1, %c0_18] : memref<1x18x18x4xbf16, #tpu.memory_space<vmem>>, vector<1x16x16x4xbf16>
      %22 = vector.shape_cast %21 : vector<1x16x16x4xbf16> to vector<16x16x4xbf16>
      %23 = vector.shape_cast %22 : vector<16x16x4xbf16> to vector<256x4xbf16>
      %c0_19 = arith.constant 0 : index
      %c4 = arith.constant 4 : index
      %24 = vector.load %arg7[%c0_19, %c4] : memref<256x36xbf16, #tpu.memory_space<vmem>>, vector<256x4xbf16>
      tpu.vector_store %arg7[%c0_19, %c4], %23 {strides = array<i32>} : memref<256x36xbf16, #tpu.memory_space<vmem>>, vector<256x4xbf16>,
      %c0_i32_20 = arith.constant 0 : i32
      %25 = arith.addi %0, %c0_i32_20 : i32
      %c0_21 = arith.constant 0 : index
      %26 = arith.index_cast %25 : i32 to index
      %c2 = arith.constant 2 : index
      %c0_22 = arith.constant 0 : index
      %27 = vector.load %arg3[%c0_21, %26, %c2, %c0_22] : memref<1x18x18x4xbf16, #tpu.memory_space<vmem>>, vector<1x16x16x4xbf16>
      %28 = vector.shape_cast %27 : vector<1x16x16x4xbf16> to vector<16x16x4xbf16>
      %29 = vector.shape_cast %28 : vector<16x16x4xbf16> to vector<256x4xbf16>
      %c0_23 = arith.constant 0 : index
      %c8 = arith.constant 8 : index
      %30 = vector.load %arg7[%c0_23, %c8] : memref<256x36xbf16, #tpu.memory_space<vmem>>, vector<256x4xbf16>
      tpu.vector_store %arg7[%c0_23, %c8], %29 {strides = array<i32>} : memref<256x36xbf16, #tpu.memory_space<vmem>>, vector<256x4xbf16>,
      %c1_i32 = arith.constant 1 : i32
      %31 = arith.addi %0, %c1_i32 : i32
      %c0_24 = arith.constant 0 : index
      %32 = arith.index_cast %31 : i32 to index
      %c0_25 = arith.constant 0 : index
      %c0_26 = arith.constant 0 : index
      %33 = vector.load %arg3[%c0_24, %32, %c0_25, %c0_26] : memref<1x18x18x4xbf16, #tpu.memory_space<vmem>>, vector<1x16x16x4xbf16>
      %34 = vector.shape_cast %33 : vector<1x16x16x4xbf16> to vector<16x16x4xbf16>
      %35 = vector.shape_cast %34 : vector<16x16x4xbf16> to vector<256x4xbf16>
      %c0_27 = arith.constant 0 : index
      %c12 = arith.constant 12 : index
      %36 = vector.load %arg7[%c0_27, %c12] : memref<256x36xbf16, #tpu.memory_space<vmem>>, vector<256x4xbf16>
      tpu.vector_store %arg7[%c0_27, %c12], %35 {strides = array<i32>} : memref<256x36xbf16, #tpu.memory_space<vmem>>, vector<256x4xbf16>,
      %c1_i32_28 = arith.constant 1 : i32
      %37 = arith.addi %0, %c1_i32_28 : i32
      %c0_29 = arith.constant 0 : index
      %38 = arith.index_cast %37 : i32 to index
      %c1_30 = arith.constant 1 : index
      %c0_31 = arith.constant 0 : index
      %39 = vector.load %arg3[%c0_29, %38, %c1_30, %c0_31] : memref<1x18x18x4xbf16, #tpu.memory_space<vmem>>, vector<1x16x16x4xbf16>
      %40 = vector.shape_cast %39 : vector<1x16x16x4xbf16> to vector<16x16x4xbf16>
      %41 = vector.shape_cast %40 : vector<16x16x4xbf16> to vector<256x4xbf16>
      %c0_32 = arith.constant 0 : index
      %c16 = arith.constant 16 : index
      %42 = vector.load %arg7[%c0_32, %c16] : memref<256x36xbf16, #tpu.memory_space<vmem>>, vector<256x4xbf16>
      tpu.vector_store %arg7[%c0_32, %c16], %41 {strides = array<i32>} : memref<256x36xbf16, #tpu.memory_space<vmem>>, vector<256x4xbf16>,
      %c1_i32_33 = arith.constant 1 : i32
      %43 = arith.addi %0, %c1_i32_33 : i32
      %c0_34 = arith.constant 0 : index
      %44 = arith.index_cast %43 : i32 to index
      %c2_35 = arith.constant 2 : index
      %c0_36 = arith.constant 0 : index
      %45 = vector.load %arg3[%c0_34, %44, %c2_35, %c0_36] : memref<1x18x18x4xbf16, #tpu.memory_space<vmem>>, vector<1x16x16x4xbf16>
      %46 = vector.shape_cast %45 : vector<1x16x16x4xbf16> to vector<16x16x4xbf16>
      %47 = vector.shape_cast %46 : vector<16x16x4xbf16> to vector<256x4xbf16>
      %c0_37 = arith.constant 0 : index
      %c20 = arith.constant 20 : index
      %48 = vector.load %arg7[%c0_37, %c20] : memref<256x36xbf16, #tpu.memory_space<vmem>>, vector<256x4xbf16>
      tpu.vector_store %arg7[%c0_37, %c20], %47 {strides = array<i32>} : memref<256x36xbf16, #tpu.memory_space<vmem>>, vector<256x4xbf16>,
      %c2_i32 = arith.constant 2 : i32
      %49 = arith.addi %0, %c2_i32 : i32
      %c0_38 = arith.constant 0 : index
      %50 = arith.index_cast %49 : i32 to index
      %c0_39 = arith.constant 0 : index
      %c0_40 = arith.constant 0 : index
      %51 = vector.load %arg3[%c0_38, %50, %c0_39, %c0_40] : memref<1x18x18x4xbf16, #tpu.memory_space<vmem>>, vector<1x16x16x4xbf16>
      %52 = vector.shape_cast %51 : vector<1x16x16x4xbf16> to vector<16x16x4xbf16>
      %53 = vector.shape_cast %52 : vector<16x16x4xbf16> to vector<256x4xbf16>
      %c0_41 = arith.constant 0 : index
      %c24 = arith.constant 24 : index
      %54 = vector.load %arg7[%c0_41, %c24] : memref<256x36xbf16, #tpu.memory_space<vmem>>, vector<256x4xbf16>
      tpu.vector_store %arg7[%c0_41, %c24], %53 {strides = array<i32>} : memref<256x36xbf16, #tpu.memory_space<vmem>>, vector<256x4xbf16>,
      %c2_i32_42 = arith.constant 2 : i32
      %55 = arith.addi %0, %c2_i32_42 : i32
      %c0_43 = arith.constant 0 : index
      %56 = arith.index_cast %55 : i32 to index
      %c1_44 = arith.constant 1 : index
      %c0_45 = arith.constant 0 : index
      %57 = vector.load %arg3[%c0_43, %56, %c1_44, %c0_45] : memref<1x18x18x4xbf16, #tpu.memory_space<vmem>>, vector<1x16x16x4xbf16>
      %58 = vector.shape_cast %57 : vector<1x16x16x4xbf16> to vector<16x16x4xbf16>
      %59 = vector.shape_cast %58 : vector<16x16x4xbf16> to vector<256x4xbf16>
      %c0_46 = arith.constant 0 : index
      %c28 = arith.constant 28 : index
      %60 = vector.load %arg7[%c0_46, %c28] : memref<256x36xbf16, #tpu.memory_space<vmem>>, vector<256x4xbf16>
      tpu.vector_store %arg7[%c0_46, %c28], %59 {strides = array<i32>} : memref<256x36xbf16, #tpu.memory_space<vmem>>, vector<256x4xbf16>,
      %c2_i32_47 = arith.constant 2 : i32
      %61 = arith.addi %0, %c2_i32_47 : i32
      %c0_48 = arith.constant 0 : index
      %62 = arith.index_cast %61 : i32 to index
      %c2_49 = arith.constant 2 : index
      %c0_50 = arith.constant 0 : index
      %63 = vector.load %arg3[%c0_48, %62, %c2_49, %c0_50] : memref<1x18x18x4xbf16, #tpu.memory_space<vmem>>, vector<1x16x16x4xbf16>
      %64 = vector.shape_cast %63 : vector<1x16x16x4xbf16> to vector<16x16x4xbf16>
      %65 = vector.shape_cast %64 : vector<16x16x4xbf16> to vector<256x4xbf16>
      %c0_51 = arith.constant 0 : index
      %c32 = arith.constant 32 : index
      %66 = vector.load %arg7[%c0_51, %c32] : memref<256x36xbf16, #tpu.memory_space<vmem>>, vector<256x4xbf16>
      tpu.vector_store %arg7[%c0_51, %c32], %65 {strides = array<i32>} : memref<256x36xbf16, #tpu.memory_space<vmem>>, vector<256x4xbf16>,
    } else {
    }
    %c0 = arith.constant 0 : index
    %c0_1 = arith.constant 0 : index
    %4 = vector.load %arg7[%c0, %c0_1] : memref<256x36xbf16, #tpu.memory_space<vmem>>, vector<256x36xbf16>
    %c0_2 = arith.constant 0 : index
    %c0_3 = arith.constant 0 : index
    %5 = vector.load %arg4[%c0_2, %c0_3] : memref<36x128xbf16, #tpu.memory_space<vmem>>, vector<36x128xbf16>
    %cst = arith.constant dense<0.000000e+00> : vector<256x128xf32>
    %6 = tpu.matmul %4, %5, %cst {dimension_numbers = #tpu.dot_dimension_numbers<[1], [0], [0], [1], [0, 0, 1, 1], [], []>} : vector<256x36xbf16>, vector<36x128xbf16>, vector<256x128xf32> -> vector<256x128xf32>
    %c0_4 = arith.constant 0 : index
    %c0_5 = arith.constant 0 : index
    %7 = vector.load %arg5[%c0_4, %c0_5] : memref<1x128xf32, #tpu.memory_space<vmem>>, vector<1x128xf32>
    %8 = vector.broadcast %7 : vector<1x128xf32> to vector<256x128xf32>
    %9 = arith.addf %6, %8 : vector<256x128xf32>
    %10 = vector.shape_cast %9 : vector<256x128xf32> to vector<1x16x16x128xf32>
    %11 = arith.truncf %10 : vector<1x16x16x128xf32> to vector<1x16x16x128xbf16>
    %c0_6 = arith.constant 0 : index
    %c0_7 = arith.constant 0 : index
    %c0_8 = arith.constant 0 : index
    %c0_9 = arith.constant 0 : index
    %12 = vector.load %arg6[%c0_6, %c0_7, %c0_8, %c0_9] : memref<1x16x16x128xbf16, #tpu.memory_space<vmem>>, vector<1x16x16x128xbf16>
    tpu.vector_store %arg6[%c0_6, %c0_7, %c0_8, %c0_9], %11 {strides = array<i32>} : memref<1x16x16x128xbf16, #tpu.memory_space<vmem>>, vector<1x16x16x128xbf16>,
    return
  }
  func.func @transform_0(%arg0: i32, %arg1: i32, %arg2: i32) -> (i32, i32, i32, i32) {
    %c0_i32 = arith.constant 0 : i32
    %c0_i32_0 = arith.constant 0 : i32
    %c0_i32_1 = arith.constant 0 : i32
    %c0_i32_2 = arith.constant 0 : i32
    return %arg0, %c0_i32, %c0_i32_0, %c0_i32_1 : i32, i32, i32, i32
  }
  func.func @transform_1(%arg0: i32, %arg1: i32, %arg2: i32) -> (i32, i32) {
    %c0_i32 = arith.constant 0 : i32
    %c0_i32_0 = arith.constant 0 : i32
    return %c0_i32, %arg2 : i32, i32
  }
  func.func @transform_2(%arg0: i32, %arg1: i32, %arg2: i32) -> (i32, i32) {
    %c0_i32 = arith.constant 0 : i32
    %c0_i32_0 = arith.constant 0 : i32
    return %c0_i32, %arg2 : i32, i32
  }
  func.func @transform_3(%arg0: i32, %arg1: i32, %arg2: i32) -> (i32, i32, i32, i32) {
    %c0_i32 = arith.constant 0 : i32
    %c0_i32_0 = arith.constant 0 : i32
    return %arg0, %arg1, %c0_i32, %arg2 : i32, i32, i32, i32
  }
}

</mosaic_0001>

<llo_original>
// kernel: prunable_conv2d_pallas.1
$region0: #{prunable_conv2d_pallas.1}
  #allocation0 [shape = 'u32[]', space=smem, size = 0x4, offset = 0x4, fixed_abs, tag = 'smem constant byte address 0x4 - core index']
  #allocation1 [shape = 'u32[72,128]{1,0:T(1,128)}', space=vmem, size = 0x9000, scoped, tag = 'internal scratch']
  #allocation2 [shape = 'bf16[256,36]{1,0:T(8,128)(2,1)}', space=vmem, size = 0x10000, scoped, tag = 'scratch operand']
  %s0 = inlined_call_operand.vmem [shape: bf16[2,18,18,4], index: 0, kind: input, shape index: {}]
  %s1 = inlined_call_operand.vmem [shape: bf16[36,128], index: 1, kind: input, shape index: {}]
  %s2 = inlined_call_operand.vmem [shape: f32[1,128], index: 2, kind: input, shape index: {}]
  %s3 = inlined_call_operand.vmem [shape: bf16[2,16,16,128], index: 3, kind: output, shape index: {}]
  %s4 = sld [smem:[#allocation0]]
  $region49: #{prunable_conv2d_pallas.1} parent=0
    _
  %s6 = ssub.s32 1, %s4
  %s7 = scalar_select 0, %s6, %s4
  loop: start=0, step=1, limit=4
  $region2: #{prunable_conv2d_pallas.1} parent=0 // loop_pre_header
    _
  $region3: #{prunable_conv2d_pallas.1} parent=0 // loop_header
    %s9 = sphi 0, %s13
    %p10 = scmp.ge.s32.totalorder %s9, 4
    %s16 = sphi 0, %s35
    %s17 = sphi 0, %s31
    %s18 = sphi 0, %s27
    %s19 = sphi 0, %s16
    %s20 = sphi 0, %s17
    %s21 = sphi 0, %s18
    %s22 = sphi 0, %s19
    %s23 = sphi 0, %s20
    %s24 = sphi 0, %s21
    %s38 = sphi 0, %s40
    %s41 = sphi 0, %s38
    %s42 = sphi 0, %s41
    %s58 = sphi 0, %s42
    %s64 = sphi 0, %s66
    %s67 = sphi 0, %s64
    %s68 = sphi 0, %s67
    %s84 = sphi 0, %s68
    %s90 = sphi 0, %s92
    %s93 = sphi 0, %s90
    %s94 = sphi 0, %s93
    %s110 = sphi 0, %s94
    %s120 = sphi 0, %s122
    %s123 = sphi 0, %s120
    %s124 = sphi 0, %s123
    %s140 = sphi 0, %s124
  $region4: #{prunable_conv2d_pallas.1} parent=0 // loop_header_branch
    %12 = sbr.rel (%p10) target = $region8
  $region5: #{prunable_conv2d_pallas.1} parent=0 // loop_body
    %s14 = ssub.s32 %s9, 1
    %s15 = ssub.s32 %s9, 2
    %s25 = sadd.s32 1, %s18
    %p26 = scmp.ge.s32.totalorder %s25, 1
    %s27 = scalar_select %p26, 0, %s25
    %s28 = sadd.s32 1, %s17
    %s29 = scalar_select %p26, %s28, %s17
    %p30 = scmp.ge.s32.totalorder %s29, 1
    %s31 = scalar_select %p30, 0, %s29
    %s32 = sadd.s32 1, %s16
    %s33 = scalar_select %p30, %s32, %s16
    %p34 = scmp.ge.s32.totalorder %s33, 2
    %s35 = scalar_select %p34, 0, %s33
    %s36 = ssub.s32 %s16, %s35
    %p37 = scmp.eq.s32.totalorder %s36, 0
    %s39 = sadd.s32 %s38, 1
    %s40 = scalar_select %p37, %s38, %s39
    %p43 = pneg %p37
    %p44 = scmp.eq.s32.totalorder %s9, 1
    %p45 = por %p43, %p44
    %p46 = scmp.ne.s32.totalorder %s38, %s41
    %p47 = scmp.eq.s32.totalorder %s9, 0
    %p48 = por %p46, %p47
    %p49 = scmp.ne.s32.totalorder %s38, %s41
    %p50 = scmp.eq.s32.totalorder %s14, 1
    %p51 = por %p49, %p50
    %p52 = scmp.ne.s32.totalorder %s41, %s42
    %p53 = scmp.eq.s32.totalorder %s14, 0
    %p54 = por %p52, %p53
    %p55 = scmp.ne.s32.totalorder %s41, %s42
    %p56 = scmp.eq.s32.totalorder %s15, 1
    %p57 = por %p55, %p56
    %p59 = scmp.ne.s32.totalorder %s42, %s58
    %p60 = scmp.eq.s32.totalorder %s15, 0
    %p61 = por %p59, %p60
    %s62 = ssub.s32 %s18, %s27
    %p63 = scmp.eq.s32.totalorder %s62, 0
    %s65 = sadd.s32 %s64, 1
    %s66 = scalar_select %p63, %s64, %s65
    %p69 = pneg %p63
    %p70 = scmp.eq.s32.totalorder %s9, 1
    %p71 = por %p69, %p70
    %p72 = scmp.ne.s32.totalorder %s64, %s67
    %p73 = scmp.eq.s32.totalorder %s9, 0
    %p74 = por %p72, %p73
    %p75 = scmp.ne.s32.totalorder %s64, %s67
    %p76 = scmp.eq.s32.totalorder %s14, 1
    %p77 = por %p75, %p76
    %p78 = scmp.ne.s32.totalorder %s67, %s68
    %p79 = scmp.eq.s32.totalorder %s14, 0
    %p80 = por %p78, %p79
    %p81 = scmp.ne.s32.totalorder %s67, %s68
    %p82 = scmp.eq.s32.totalorder %s15, 1
    %p83 = por %p81, %p82
    %p85 = scmp.ne.s32.totalorder %s68, %s84
    %p86 = scmp.eq.s32.totalorder %s15, 0
    %p87 = por %p85, %p86
    %s88 = ssub.s32 %s18, %s27
    %p89 = scmp.eq.s32.totalorder %s88, 0
    %s91 = sadd.s32 %s90, 1
    %s92 = scalar_select %p89, %s90, %s91
    %p95 = pneg %p89
    %p96 = scmp.eq.s32.totalorder %s9, 1
    %p97 = por %p95, %p96
    %p98 = scmp.ne.s32.totalorder %s90, %s93
    %p99 = scmp.eq.s32.totalorder %s9, 0
    %p100 = por %p98, %p99
    %p101 = scmp.ne.s32.totalorder %s90, %s93
    %p102 = scmp.eq.s32.totalorder %s14, 1
    %p103 = por %p101, %p102
    %p104 = scmp.ne.s32.totalorder %s93, %s94
    %p105 = scmp.eq.s32.totalorder %s14, 0
    %p106 = por %p104, %p105
    %p107 = scmp.ne.s32.totalorder %s93, %s94
    %p108 = scmp.eq.s32.totalorder %s15, 1
    %p109 = por %p107, %p108
    %p111 = scmp.ne.s32.totalorder %s94, %s110
    %p112 = scmp.eq.s32.totalorder %s15, 0
    %p113 = por %p111, %p112
    %s114 = ssub.s32 %s16, %s35
    %s115 = ssub.s32 %s17, %s31
    %s116 = sor.u32 %s114, %s115
    %s117 = ssub.s32 %s18, %s27
    %s118 = sor.u32 %s116, %s117
    %p119 = scmp.eq.s32.totalorder %s118, 0
    %s121 = sadd.s32 %s120, 1
    %s122 = scalar_select %p119, %s120, %s121
    %p125 = pneg %p119
    %p126 = scmp.eq.s32.totalorder %s9, 1
    %p127 = por %p125, %p126
    %p128 = scmp.ne.s32.totalorder %s120, %s123
    %p129 = scmp.eq.s32.totalorder %s9, 0
    %p130 = por %p128, %p129
    %p131 = scmp.ne.s32.totalorder %s120, %s123
    %p132 = scmp.eq.s32.totalorder %s14, 1
    %p133 = por %p131, %p132
    %p134 = scmp.ne.s32.totalorder %s123, %s124
    %p135 = scmp.eq.s32.totalorder %s14, 0
    %p136 = por %p134, %p135
    %p137 = scmp.ne.s32.totalorder %s123, %s124
    %p138 = scmp.eq.s32.totalorder %s15, 1
    %p139 = por %p137, %p138
    %p141 = scmp.ne.s32.totalorder %s124, %s140
    %p142 = scmp.eq.s32.totalorder %s15, 0
    %p143 = por %p141, %p142
    %p144 = scmp.le.s32.totalorder 1, %s9
    %p145 = scmp.lt.s32.totalorder %s9, 3
    %p146 = pnand %p144, %p145
    %p147 = pneg %p146
    // Predicated region
    $region9: #{prunable_conv2d_pallas.1} parent=5 // pred_check
      _
    $region10: #{prunable_conv2d_pallas.1} parent=5 // pred_check_branch
      %149 = sbr.rel (%p146) target = $region12
    $region11: #{prunable_conv2d_pallas.1} parent=5 // pred_region
      %s150 = ssub.s32 %s9, 1
      // Predicated region
      $region13: #{prunable_conv2d_pallas.1} parent=11 // pred_check
        %p151 = pneg %p80
      $region14: #{prunable_conv2d_pallas.1} parent=11 // pred_check_branch
        %153 = sbr.rel (%p151) target = $region16
      $region15: #{prunable_conv2d_pallas.1} parent=11 // pred_region
        %p154 = scmp.lt.s32.totalorder %s21, 0
        %s155 = scalar_select %p154, %s21, 0
        %s156 = smul.addr %s155, 4
        %s157 = scalar_lea.vmem %s1, %s156
      $region16: #{prunable_conv2d_pallas.1} parent=11 // pred_fallthru
        _
      // Predicated region
      $region17: #{prunable_conv2d_pallas.1} parent=11 // pred_check
        %p158 = pneg %p106
      $region18: #{prunable_conv2d_pallas.1} parent=11 // pred_check_branch
        %160 = sbr.rel (%p158) target = $region20
      $region19: #{prunable_conv2d_pallas.1} parent=11 // pred_region
        %p161 = scmp.lt.s32.totalorder %s21, 0
        %s162 = scalar_select %p161, %s21, 0
        %s163 = scalar_lea.vmem %s2, %s162
      $region20: #{prunable_conv2d_pallas.1} parent=11 // pred_fallthru
        _
    $region12: #{prunable_conv2d_pallas.1} parent=5 // pred_fallthru
      _
    %p164 = scmp.lt.s32.totalorder %s9, 2
    // Predicated region
    $region21: #{prunable_conv2d_pallas.1} parent=5 // pred_check
      %p165 = pneg %p164
    $region22: #{prunable_conv2d_pallas.1} parent=5 // pred_check_branch
      %167 = sbr.rel (%p165) target = $region24
    $region23: #{prunable_conv2d_pallas.1} parent=5 // pred_region
      // Predicated region
      $region25: #{prunable_conv2d_pallas.1} parent=23 // pred_check
        %p168 = pneg %p48
      $region26: #{prunable_conv2d_pallas.1} parent=23 // pred_check_branch
        %170 = sbr.rel (%p168) target = $region28
      $region27: #{prunable_conv2d_pallas.1} parent=23 // pred_region
        %p171 = scmp.lt.s32.totalorder %s16, 1
        %s172 = scalar_select %p171, %s16, 1
        %s173 = smul.addr %s172, 54
        %s174 = smul.addr %s173, 4
        %s175 = scalar_lea.vmem %s0, %s174
      $region28: #{prunable_conv2d_pallas.1} parent=23 // pred_fallthru
        _
    $region24: #{prunable_conv2d_pallas.1} parent=5 // pred_fallthru
      _
    %p176 = scmp.le.s32.totalorder 1, %s9
    %p177 = scmp.lt.s32.totalorder %s9, 3
    %p178 = pnand %p176, %p177
    %p179 = pneg %p178
    // Predicated region
    $region29: #{prunable_conv2d_pallas.1} parent=5 // pred_check
      _
    $region30: #{prunable_conv2d_pallas.1} parent=5 // pred_check_branch
      %181 = sbr.rel (%p178) target = $region32
    $region31: #{prunable_conv2d_pallas.1} parent=5 // pred_region
      %s182 = ssub.s32 %s9, 1
      %p183 = scmp.lt.s32.totalorder %s19, 1
      %s184 = scalar_select %p183, %s19, 1
      %s185 = smul.addr %s184, 54
      %s186 = smul.addr %s185, 4
      %s187 = scalar_lea.vmem %s0, %s186
      %p188 = pneg %p54
      %p189 = pneg %p51
      %p190 = scmp.lt.s32.totalorder %s21, 0
      %s191 = scalar_select %p190, %s21, 0
      %s192 = smul.addr %s191, 4
      %s193 = scalar_lea.vmem %s1, %s192
      %p194 = pneg %p80
      %p195 = pneg %p77
      %p196 = scmp.lt.s32.totalorder %s21, 0
      %s197 = scalar_select %p196, %s21, 0
      %s198 = scalar_lea.vmem %s2, %s197
      %p199 = pneg %p106
      %p200 = pneg %p103
      %p201 = pneg %p136
      %p202 = pneg %p133
      %s203 = smul.u32 16, %s20
      %p204 = scmp.lt.s32.totalorder %s19, 1
      %s205 = scalar_select %p204, %s19, 1
      %p206 = scmp.lt.s32.totalorder %s203, 15
      %s207 = scalar_select %p206, %s203, 15
      %p208 = scmp.lt.s32.totalorder %s21, 0
      %s209 = scalar_select %p208, %s21, 0
      %s210 = smul.addr %s207, 2
      %s211 = sadd.s32 %s209, %s210
      %s212 = smul.addr %s205, 32
      %s213 = sadd.s32 %s211, %s212
      %s214 = smul.addr %s213, 4
      %s215 = scalar_lea.vmem %s3, %s214
      %p216 = scmp.lt.s32.totalorder %s19, 1
      %s217 = scalar_select %p216, %s19, 1
      %s218 = smul.addr %s217, 54
      %s219 = smul.addr %s218, 4
      %s220 = scalar_lea.vmem %s0, %s219
      %p221 = scmp.lt.s32.totalorder %s21, 0
      %s222 = scalar_select %p221, %s21, 0
      %s223 = smul.addr %s222, 4
      %s224 = scalar_lea.vmem %s1, %s223
      %p225 = scmp.lt.s32.totalorder %s21, 0
      %s226 = scalar_select %p225, %s21, 0
      %s227 = scalar_lea.vmem %s2, %s226
      %s228 = smul.u32 16, %s20
      %p229 = scmp.lt.s32.totalorder %s19, 1
      %s230 = scalar_select %p229, %s19, 1
      %p231 = scmp.lt.s32.totalorder %s228, 15
      %s232 = scalar_select %p231, %s228, 15
      %p233 = scmp.lt.s32.totalorder %s21, 0
      %s234 = scalar_select %p233, %s21, 0
      %s235 = smul.addr %s232, 2
      %s236 = sadd.s32 %s234, %s235
      %s237 = smul.addr %s230, 32
      %s238 = sadd.s32 %s236, %s237
      %s239 = smul.addr %s238, 4
      %s240 = scalar_lea.vmem %s3, %s239
      %s241 = smul.u32 16, %s20
      %s243 = smul.u32 %s20, 16
      %p244 = scmp.eq.s32.totalorder %s21, 0
      // Predicated region
      $region33: #{prunable_conv2d_pallas.1} parent=31 // pred_check
        %p245 = pneg %p244
      $region34: #{prunable_conv2d_pallas.1} parent=31 // pred_check_branch
        %247 = sbr.rel (%p245) target = $region36
      $region35: #{prunable_conv2d_pallas.1} parent=31 // pred_region
        %s248 = smul.u32 %s243, 3
        %s249 = smul.addr %s248, 4
        %s250 = scalar_lea.vmem %s220, %s249
        %v251 = vld [vmem:[%s250] sm:$0xf]
        %v252 = vld [vmem:[%s250 + $0x4] sm:$0xf]
        %v253 = vld [vmem:[%s250 + $0xc] sm:$0xf]
        %v254 = vld [vmem:[%s250 + $0x10] sm:$0xf]
        %v255 = vld [vmem:[%s250 + $0x18] sm:$0xf]
        %v256 = vld [vmem:[%s250 + $0x1c] sm:$0xf]
        %v257 = vld [vmem:[%s250 + $0x24] sm:$0xf]
        %v258 = vld [vmem:[%s250 + $0x28] sm:$0xf]
        %v259 = vld [vmem:[%s250 + $0x30] sm:$0xf]
        %v260 = vld [vmem:[%s250 + $0x34] sm:$0xf]
        %v261 = vld [vmem:[%s250 + $0x3c] sm:$0xf]
        %v262 = vld [vmem:[%s250 + $0x40] sm:$0xf]
        %v263 = vld [vmem:[%s250 + $0x48] sm:$0xf]
        %v264 = vld [vmem:[%s250 + $0x4c] sm:$0xf]
        %v265 = vld [vmem:[%s250 + $0x54] sm:$0xf]
        %v266 = vld [vmem:[%s250 + $0x58] sm:$0xf]
        %v267 = vld [vmem:[%s250 + $0x60] sm:$0xf]
        %v268 = vld [vmem:[%s250 + $0x64] sm:$0xf]
        %v269 = vld [vmem:[%s250 + $0x6c] sm:$0xf]
        %v270 = vld [vmem:[%s250 + $0x70] sm:$0xf]
        %v271 = vld [vmem:[%s250 + $0x78] sm:$0xf]
        %v272 = vld [vmem:[%s250 + $0x7c] sm:$0xf]
        %v273 = vld [vmem:[%s250 + $0x84] sm:$0xf]
        %v274 = vld [vmem:[%s250 + $0x88] sm:$0xf]
        %v275 = vld [vmem:[%s250 + $0x90] sm:$0xf]
        %v276 = vld [vmem:[%s250 + $0x94] sm:$0xf]
        %v277 = vld [vmem:[%s250 + $0x9c] sm:$0xf]
        %v278 = vld [vmem:[%s250 + $0xa0] sm:$0xf]
        %v279 = vld [vmem:[%s250 + $0xa8] sm:$0xf]
        %v280 = vld [vmem:[%s250 + $0xac] sm:$0xf]
        %v281 = vld [vmem:[%s250 + $0xb4] sm:$0xf]
        %v282 = vld [vmem:[%s250 + $0xb8] sm:$0xf]
        %vm283 = vcmask 27648
        %284 = vst.msk [vmem:[#allocation2] sm:$0xf] %vm283, %v251
        %285 = vst.msk [vmem:[#allocation2 + $0x4] sm:$0xf] %vm283, %v252
        %286 = vst.msk [vmem:[#allocation2 + $0x8] sm:$0xf] %vm283, %v253
        %287 = vst.msk [vmem:[#allocation2 + $0xc] sm:$0xf] %vm283, %v254
        %288 = vst.msk [vmem:[#allocation2 + $0x10] sm:$0xf] %vm283, %v255
        %289 = vst.msk [vmem:[#allocation2 + $0x14] sm:$0xf] %vm283, %v256
        %290 = vst.msk [vmem:[#allocation2 + $0x18] sm:$0xf] %vm283, %v257
        %291 = vst.msk [vmem:[#allocation2 + $0x1c] sm:$0xf] %vm283, %v258
        %292 = vst.msk [vmem:[#allocation2 + $0x20] sm:$0xf] %vm283, %v259
        %293 = vst.msk [vmem:[#allocation2 + $0x24] sm:$0xf] %vm283, %v260
        %294 = vst.msk [vmem:[#allocation2 + $0x28] sm:$0xf] %vm283, %v261
        %295 = vst.msk [vmem:[#allocation2 + $0x2c] sm:$0xf] %vm283, %v262
        %296 = vst.msk [vmem:[#allocation2 + $0x30] sm:$0xf] %vm283, %v263
        %297 = vst.msk [vmem:[#allocation2 + $0x34] sm:$0xf] %vm283, %v264
        %298 = vst.msk [vmem:[#allocation2 + $0x38] sm:$0xf] %vm283, %v265
        %299 = vst.msk [vmem:[#allocation2 + $0x3c] sm:$0xf] %vm283, %v266
        %300 = vst.msk [vmem:[#allocation2 + $0x40] sm:$0xf] %vm283, %v267
        %301 = vst.msk [vmem:[#allocation2 + $0x44] sm:$0xf] %vm283, %v268
        %302 = vst.msk [vmem:[#allocation2 + $0x48] sm:$0xf] %vm283, %v269
        %303 = vst.msk [vmem:[#allocation2 + $0x4c] sm:$0xf] %vm283, %v270
        %304 = vst.msk [vmem:[#allocation2 + $0x50] sm:$0xf] %vm283, %v271
        %305 = vst.msk [vmem:[#allocation2 + $0x54] sm:$0xf] %vm283, %v272
        %306 = vst.msk [vmem:[#allocation2 + $0x58] sm:$0xf] %vm283, %v273
        %307 = vst.msk [vmem:[#allocation2 + $0x5c] sm:$0xf] %vm283, %v274
        %308 = vst.msk [vmem:[#allocation2 + $0x60] sm:$0xf] %vm283, %v275
        %309 = vst.msk [vmem:[#allocation2 + $0x64] sm:$0xf] %vm283, %v276
        %310 = vst.msk [vmem:[#allocation2 + $0x68] sm:$0xf] %vm283, %v277
        %311 = vst.msk [vmem:[#allocation2 + $0x6c] sm:$0xf] %vm283, %v278
        %312 = vst.msk [vmem:[#allocation2 + $0x70] sm:$0xf] %vm283, %v279
        %313 = vst.msk [vmem:[#allocation2 + $0x74] sm:$0xf] %vm283, %v280
        %314 = vst.msk [vmem:[#allocation2 + $0x78] sm:$0xf] %vm283, %v281
        %315 = vst.msk [vmem:[#allocation2 + $0x7c] sm:$0xf] %vm283, %v282
        %v316 = vld [vmem:[%s250] sm:$0xf]
        %v317 = vld [vmem:[%s250 + $0x4] sm:$0xf]
        %v318 = vld [vmem:[%s250 + $0x8] sm:$0x1]
        %v319 = vld [vmem:[%s250 + $0xc] sm:$0xf]
        %v320 = vld [vmem:[%s250 + $0x10] sm:$0xf]
        %v321 = vld [vmem:[%s250 + $0x14] sm:$0x1]
        %v322 = vld [vmem:[%s250 + $0x18] sm:$0xf]
        %v323 = vld [vmem:[%s250 + $0x1c] sm:$0xf]
        %v324 = vld [vmem:[%s250 + $0x20] sm:$0x1]
        %v325 = vld [vmem:[%s250 + $0x24] sm:$0xf]
        %v326 = vld [vmem:[%s250 + $0x28] sm:$0xf]
        %v327 = vld [vmem:[%s250 + $0x2c] sm:$0x1]
        %v328 = vld [vmem:[%s250 + $0x30] sm:$0xf]
        %v329 = vld [vmem:[%s250 + $0x34] sm:$0xf]
        %v330 = vld [vmem:[%s250 + $0x38] sm:$0x1]
        %v331 = vld [vmem:[%s250 + $0x3c] sm:$0xf]
        %v332 = vld [vmem:[%s250 + $0x40] sm:$0xf]
        %v333 = vld [vmem:[%s250 + $0x44] sm:$0x1]
        %v334 = vld [vmem:[%s250 + $0x48] sm:$0xf]
        %v335 = vld [vmem:[%s250 + $0x4c] sm:$0xf]
        %v336 = vld [vmem:[%s250 + $0x50] sm:$0x1]
        %v337 = vld [vmem:[%s250 + $0x54] sm:$0xf]
        %v338 = vld [vmem:[%s250 + $0x58] sm:$0xf]
        %v339 = vld [vmem:[%s250 + $0x5c] sm:$0x1]
        %v340 = vld [vmem:[%s250 + $0x60] sm:$0xf]
        %v341 = vld [vmem:[%s250 + $0x64] sm:$0xf]
        %v342 = vld [vmem:[%s250 + $0x68] sm:$0x1]
        %v343 = vld [vmem:[%s250 + $0x6c] sm:$0xf]
        %v344 = vld [vmem:[%s250 + $0x70] sm:$0xf]
        %v345 = vld [vmem:[%s250 + $0x74] sm:$0x1]
        %v346 = vld [vmem:[%s250 + $0x78] sm:$0xf]
        %v347 = vld [vmem:[%s250 + $0x7c] sm:$0xf]
        %v348 = vld [vmem:[%s250 + $0x80] sm:$0x1]
        %v349 = vld [vmem:[%s250 + $0x84] sm:$0xf]
        %v350 = vld [vmem:[%s250 + $0x88] sm:$0xf]
        %v351 = vld [vmem:[%s250 + $0x8c] sm:$0x1]
        %v352 = vld [vmem:[%s250 + $0x90] sm:$0xf]
        %v353 = vld [vmem:[%s250 + $0x94] sm:$0xf]
        %v354 = vld [vmem:[%s250 + $0x98] sm:$0x1]
        %v355 = vld [vmem:[%s250 + $0x9c] sm:$0xf]
        %v356 = vld [vmem:[%s250 + $0xa0] sm:$0xf]
        %v357 = vld [vmem:[%s250 + $0xa4] sm:$0x1]
        %v358 = vld [vmem:[%s250 + $0xa8] sm:$0xf]
        %v359 = vld [vmem:[%s250 + $0xac] sm:$0xf]
        %v360 = vld [vmem:[%s250 + $0xb0] sm:$0x1]
        %v361 = vld [vmem:[%s250 + $0xb4] sm:$0xf]
        %v362 = vld [vmem:[%s250 + $0xb8] sm:$0xf]
        %v363 = vld [vmem:[%s250 + $0xbc] sm:$0x1]
        %vm364 = vsmask.f32 3328
        %vm365 = vsmask.f32 7440
        %vm366 = vmor %vm364, %vm365
        %v368 = vshrl.u32 %v316, 16
        %v370 = vrot.slane %v368, 4
        %v371 = vshll.u32 %v316, 16
        %v373 = vrot.slane %v371, 5
        %v374 = vor.u32 %v370, %v373
        %v375 = vrot.slane %v374, 4
        %v377 = vshll.u32 %v317, 16
        %v379 = vrot.slane %v377, 5
        %v380 = vsel %vm366, %v375, %v379
        %v381 = vshrl.u32 %v317, 16
        %v383 = vrot.slane %v381, 4
        %v384 = vor.u32 %v383, %v379
        %v385 = vrot.slane %v384, 4
        %v387 = vshll.u32 %v318, 16
        %v389 = vrot.slane %v387, 5
        %v390 = vsel %vm366, %v385, %v389
        %v392 = vshrl.u32 %v319, 16
        %v394 = vrot.slane %v392, 4
        %v395 = vshll.u32 %v319, 16
        %v397 = vrot.slane %v395, 5
        %v398 = vor.u32 %v394, %v397
        %v399 = vrot.slane %v398, 4
        %v401 = vshll.u32 %v320, 16
        %v403 = vrot.slane %v401, 5
        %v404 = vsel %vm366, %v399, %v403
        %v405 = vshrl.u32 %v320, 16
        %v407 = vrot.slane %v405, 4
        %v408 = vor.u32 %v407, %v403
        %v409 = vrot.slane %v408, 4
        %v411 = vshll.u32 %v321, 16
        %v413 = vrot.slane %v411, 5
        %v414 = vsel %vm366, %v409, %v413
        %v416 = vshrl.u32 %v322, 16
        %v418 = vrot.slane %v416, 4
        %v419 = vshll.u32 %v322, 16
        %v421 = vrot.slane %v419, 5
        %v422 = vor.u32 %v418, %v421
        %v423 = vrot.slane %v422, 4
        %v425 = vshll.u32 %v323, 16
        %v427 = vrot.slane %v425, 5
        %v428 = vsel %vm366, %v423, %v427
        %v429 = vshrl.u32 %v323, 16
        %v431 = vrot.slane %v429, 4
        %v432 = vor.u32 %v431, %v427
        %v433 = vrot.slane %v432, 4
        %v435 = vshll.u32 %v324, 16
        %v437 = vrot.slane %v435, 5
        %v438 = vsel %vm366, %v433, %v437
        %v440 = vshrl.u32 %v325, 16
        %v442 = vrot.slane %v440, 4
        %v443 = vshll.u32 %v325, 16
        %v445 = vrot.slane %v443, 5
        %v446 = vor.u32 %v442, %v445
        %v447 = vrot.slane %v446, 4
        %v449 = vshll.u32 %v326, 16
        %v451 = vrot.slane %v449, 5
        %v452 = vsel %vm366, %v447, %v451
        %v453 = vshrl.u32 %v326, 16
        %v455 = vrot.slane %v453, 4
        %v456 = vor.u32 %v455, %v451
        %v457 = vrot.slane %v456, 4
        %v459 = vshll.u32 %v327, 16
        %v461 = vrot.slane %v459, 5
        %v462 = vsel %vm366, %v457, %v461
        %v464 = vshrl.u32 %v328, 16
        %v466 = vrot.slane %v464, 4
        %v467 = vshll.u32 %v328, 16
        %v469 = vrot.slane %v467, 5
        %v470 = vor.u32 %v466, %v469
        %v471 = vrot.slane %v470, 4
        %v473 = vshll.u32 %v329, 16
        %v475 = vrot.slane %v473, 5
        %v476 = vsel %vm366, %v471, %v475
        %v477 = vshrl.u32 %v329, 16
        %v479 = vrot.slane %v477, 4
        %v480 = vor.u32 %v479, %v475
        %v481 = vrot.slane %v480, 4
        %v483 = vshll.u32 %v330, 16
        %v485 = vrot.slane %v483, 5
        %v486 = vsel %vm366, %v481, %v485
        %v488 = vshrl.u32 %v331, 16
        %v490 = vrot.slane %v488, 4
        %v491 = vshll.u32 %v331, 16
        %v493 = vrot.slane %v491, 5
        %v494 = vor.u32 %v490, %v493
        %v495 = vrot.slane %v494, 4
        %v497 = vshll.u32 %v332, 16
        %v499 = vrot.slane %v497, 5
        %v500 = vsel %vm366, %v495, %v499
        %v501 = vshrl.u32 %v332, 16
        %v503 = vrot.slane %v501, 4
        %v504 = vor.u32 %v503, %v499
        %v505 = vrot.slane %v504, 4
        %v507 = vshll.u32 %v333, 16
        %v509 = vrot.slane %v507, 5
        %v510 = vsel %vm366, %v505, %v509
        %v512 = vshrl.u32 %v334, 16
        %v514 = vrot.slane %v512, 4
        %v515 = vshll.u32 %v334, 16
        %v517 = vrot.slane %v515, 5
        %v518 = vor.u32 %v514, %v517
        %v519 = vrot.slane %v518, 4
        %v521 = vshll.u32 %v335, 16
        %v523 = vrot.slane %v521, 5
        %v524 = vsel %vm366, %v519, %v523
        %v525 = vshrl.u32 %v335, 16
        %v527 = vrot.slane %v525, 4
        %v528 = vor.u32 %v527, %v523
        %v529 = vrot.slane %v528, 4
        %v531 = vshll.u32 %v336, 16
        %v533 = vrot.slane %v531, 5
        %v534 = vsel %vm366, %v529, %v533
        %v536 = vshrl.u32 %v337, 16
        %v538 = vrot.slane %v536, 4
        %v539 = vshll.u32 %v337, 16
        %v541 = vrot.slane %v539, 5
        %v542 = vor.u32 %v538, %v541
        %v543 = vrot.slane %v542, 4
        %v545 = vshll.u32 %v338, 16
        %v547 = vrot.slane %v545, 5
        %v548 = vsel %vm366, %v543, %v547
        %v549 = vshrl.u32 %v338, 16
        %v551 = vrot.slane %v549, 4
        %v552 = vor.u32 %v551, %v547
        %v553 = vrot.slane %v552, 4
        %v555 = vshll.u32 %v339, 16
        %v557 = vrot.slane %v555, 5
        %v558 = vsel %vm366, %v553, %v557
        %v560 = vshrl.u32 %v340, 16
        %v562 = vrot.slane %v560, 4
        %v563 = vshll.u32 %v340, 16
        %v565 = vrot.slane %v563, 5
        %v566 = vor.u32 %v562, %v565
        %v567 = vrot.slane %v566, 4
        %v569 = vshll.u32 %v341, 16
        %v571 = vrot.slane %v569, 5
        %v572 = vsel %vm366, %v567, %v571
        %v573 = vshrl.u32 %v341, 16
        %v575 = vrot.slane %v573, 4
        %v576 = vor.u32 %v575, %v571
        %v577 = vrot.slane %v576, 4
        %v579 = vshll.u32 %v342, 16
        %v581 = vrot.slane %v579, 5
        %v582 = vsel %vm366, %v577, %v581
        %v584 = vshrl.u32 %v343, 16
        %v586 = vrot.slane %v584, 4
        %v587 = vshll.u32 %v343, 16
        %v589 = vrot.slane %v587, 5
        %v590 = vor.u32 %v586, %v589
        %v591 = vrot.slane %v590, 4
        %v593 = vshll.u32 %v344, 16
        %v595 = vrot.slane %v593, 5
        %v596 = vsel %vm366, %v591, %v595
        %v597 = vshrl.u32 %v344, 16
        %v599 = vrot.slane %v597, 4
        %v600 = vor.u32 %v599, %v595
        %v601 = vrot.slane %v600, 4
        %v603 = vshll.u32 %v345, 16
        %v605 = vrot.slane %v603, 5
        %v606 = vsel %vm366, %v601, %v605
        %v608 = vshrl.u32 %v346, 16
        %v610 = vrot.slane %v608, 4
        %v611 = vshll.u32 %v346, 16
        %v613 = vrot.slane %v611, 5
        %v614 = vor.u32 %v610, %v613
        %v615 = vrot.slane %v614, 4
        %v617 = vshll.u32 %v347, 16
        %v619 = vrot.slane %v617, 5
        %v620 = vsel %vm366, %v615, %v619
        %v621 = vshrl.u32 %v347, 16
        %v623 = vrot.slane %v621, 4
        %v624 = vor.u32 %v623, %v619
        %v625 = vrot.slane %v624, 4
        %v627 = vshll.u32 %v348, 16
        %v629 = vrot.slane %v627, 5
        %v630 = vsel %vm366, %v625, %v629
        %v632 = vshrl.u32 %v349, 16
        %v634 = vrot.slane %v632, 4
        %v635 = vshll.u32 %v349, 16
        %v637 = vrot.slane %v635, 5
        %v638 = vor.u32 %v634, %v637
        %v639 = vrot.slane %v638, 4
        %v641 = vshll.u32 %v350, 16
        %v643 = vrot.slane %v641, 5
        %v644 = vsel %vm366, %v639, %v643
        %v645 = vshrl.u32 %v350, 16
        %v647 = vrot.slane %v645, 4
        %v648 = vor.u32 %v647, %v643
        %v649 = vrot.slane %v648, 4
        %v651 = vshll.u32 %v351, 16
        %v653 = vrot.slane %v651, 5
        %v654 = vsel %vm366, %v649, %v653
        %v656 = vshrl.u32 %v352, 16
        %v658 = vrot.slane %v656, 4
        %v659 = vshll.u32 %v352, 16
        %v661 = vrot.slane %v659, 5
        %v662 = vor.u32 %v658, %v661
        %v663 = vrot.slane %v662, 4
        %v665 = vshll.u32 %v353, 16
        %v667 = vrot.slane %v665, 5
        %v668 = vsel %vm366, %v663, %v667
        %v669 = vshrl.u32 %v353, 16
        %v671 = vrot.slane %v669, 4
        %v672 = vor.u32 %v671, %v667
        %v673 = vrot.slane %v672, 4
        %v675 = vshll.u32 %v354, 16
        %v677 = vrot.slane %v675, 5
        %v678 = vsel %vm366, %v673, %v677
        %v680 = vshrl.u32 %v355, 16
        %v682 = vrot.slane %v680, 4
        %v683 = vshll.u32 %v355, 16
        %v685 = vrot.slane %v683, 5
        %v686 = vor.u32 %v682, %v685
        %v687 = vrot.slane %v686, 4
        %v689 = vshll.u32 %v356, 16
        %v691 = vrot.slane %v689, 5
        %v692 = vsel %vm366, %v687, %v691
        %v693 = vshrl.u32 %v356, 16
        %v695 = vrot.slane %v693, 4
        %v696 = vor.u32 %v695, %v691
        %v697 = vrot.slane %v696, 4
        %v699 = vshll.u32 %v357, 16
        %v701 = vrot.slane %v699, 5
        %v702 = vsel %vm366, %v697, %v701
        %v704 = vshrl.u32 %v358, 16
        %v706 = vrot.slane %v704, 4
        %v707 = vshll.u32 %v358, 16
        %v709 = vrot.slane %v707, 5
        %v710 = vor.u32 %v706, %v709
        %v711 = vrot.slane %v710, 4
        %v713 = vshll.u32 %v359, 16
        %v715 = vrot.slane %v713, 5
        %v716 = vsel %vm366, %v711, %v715
        %v717 = vshrl.u32 %v359, 16
        %v719 = vrot.slane %v717, 4
        %v720 = vor.u32 %v719, %v715
        %v721 = vrot.slane %v720, 4
        %v723 = vshll.u32 %v360, 16
        %v725 = vrot.slane %v723, 5
        %v726 = vsel %vm366, %v721, %v725
        %v728 = vshrl.u32 %v361, 16
        %v730 = vrot.slane %v728, 4
        %v731 = vshll.u32 %v361, 16
        %v733 = vrot.slane %v731, 5
        %v734 = vor.u32 %v730, %v733
        %v735 = vrot.slane %v734, 4
        %v737 = vshll.u32 %v362, 16
        %v739 = vrot.slane %v737, 5
        %v740 = vsel %vm366, %v735, %v739
        %v741 = vshrl.u32 %v362, 16
        %v743 = vrot.slane %v741, 4
        %v744 = vor.u32 %v743, %v739
        %v745 = vrot.slane %v744, 4
        %v747 = vshll.u32 %v363, 16
        %v749 = vrot.slane %v747, 5
        %v750 = vsel %vm366, %v745, %v749
        %751 = vrot.lane.b32.xlu0 %v380, 4
        %v752 = vpop.permute.xlu0 %751
        %753 = vrot.lane.b32.xlu0 %v390, 4
        %v754 = vpop.permute.xlu0 %753
        %755 = vrot.lane.b32.xlu0 %v404, 4
        %v756 = vpop.permute.xlu0 %755
        %757 = vrot.lane.b32.xlu0 %v414, 4
        %v758 = vpop.permute.xlu0 %757
        %759 = vrot.lane.b32.xlu0 %v428, 4
        %v760 = vpop.permute.xlu0 %759
        %761 = vrot.lane.b32.xlu0 %v438, 4
        %v762 = vpop.permute.xlu0 %761
        %763 = vrot.lane.b32.xlu0 %v452, 4
        %v764 = vpop.permute.xlu0 %763
        %765 = vrot.lane.b32.xlu0 %v462, 4
        %v766 = vpop.permute.xlu0 %765
        %767 = vrot.lane.b32.xlu0 %v476, 4
        %v768 = vpop.permute.xlu0 %767
        %769 = vrot.lane.b32.xlu0 %v486, 4
        %v770 = vpop.permute.xlu0 %769
        %771 = vrot.lane.b32.xlu0 %v500, 4
        %v772 = vpop.permute.xlu0 %771
        %773 = vrot.lane.b32.xlu0 %v510, 4
        %v774 = vpop.permute.xlu0 %773
        %775 = vrot.lane.b32.xlu0 %v524, 4
        %v776 = vpop.permute.xlu0 %775
        %777 = vrot.lane.b32.xlu0 %v534, 4
        %v778 = vpop.permute.xlu0 %777
        %779 = vrot.lane.b32.xlu0 %v548, 4
        %v780 = vpop.permute.xlu0 %779
        %781 = vrot.lane.b32.xlu0 %v558, 4
        %v782 = vpop.permute.xlu0 %781
        %783 = vrot.lane.b32.xlu0 %v572, 4
        %v784 = vpop.permute.xlu0 %783
        %785 = vrot.lane.b32.xlu0 %v582, 4
        %v786 = vpop.permute.xlu0 %785
        %787 = vrot.lane.b32.xlu0 %v596, 4
        %v788 = vpop.permute.xlu0 %787
        %789 = vrot.lane.b32.xlu0 %v606, 4
        %v790 = vpop.permute.xlu0 %789
        %791 = vrot.lane.b32.xlu0 %v620, 4
        %v792 = vpop.permute.xlu0 %791
        %793 = vrot.lane.b32.xlu0 %v630, 4
        %v794 = vpop.permute.xlu0 %793
        %795 = vrot.lane.b32.xlu0 %v644, 4
        %v796 = vpop.permute.xlu0 %795
        %797 = vrot.lane.b32.xlu0 %v654, 4
        %v798 = vpop.permute.xlu0 %797
        %799 = vrot.lane.b32.xlu0 %v668, 4
        %v800 = vpop.permute.xlu0 %799
        %801 = vrot.lane.b32.xlu0 %v678, 4
        %v802 = vpop.permute.xlu0 %801
        %803 = vrot.lane.b32.xlu0 %v692, 4
        %v804 = vpop.permute.xlu0 %803
        %805 = vrot.lane.b32.xlu0 %v702, 4
        %v806 = vpop.permute.xlu0 %805
        %807 = vrot.lane.b32.xlu0 %v716, 4
        %v808 = vpop.permute.xlu0 %807
        %809 = vrot.lane.b32.xlu0 %v726, 4
        %v810 = vpop.permute.xlu0 %809
        %811 = vrot.lane.b32.xlu0 %v740, 4
        %v812 = vpop.permute.xlu0 %811
        %813 = vrot.lane.b32.xlu0 %v750, 4
        %v814 = vpop.permute.xlu0 %813
        %vm847 = vcmask 60448
        %848 = vst.msk [vmem:[#allocation2] sm:$0xf] %vm847, %v752
        %849 = vst.msk [vmem:[#allocation2 + $0x4] sm:$0xf] %vm847, %v754
        %850 = vst.msk [vmem:[#allocation2 + $0x8] sm:$0xf] %vm847, %v756
        %851 = vst.msk [vmem:[#allocation2 + $0xc] sm:$0xf] %vm847, %v758
        %852 = vst.msk [vmem:[#allocation2 + $0x10] sm:$0xf] %vm847, %v760
        %853 = vst.msk [vmem:[#allocation2 + $0x14] sm:$0xf] %vm847, %v762
        %854 = vst.msk [vmem:[#allocation2 + $0x18] sm:$0xf] %vm847, %v764
        %855 = vst.msk [vmem:[#allocation2 + $0x1c] sm:$0xf] %vm847, %v766
        %856 = vst.msk [vmem:[#allocation2 + $0x20] sm:$0xf] %vm847, %v768
        %857 = vst.msk [vmem:[#allocation2 + $0x24] sm:$0xf] %vm847, %v770
        %858 = vst.msk [vmem:[#allocation2 + $0x28] sm:$0xf] %vm847, %v772
        %859 = vst.msk [vmem:[#allocation2 + $0x2c] sm:$0xf] %vm847, %v774
        %860 = vst.msk [vmem:[#allocation2 + $0x30] sm:$0xf] %vm847, %v776
        %861 = vst.msk [vmem:[#allocation2 + $0x34] sm:$0xf] %vm847, %v778
        %862 = vst.msk [vmem:[#allocation2 + $0x38] sm:$0xf] %vm847, %v780
        %863 = vst.msk [vmem:[#allocation2 + $0x3c] sm:$0xf] %vm847, %v782
        %864 = vst.msk [vmem:[#allocation2 + $0x40] sm:$0xf] %vm847, %v784
        %865 = vst.msk [vmem:[#allocation2 + $0x44] sm:$0xf] %vm847, %v786
        %866 = vst.msk [vmem:[#allocation2 + $0x48] sm:$0xf] %vm847, %v788
        %867 = vst.msk [vmem:[#allocation2 + $0x4c] sm:$0xf] %vm847, %v790
        %868 = vst.msk [vmem:[#allocation2 + $0x50] sm:$0xf] %vm847, %v792
        %869 = vst.msk [vmem:[#allocation2 + $0x54] sm:$0xf] %vm847, %v794
        %870 = vst.msk [vmem:[#allocation2 + $0x58] sm:$0xf] %vm847, %v796
        %871 = vst.msk [vmem:[#allocation2 + $0x5c] sm:$0xf] %vm847, %v798
        %872 = vst.msk [vmem:[#allocation2 + $0x60] sm:$0xf] %vm847, %v800
        %873 = vst.msk [vmem:[#allocation2 + $0x64] sm:$0xf] %vm847, %v802
        %874 = vst.msk [vmem:[#allocation2 + $0x68] sm:$0xf] %vm847, %v804
        %875 = vst.msk [vmem:[#allocation2 + $0x6c] sm:$0xf] %vm847, %v806
        %876 = vst.msk [vmem:[#allocation2 + $0x70] sm:$0xf] %vm847, %v808
        %877 = vst.msk [vmem:[#allocation2 + $0x74] sm:$0xf] %vm847, %v810
        %878 = vst.msk [vmem:[#allocation2 + $0x78] sm:$0xf] %vm847, %v812
        %879 = vst.msk [vmem:[#allocation2 + $0x7c] sm:$0xf] %vm847, %v814
        %v880 = vld [vmem:[%s250] sm:$0xe]
        %v881 = vld [vmem:[%s250 + $0x4] sm:$0xf]
        %v882 = vld [vmem:[%s250 + $0x8] sm:$0x1]
        %v883 = vld [vmem:[%s250 + $0xc] sm:$0xe]
        %v884 = vld [vmem:[%s250 + $0x10] sm:$0xf]
        %v885 = vld [vmem:[%s250 + $0x14] sm:$0x1]
        %v886 = vld [vmem:[%s250 + $0x18] sm:$0xe]
        %v887 = vld [vmem:[%s250 + $0x1c] sm:$0xf]
        %v888 = vld [vmem:[%s250 + $0x20] sm:$0x1]
        %v889 = vld [vmem:[%s250 + $0x24] sm:$0xe]
        %v890 = vld [vmem:[%s250 + $0x28] sm:$0xf]
        %v891 = vld [vmem:[%s250 + $0x2c] sm:$0x1]
        %v892 = vld [vmem:[%s250 + $0x30] sm:$0xe]
        %v893 = vld [vmem:[%s250 + $0x34] sm:$0xf]
        %v894 = vld [vmem:[%s250 + $0x38] sm:$0x1]
        %v895 = vld [vmem:[%s250 + $0x3c] sm:$0xe]
        %v896 = vld [vmem:[%s250 + $0x40] sm:$0xf]
        %v897 = vld [vmem:[%s250 + $0x44] sm:$0x1]
        %v898 = vld [vmem:[%s250 + $0x48] sm:$0xe]
        %v899 = vld [vmem:[%s250 + $0x4c] sm:$0xf]
        %v900 = vld [vmem:[%s250 + $0x50] sm:$0x1]
        %v901 = vld [vmem:[%s250 + $0x54] sm:$0xe]
        %v902 = vld [vmem:[%s250 + $0x58] sm:$0xf]
        %v903 = vld [vmem:[%s250 + $0x5c] sm:$0x1]
        %v904 = vld [vmem:[%s250 + $0x60] sm:$0xe]
        %v905 = vld [vmem:[%s250 + $0x64] sm:$0xf]
        %v906 = vld [vmem:[%s250 + $0x68] sm:$0x1]
        %v907 = vld [vmem:[%s250 + $0x6c] sm:$0xe]
        %v908 = vld [vmem:[%s250 + $0x70] sm:$0xf]
        %v909 = vld [vmem:[%s250 + $0x74] sm:$0x1]
        %v910 = vld [vmem:[%s250 + $0x78] sm:$0xe]
        %v911 = vld [vmem:[%s250 + $0x7c] sm:$0xf]
        %v912 = vld [vmem:[%s250 + $0x80] sm:$0x1]
        %v913 = vld [vmem:[%s250 + $0x84] sm:$0xe]
        %v914 = vld [vmem:[%s250 + $0x88] sm:$0xf]
        %v915 = vld [vmem:[%s250 + $0x8c] sm:$0x1]
        %v916 = vld [vmem:[%s250 + $0x90] sm:$0xe]
        %v917 = vld [vmem:[%s250 + $0x94] sm:$0xf]
        %v918 = vld [vmem:[%s250 + $0x98] sm:$0x1]
        %v919 = vld [vmem:[%s250 + $0x9c] sm:$0xe]
        %v920 = vld [vmem:[%s250 + $0xa0] sm:$0xf]
        %v921 = vld [vmem:[%s250 + $0xa4] sm:$0x1]
        %v922 = vld [vmem:[%s250 + $0xa8] sm:$0xe]
        %v923 = vld [vmem:[%s250 + $0xac] sm:$0xf]
        %v924 = vld [vmem:[%s250 + $0xb0] sm:$0x1]
        %v925 = vld [vmem:[%s250 + $0xb4] sm:$0xe]
        %v926 = vld [vmem:[%s250 + $0xb8] sm:$0xf]
        %v927 = vld [vmem:[%s250 + $0xbc] sm:$0x1]
        %vm976 = vcmask 1042432
        %vm977 = vcmask 1046532
        %vm978 = vmor %vm976, %vm977
        %v979 = vrot.slane %v880, 5
        %v980 = vrot.slane %v979, 4
        %v981 = vrot.slane %v881, 5
        %v982 = vsel %vm978, %v980, %v981
        %v983 = vrot.slane %v981, 4
        %v984 = vrot.slane %v882, 5
        %v985 = vsel %vm978, %v983, %v984
        %v986 = vrot.slane %v883, 5
        %v987 = vrot.slane %v986, 4
        %v988 = vrot.slane %v884, 5
        %v989 = vsel %vm978, %v987, %v988
        %v990 = vrot.slane %v988, 4
        %v991 = vrot.slane %v885, 5
        %v992 = vsel %vm978, %v990, %v991
        %v993 = vrot.slane %v886, 5
        %v994 = vrot.slane %v993, 4
        %v995 = vrot.slane %v887, 5
        %v996 = vsel %vm978, %v994, %v995
        %v997 = vrot.slane %v995, 4
        %v998 = vrot.slane %v888, 5
        %v999 = vsel %vm978, %v997, %v998
        %v1000 = vrot.slane %v889, 5
        %v1001 = vrot.slane %v1000, 4
        %v1002 = vrot.slane %v890, 5
        %v1003 = vsel %vm978, %v1001, %v1002
        %v1004 = vrot.slane %v1002, 4
        %v1005 = vrot.slane %v891, 5
        %v1006 = vsel %vm978, %v1004, %v1005
        %v1007 = vrot.slane %v892, 5
        %v1008 = vrot.slane %v1007, 4
        %v1009 = vrot.slane %v893, 5
        %v1010 = vsel %vm978, %v1008, %v1009
        %v1011 = vrot.slane %v1009, 4
        %v1012 = vrot.slane %v894, 5
        %v1013 = vsel %vm978, %v1011, %v1012
        %v1014 = vrot.slane %v895, 5
        %v1015 = vrot.slane %v1014, 4
        %v1016 = vrot.slane %v896, 5
        %v1017 = vsel %vm978, %v1015, %v1016
        %v1018 = vrot.slane %v1016, 4
        %v1019 = vrot.slane %v897, 5
        %v1020 = vsel %vm978, %v1018, %v1019
        %v1021 = vrot.slane %v898, 5
        %v1022 = vrot.slane %v1021, 4
        %v1023 = vrot.slane %v899, 5
        %v1024 = vsel %vm978, %v1022, %v1023
        %v1025 = vrot.slane %v1023, 4
        %v1026 = vrot.slane %v900, 5
        %v1027 = vsel %vm978, %v1025, %v1026
        %v1028 = vrot.slane %v901, 5
        %v1029 = vrot.slane %v1028, 4
        %v1030 = vrot.slane %v902, 5
        %v1031 = vsel %vm978, %v1029, %v1030
        %v1032 = vrot.slane %v1030, 4
        %v1033 = vrot.slane %v903, 5
        %v1034 = vsel %vm978, %v1032, %v1033
        %v1035 = vrot.slane %v904, 5
        %v1036 = vrot.slane %v1035, 4
        %v1037 = vrot.slane %v905, 5
        %v1038 = vsel %vm978, %v1036, %v1037
        %v1039 = vrot.slane %v1037, 4
        %v1040 = vrot.slane %v906, 5
        %v1041 = vsel %vm978, %v1039, %v1040
        %v1042 = vrot.slane %v907, 5
        %v1043 = vrot.slane %v1042, 4
        %v1044 = vrot.slane %v908, 5
        %v1045 = vsel %vm978, %v1043, %v1044
        %v1046 = vrot.slane %v1044, 4
        %v1047 = vrot.slane %v909, 5
        %v1048 = vsel %vm978, %v1046, %v1047
        %v1049 = vrot.slane %v910, 5
        %v1050 = vrot.slane %v1049, 4
        %v1051 = vrot.slane %v911, 5
        %v1052 = vsel %vm978, %v1050, %v1051
        %v1053 = vrot.slane %v1051, 4
        %v1054 = vrot.slane %v912, 5
        %v1055 = vsel %vm978, %v1053, %v1054
        %v1056 = vrot.slane %v913, 5
        %v1057 = vrot.slane %v1056, 4
        %v1058 = vrot.slane %v914, 5
        %v1059 = vsel %vm978, %v1057, %v1058
        %v1060 = vrot.slane %v1058, 4
        %v1061 = vrot.slane %v915, 5
        %v1062 = vsel %vm978, %v1060, %v1061
        %v1063 = vrot.slane %v916, 5
        %v1064 = vrot.slane %v1063, 4
        %v1065 = vrot.slane %v917, 5
        %v1066 = vsel %vm978, %v1064, %v1065
        %v1067 = vrot.slane %v1065, 4
        %v1068 = vrot.slane %v918, 5
        %v1069 = vsel %vm978, %v1067, %v1068
        %v1070 = vrot.slane %v919, 5
        %v1071 = vrot.slane %v1070, 4
        %v1072 = vrot.slane %v920, 5
        %v1073 = vsel %vm978, %v1071, %v1072
        %v1074 = vrot.slane %v1072, 4
        %v1075 = vrot.slane %v921, 5
        %v1076 = vsel %vm978, %v1074, %v1075
        %v1077 = vrot.slane %v922, 5
        %v1078 = vrot.slane %v1077, 4
        %v1079 = vrot.slane %v923, 5
        %v1080 = vsel %vm978, %v1078, %v1079
        %v1081 = vrot.slane %v1079, 4
        %v1082 = vrot.slane %v924, 5
        %v1083 = vsel %vm978, %v1081, %v1082
        %v1084 = vrot.slane %v925, 5
        %v1085 = vrot.slane %v1084, 4
        %v1086 = vrot.slane %v926, 5
        %v1087 = vsel %vm978, %v1085, %v1086
        %v1088 = vrot.slane %v1086, 4
        %v1089 = vrot.slane %v927, 5
        %v1090 = vsel %vm978, %v1088, %v1089
        %1091 = vrot.lane.b32.xlu0 %v982, 8
        %v1092 = vpop.permute.xlu0 %1091
        %1093 = vrot.lane.b32.xlu0 %v985, 8
        %v1094 = vpop.permute.xlu0 %1093
        %1095 = vrot.lane.b32.xlu0 %v989, 8
        %v1096 = vpop.permute.xlu0 %1095
        %1097 = vrot.lane.b32.xlu0 %v992, 8
        %v1098 = vpop.permute.xlu0 %1097
        %1099 = vrot.lane.b32.xlu0 %v996, 8
        %v1100 = vpop.permute.xlu0 %1099
        %1101 = vrot.lane.b32.xlu0 %v999, 8
        %v1102 = vpop.permute.xlu0 %1101
        %1103 = vrot.lane.b32.xlu0 %v1003, 8
        %v1104 = vpop.permute.xlu0 %1103
        %1105 = vrot.lane.b32.xlu0 %v1006, 8
        %v1106 = vpop.permute.xlu0 %1105
        %1107 = vrot.lane.b32.xlu0 %v1010, 8
        %v1108 = vpop.permute.xlu0 %1107
        %1109 = vrot.lane.b32.xlu0 %v1013, 8
        %v1110 = vpop.permute.xlu0 %1109
        %1111 = vrot.lane.b32.xlu0 %v1017, 8
        %v1112 = vpop.permute.xlu0 %1111
        %1113 = vrot.lane.b32.xlu0 %v1020, 8
        %v1114 = vpop.permute.xlu0 %1113
        %1115 = vrot.lane.b32.xlu0 %v1024, 8
        %v1116 = vpop.permute.xlu0 %1115
        %1117 = vrot.lane.b32.xlu0 %v1027, 8
        %v1118 = vpop.permute.xlu0 %1117
        %1119 = vrot.lane.b32.xlu0 %v1031, 8
        %v1120 = vpop.permute.xlu0 %1119
        %1121 = vrot.lane.b32.xlu0 %v1034, 8
        %v1122 = vpop.permute.xlu0 %1121
        %1123 = vrot.lane.b32.xlu0 %v1038, 8
        %v1124 = vpop.permute.xlu0 %1123
        %1125 = vrot.lane.b32.xlu0 %v1041, 8
        %v1126 = vpop.permute.xlu0 %1125
        %1127 = vrot.lane.b32.xlu0 %v1045, 8
        %v1128 = vpop.permute.xlu0 %1127
        %1129 = vrot.lane.b32.xlu0 %v1048, 8
        %v1130 = vpop.permute.xlu0 %1129
        %1131 = vrot.lane.b32.xlu0 %v1052, 8
        %v1132 = vpop.permute.xlu0 %1131
        %1133 = vrot.lane.b32.xlu0 %v1055, 8
        %v1134 = vpop.permute.xlu0 %1133
        %1135 = vrot.lane.b32.xlu0 %v1059, 8
        %v1136 = vpop.permute.xlu0 %1135
        %1137 = vrot.lane.b32.xlu0 %v1062, 8
        %v1138 = vpop.permute.xlu0 %1137
        %1139 = vrot.lane.b32.xlu0 %v1066, 8
        %v1140 = vpop.permute.xlu0 %1139
        %1141 = vrot.lane.b32.xlu0 %v1069, 8
        %v1142 = vpop.permute.xlu0 %1141
        %1143 = vrot.lane.b32.xlu0 %v1073, 8
        %v1144 = vpop.permute.xlu0 %1143
        %1145 = vrot.lane.b32.xlu0 %v1076, 8
        %v1146 = vpop.permute.xlu0 %1145
        %1147 = vrot.lane.b32.xlu0 %v1080, 8
        %v1148 = vpop.permute.xlu0 %1147
        %1149 = vrot.lane.b32.xlu0 %v1083, 8
        %v1150 = vpop.permute.xlu0 %1149
        %1151 = vrot.lane.b32.xlu0 %v1087, 8
        %v1152 = vpop.permute.xlu0 %1151
        %1153 = vrot.lane.b32.xlu0 %v1090, 8
        %v1154 = vpop.permute.xlu0 %1153
        %vm1187 = vcmask 93248
        %1188 = vst.msk [vmem:[#allocation2] sm:$0xf] %vm1187, %v1092
        %1189 = vst.msk [vmem:[#allocation2 + $0x4] sm:$0xf] %vm1187, %v1094
        %1190 = vst.msk [vmem:[#allocation2 + $0x8] sm:$0xf] %vm1187, %v1096
        %1191 = vst.msk [vmem:[#allocation2 + $0xc] sm:$0xf] %vm1187, %v1098
        %1192 = vst.msk [vmem:[#allocation2 + $0x10] sm:$0xf] %vm1187, %v1100
        %1193 = vst.msk [vmem:[#allocation2 + $0x14] sm:$0xf] %vm1187, %v1102
        %1194 = vst.msk [vmem:[#allocation2 + $0x18] sm:$0xf] %vm1187, %v1104
        %1195 = vst.msk [vmem:[#allocation2 + $0x1c] sm:$0xf] %vm1187, %v1106
        %1196 = vst.msk [vmem:[#allocation2 + $0x20] sm:$0xf] %vm1187, %v1108
        %1197 = vst.msk [vmem:[#allocation2 + $0x24] sm:$0xf] %vm1187, %v1110
        %1198 = vst.msk [vmem:[#allocation2 + $0x28] sm:$0xf] %vm1187, %v1112
        %1199 = vst.msk [vmem:[#allocation2 + $0x2c] sm:$0xf] %vm1187, %v1114
        %1200 = vst.msk [vmem:[#allocation2 + $0x30] sm:$0xf] %vm1187, %v1116
        %1201 = vst.msk [vmem:[#allocation2 + $0x34] sm:$0xf] %vm1187, %v1118
        %1202 = vst.msk [vmem:[#allocation2 + $0x38] sm:$0xf] %vm1187, %v1120
        %1203 = vst.msk [vmem:[#allocation2 + $0x3c] sm:$0xf] %vm1187, %v1122
        %1204 = vst.msk [vmem:[#allocation2 + $0x40] sm:$0xf] %vm1187, %v1124
        %1205 = vst.msk [vmem:[#allocation2 + $0x44] sm:$0xf] %vm1187, %v1126
        %1206 = vst.msk [vmem:[#allocation2 + $0x48] sm:$0xf] %vm1187, %v1128
        %1207 = vst.msk [vmem:[#allocation2 + $0x4c] sm:$0xf] %vm1187, %v1130
        %1208 = vst.msk [vmem:[#allocation2 + $0x50] sm:$0xf] %vm1187, %v1132
        %1209 = vst.msk [vmem:[#allocation2 + $0x54] sm:$0xf] %vm1187, %v1134
        %1210 = vst.msk [vmem:[#allocation2 + $0x58] sm:$0xf] %vm1187, %v1136
        %1211 = vst.msk [vmem:[#allocation2 + $0x5c] sm:$0xf] %vm1187, %v1138
        %1212 = vst.msk [vmem:[#allocation2 + $0x60] sm:$0xf] %vm1187, %v1140
        %1213 = vst.msk [vmem:[#allocation2 + $0x64] sm:$0xf] %vm1187, %v1142
        %1214 = vst.msk [vmem:[#allocation2 + $0x68] sm:$0xf] %vm1187, %v1144
        %1215 = vst.msk [vmem:[#allocation2 + $0x6c] sm:$0xf] %vm1187, %v1146
        %1216 = vst.msk [vmem:[#allocation2 + $0x70] sm:$0xf] %vm1187, %v1148
        %1217 = vst.msk [vmem:[#allocation2 + $0x74] sm:$0xf] %vm1187, %v1150
        %1218 = vst.msk [vmem:[#allocation2 + $0x78] sm:$0xf] %vm1187, %v1152
        %1219 = vst.msk [vmem:[#allocation2 + $0x7c] sm:$0xf] %vm1187, %v1154
        %s1220 = sadd.s32 %s243, 1
        %s1221 = smul.u32 %s1220, 3
        %s1222 = smul.addr %s1221, 4
        %s1223 = scalar_lea.vmem %s220, %s1222
        %v1224 = vld [vmem:[%s1223] sm:$0xf]
        %v1225 = vld [vmem:[%s1223 + $0x4] sm:$0xf]
        %v1226 = vld [vmem:[%s1223 + $0xc] sm:$0xf]
        %v1227 = vld [vmem:[%s1223 + $0x10] sm:$0xf]
        %v1228 = vld [vmem:[%s1223 + $0x18] sm:$0xf]
        %v1229 = vld [vmem:[%s1223 + $0x1c] sm:$0xf]
        %v1230 = vld [vmem:[%s1223 + $0x24] sm:$0xf]
        %v1231 = vld [vmem:[%s1223 + $0x28] sm:$0xf]
        %v1232 = vld [vmem:[%s1223 + $0x30] sm:$0xf]
        %v1233 = vld [vmem:[%s1223 + $0x34] sm:$0xf]
        %v1234 = vld [vmem:[%s1223 + $0x3c] sm:$0xf]
        %v1235 = vld [vmem:[%s1223 + $0x40] sm:$0xf]
        %v1236 = vld [vmem:[%s1223 + $0x48] sm:$0xf]
        %v1237 = vld [vmem:[%s1223 + $0x4c] sm:$0xf]
        %v1238 = vld [vmem:[%s1223 + $0x54] sm:$0xf]
        %v1239 = vld [vmem:[%s1223 + $0x58] sm:$0xf]
        %v1240 = vld [vmem:[%s1223 + $0x60] sm:$0xf]
        %v1241 = vld [vmem:[%s1223 + $0x64] sm:$0xf]
        %v1242 = vld [vmem:[%s1223 + $0x6c] sm:$0xf]
        %v1243 = vld [vmem:[%s1223 + $0x70] sm:$0xf]
        %v1244 = vld [vmem:[%s1223 + $0x78] sm:$0xf]
        %v1245 = vld [vmem:[%s1223 + $0x7c] sm:$0xf]
        %v1246 = vld [vmem:[%s1223 + $0x84] sm:$0xf]
        %v1247 = vld [vmem:[%s1223 + $0x88] sm:$0xf]
        %v1248 = vld [vmem:[%s1223 + $0x90] sm:$0xf]
        %v1249 = vld [vmem:[%s1223 + $0x94] sm:$0xf]
        %v1250 = vld [vmem:[%s1223 + $0x9c] sm:$0xf]
        %v1251 = vld [vmem:[%s1223 + $0xa0] sm:$0xf]
        %v1252 = vld [vmem:[%s1223 + $0xa8] sm:$0xf]
        %v1253 = vld [vmem:[%s1223 + $0xac] sm:$0xf]
        %v1254 = vld [vmem:[%s1223 + $0xb4] sm:$0xf]
        %v1255 = vld [vmem:[%s1223 + $0xb8] sm:$0xf]
        %1288 = vrot.lane.b32.xlu0 %v1224, 12
        %v1289 = vpop.permute.xlu0 %1288
        %1290 = vrot.lane.b32.xlu0 %v1225, 12
        %v1291 = vpop.permute.xlu0 %1290
        %1292 = vrot.lane.b32.xlu0 %v1226, 12
        %v1293 = vpop.permute.xlu0 %1292
        %1294 = vrot.lane.b32.xlu0 %v1227, 12
        %v1295 = vpop.permute.xlu0 %1294
        %1296 = vrot.lane.b32.xlu0 %v1228, 12
        %v1297 = vpop.permute.xlu0 %1296
        %1298 = vrot.lane.b32.xlu0 %v1229, 12
        %v1299 = vpop.permute.xlu0 %1298
        %1300 = vrot.lane.b32.xlu0 %v1230, 12
        %v1301 = vpop.permute.xlu0 %1300
        %1302 = vrot.lane.b32.xlu0 %v1231, 12
        %v1303 = vpop.permute.xlu0 %1302
        %1304 = vrot.lane.b32.xlu0 %v1232, 12
        %v1305 = vpop.permute.xlu0 %1304
        %1306 = vrot.lane.b32.xlu0 %v1233, 12
        %v1307 = vpop.permute.xlu0 %1306
        %1308 = vrot.lane.b32.xlu0 %v1234, 12
        %v1309 = vpop.permute.xlu0 %1308
        %1310 = vrot.lane.b32.xlu0 %v1235, 12
        %v1311 = vpop.permute.xlu0 %1310
        %1312 = vrot.lane.b32.xlu0 %v1236, 12
        %v1313 = vpop.permute.xlu0 %1312
        %1314 = vrot.lane.b32.xlu0 %v1237, 12
        %v1315 = vpop.permute.xlu0 %1314
        %1316 = vrot.lane.b32.xlu0 %v1238, 12
        %v1317 = vpop.permute.xlu0 %1316
        %1318 = vrot.lane.b32.xlu0 %v1239, 12
        %v1319 = vpop.permute.xlu0 %1318
        %1320 = vrot.lane.b32.xlu0 %v1240, 12
        %v1321 = vpop.permute.xlu0 %1320
        %1322 = vrot.lane.b32.xlu0 %v1241, 12
        %v1323 = vpop.permute.xlu0 %1322
        %1324 = vrot.lane.b32.xlu0 %v1242, 12
        %v1325 = vpop.permute.xlu0 %1324
        %1326 = vrot.lane.b32.xlu0 %v1243, 12
        %v1327 = vpop.permute.xlu0 %1326
        %1328 = vrot.lane.b32.xlu0 %v1244, 12
        %v1329 = vpop.permute.xlu0 %1328
        %1330 = vrot.lane.b32.xlu0 %v1245, 12
        %v1331 = vpop.permute.xlu0 %1330
        %1332 = vrot.lane.b32.xlu0 %v1246, 12
        %v1333 = vpop.permute.xlu0 %1332
        %1334 = vrot.lane.b32.xlu0 %v1247, 12
        %v1335 = vpop.permute.xlu0 %1334
        %1336 = vrot.lane.b32.xlu0 %v1248, 12
        %v1337 = vpop.permute.xlu0 %1336
        %1338 = vrot.lane.b32.xlu0 %v1249, 12
        %v1339 = vpop.permute.xlu0 %1338
        %1340 = vrot.lane.b32.xlu0 %v1250, 12
        %v1341 = vpop.permute.xlu0 %1340
        %1342 = vrot.lane.b32.xlu0 %v1251, 12
        %v1343 = vpop.permute.xlu0 %1342
        %1344 = vrot.lane.b32.xlu0 %v1252, 12
        %v1345 = vpop.permute.xlu0 %1344
        %1346 = vrot.lane.b32.xlu0 %v1253, 12
        %v1347 = vpop.permute.xlu0 %1346
        %1348 = vrot.lane.b32.xlu0 %v1254, 12
        %v1349 = vpop.permute.xlu0 %1348
        %1350 = vrot.lane.b32.xlu0 %v1255, 12
        %v1351 = vpop.permute.xlu0 %1350
        %vm1384 = vcmask 126048
        %1385 = vst.msk [vmem:[#allocation2] sm:$0xf] %vm1384, %v1289
        %1386 = vst.msk [vmem:[#allocation2 + $0x4] sm:$0xf] %vm1384, %v1291
        %1387 = vst.msk [vmem:[#allocation2 + $0x8] sm:$0xf] %vm1384, %v1293
        %1388 = vst.msk [vmem:[#allocation2 + $0xc] sm:$0xf] %vm1384, %v1295
        %1389 = vst.msk [vmem:[#allocation2 + $0x10] sm:$0xf] %vm1384, %v1297
        %1390 = vst.msk [vmem:[#allocation2 + $0x14] sm:$0xf] %vm1384, %v1299
        %1391 = vst.msk [vmem:[#allocation2 + $0x18] sm:$0xf] %vm1384, %v1301
        %1392 = vst.msk [vmem:[#allocation2 + $0x1c] sm:$0xf] %vm1384, %v1303
        %1393 = vst.msk [vmem:[#allocation2 + $0x20] sm:$0xf] %vm1384, %v1305
        %1394 = vst.msk [vmem:[#allocation2 + $0x24] sm:$0xf] %vm1384, %v1307
        %1395 = vst.msk [vmem:[#allocation2 + $0x28] sm:$0xf] %vm1384, %v1309
        %1396 = vst.msk [vmem:[#allocation2 + $0x2c] sm:$0xf] %vm1384, %v1311
        %1397 = vst.msk [vmem:[#allocation2 + $0x30] sm:$0xf] %vm1384, %v1313
        %1398 = vst.msk [vmem:[#allocation2 + $0x34] sm:$0xf] %vm1384, %v1315
        %1399 = vst.msk [vmem:[#allocation2 + $0x38] sm:$0xf] %vm1384, %v1317
        %1400 = vst.msk [vmem:[#allocation2 + $0x3c] sm:$0xf] %vm1384, %v1319
        %1401 = vst.msk [vmem:[#allocation2 + $0x40] sm:$0xf] %vm1384, %v1321
        %1402 = vst.msk [vmem:[#allocation2 + $0x44] sm:$0xf] %vm1384, %v1323
        %1403 = vst.msk [vmem:[#allocation2 + $0x48] sm:$0xf] %vm1384, %v1325
        %1404 = vst.msk [vmem:[#allocation2 + $0x4c] sm:$0xf] %vm1384, %v1327
        %1405 = vst.msk [vmem:[#allocation2 + $0x50] sm:$0xf] %vm1384, %v1329
        %1406 = vst.msk [vmem:[#allocation2 + $0x54] sm:$0xf] %vm1384, %v1331
        %1407 = vst.msk [vmem:[#allocation2 + $0x58] sm:$0xf] %vm1384, %v1333
        %1408 = vst.msk [vmem:[#allocation2 + $0x5c] sm:$0xf] %vm1384, %v1335
        %1409 = vst.msk [vmem:[#allocation2 + $0x60] sm:$0xf] %vm1384, %v1337
        %1410 = vst.msk [vmem:[#allocation2 + $0x64] sm:$0xf] %vm1384, %v1339
        %1411 = vst.msk [vmem:[#allocation2 + $0x68] sm:$0xf] %vm1384, %v1341
        %1412 = vst.msk [vmem:[#allocation2 + $0x6c] sm:$0xf] %vm1384, %v1343
        %1413 = vst.msk [vmem:[#allocation2 + $0x70] sm:$0xf] %vm1384, %v1345
        %1414 = vst.msk [vmem:[#allocation2 + $0x74] sm:$0xf] %vm1384, %v1347
        %1415 = vst.msk [vmem:[#allocation2 + $0x78] sm:$0xf] %vm1384, %v1349
        %1416 = vst.msk [vmem:[#allocation2 + $0x7c] sm:$0xf] %vm1384, %v1351
        %v1417 = vld [vmem:[%s1223] sm:$0xf]
        %v1418 = vld [vmem:[%s1223 + $0x4] sm:$0xf]
        %v1419 = vld [vmem:[%s1223 + $0x8] sm:$0x1]
        %v1420 = vld [vmem:[%s1223 + $0xc] sm:$0xf]
        %v1421 = vld [vmem:[%s1223 + $0x10] sm:$0xf]
        %v1422 = vld [vmem:[%s1223 + $0x14] sm:$0x1]
        %v1423 = vld [vmem:[%s1223 + $0x18] sm:$0xf]
        %v1424 = vld [vmem:[%s1223 + $0x1c] sm:$0xf]
        %v1425 = vld [vmem:[%s1223 + $0x20] sm:$0x1]
        %v1426 = vld [vmem:[%s1223 + $0x24] sm:$0xf]
        %v1427 = vld [vmem:[%s1223 + $0x28] sm:$0xf]
        %v1428 = vld [vmem:[%s1223 + $0x2c] sm:$0x1]
        %v1429 = vld [vmem:[%s1223 + $0x30] sm:$0xf]
        %v1430 = vld [vmem:[%s1223 + $0x34] sm:$0xf]
        %v1431 = vld [vmem:[%s1223 + $0x38] sm:$0x1]
        %v1432 = vld [vmem:[%s1223 + $0x3c] sm:$0xf]
        %v1433 = vld [vmem:[%s1223 + $0x40] sm:$0xf]
        %v1434 = vld [vmem:[%s1223 + $0x44] sm:$0x1]
        %v1435 = vld [vmem:[%s1223 + $0x48] sm:$0xf]
        %v1436 = vld [vmem:[%s1223 + $0x4c] sm:$0xf]
        %v1437 = vld [vmem:[%s1223 + $0x50] sm:$0x1]
        %v1438 = vld [vmem:[%s1223 + $0x54] sm:$0xf]
        %v1439 = vld [vmem:[%s1223 + $0x58] sm:$0xf]
        %v1440 = vld [vmem:[%s1223 + $0x5c] sm:$0x1]
        %v1441 = vld [vmem:[%s1223 + $0x60] sm:$0xf]
        %v1442 = vld [vmem:[%s1223 + $0x64] sm:$0xf]
        %v1443 = vld [vmem:[%s1223 + $0x68] sm:$0x1]
        %v1444 = vld [vmem:[%s1223 + $0x6c] sm:$0xf]
        %v1445 = vld [vmem:[%s1223 + $0x70] sm:$0xf]
        %v1446 = vld [vmem:[%s1223 + $0x74] sm:$0x1]
        %v1447 = vld [vmem:[%s1223 + $0x78] sm:$0xf]
        %v1448 = vld [vmem:[%s1223 + $0x7c] sm:$0xf]
        %v1449 = vld [vmem:[%s1223 + $0x80] sm:$0x1]
        %v1450 = vld [vmem:[%s1223 + $0x84] sm:$0xf]
        %v1451 = vld [vmem:[%s1223 + $0x88] sm:$0xf]
        %v1452 = vld [vmem:[%s1223 + $0x8c] sm:$0x1]
        %v1453 = vld [vmem:[%s1223 + $0x90] sm:$0xf]
        %v1454 = vld [vmem:[%s1223 + $0x94] sm:$0xf]
        %v1455 = vld [vmem:[%s1223 + $0x98] sm:$0x1]
        %v1456 = vld [vmem:[%s1223 + $0x9c] sm:$0xf]
        %v1457 = vld [vmem:[%s1223 + $0xa0] sm:$0xf]
        %v1458 = vld [vmem:[%s1223 + $0xa4] sm:$0x1]
        %v1459 = vld [vmem:[%s1223 + $0xa8] sm:$0xf]
        %v1460 = vld [vmem:[%s1223 + $0xac] sm:$0xf]
        %v1461 = vld [vmem:[%s1223 + $0xb0] sm:$0x1]
        %v1462 = vld [vmem:[%s1223 + $0xb4] sm:$0xf]
        %v1463 = vld [vmem:[%s1223 + $0xb8] sm:$0xf]
        %v1464 = vld [vmem:[%s1223 + $0xbc] sm:$0x1]
        %v1466 = vshrl.u32 %v1417, 16
        %v1468 = vrot.slane %v1466, 4
        %v1469 = vshll.u32 %v1417, 16
        %v1471 = vrot.slane %v1469, 5
        %v1472 = vor.u32 %v1468, %v1471
        %v1473 = vrot.slane %v1472, 4
        %v1475 = vshll.u32 %v1418, 16
        %v1477 = vrot.slane %v1475, 5
        %v1478 = vsel %vm366, %v1473, %v1477
        %v1479 = vshrl.u32 %v1418, 16
        %v1481 = vrot.slane %v1479, 4
        %v1482 = vor.u32 %v1481, %v1477
        %v1483 = vrot.slane %v1482, 4
        %v1485 = vshll.u32 %v1419, 16
        %v1487 = vrot.slane %v1485, 5
        %v1488 = vsel %vm366, %v1483, %v1487
        %v1490 = vshrl.u32 %v1420, 16
        %v1492 = vrot.slane %v1490, 4
        %v1493 = vshll.u32 %v1420, 16
        %v1495 = vrot.slane %v1493, 5
        %v1496 = vor.u32 %v1492, %v1495
        %v1497 = vrot.slane %v1496, 4
        %v1499 = vshll.u32 %v1421, 16
        %v1501 = vrot.slane %v1499, 5
        %v1502 = vsel %vm366, %v1497, %v1501
        %v1503 = vshrl.u32 %v1421, 16
        %v1505 = vrot.slane %v1503, 4
        %v1506 = vor.u32 %v1505, %v1501
        %v1507 = vrot.slane %v1506, 4
        %v1509 = vshll.u32 %v1422, 16
        %v1511 = vrot.slane %v1509, 5
        %v1512 = vsel %vm366, %v1507, %v1511
        %v1514 = vshrl.u32 %v1423, 16
        %v1516 = vrot.slane %v1514, 4
        %v1517 = vshll.u32 %v1423, 16
        %v1519 = vrot.slane %v1517, 5
        %v1520 = vor.u32 %v1516, %v1519
        %v1521 = vrot.slane %v1520, 4
        %v1523 = vshll.u32 %v1424, 16
        %v1525 = vrot.slane %v1523, 5
        %v1526 = vsel %vm366, %v1521, %v1525
        %v1527 = vshrl.u32 %v1424, 16
        %v1529 = vrot.slane %v1527, 4
        %v1530 = vor.u32 %v1529, %v1525
        %v1531 = vrot.slane %v1530, 4
        %v1533 = vshll.u32 %v1425, 16
        %v1535 = vrot.slane %v1533, 5
        %v1536 = vsel %vm366, %v1531, %v1535
        %v1538 = vshrl.u32 %v1426, 16
        %v1540 = vrot.slane %v1538, 4
        %v1541 = vshll.u32 %v1426, 16
        %v1543 = vrot.slane %v1541, 5
        %v1544 = vor.u32 %v1540, %v1543
        %v1545 = vrot.slane %v1544, 4
        %v1547 = vshll.u32 %v1427, 16
        %v1549 = vrot.slane %v1547, 5
        %v1550 = vsel %vm366, %v1545, %v1549
        %v1551 = vshrl.u32 %v1427, 16
        %v1553 = vrot.slane %v1551, 4
        %v1554 = vor.u32 %v1553, %v1549
        %v1555 = vrot.slane %v1554, 4
        %v1557 = vshll.u32 %v1428, 16
        %v1559 = vrot.slane %v1557, 5
        %v1560 = vsel %vm366, %v1555, %v1559
        %v1562 = vshrl.u32 %v1429, 16
        %v1564 = vrot.slane %v1562, 4
        %v1565 = vshll.u32 %v1429, 16
        %v1567 = vrot.slane %v1565, 5
        %v1568 = vor.u32 %v1564, %v1567
        %v1569 = vrot.slane %v1568, 4
        %v1571 = vshll.u32 %v1430, 16
        %v1573 = vrot.slane %v1571, 5
        %v1574 = vsel %vm366, %v1569, %v1573
        %v1575 = vshrl.u32 %v1430, 16
        %v1577 = vrot.slane %v1575, 4
        %v1578 = vor.u32 %v1577, %v1573
        %v1579 = vrot.slane %v1578, 4
        %v1581 = vshll.u32 %v1431, 16
        %v1583 = vrot.slane %v1581, 5
        %v1584 = vsel %vm366, %v1579, %v1583
        %v1586 = vshrl.u32 %v1432, 16
        %v1588 = vrot.slane %v1586, 4
        %v1589 = vshll.u32 %v1432, 16
        %v1591 = vrot.slane %v1589, 5
        %v1592 = vor.u32 %v1588, %v1591
        %v1593 = vrot.slane %v1592, 4
        %v1595 = vshll.u32 %v1433, 16
        %v1597 = vrot.slane %v1595, 5
        %v1598 = vsel %vm366, %v1593, %v1597
        %v1599 = vshrl.u32 %v1433, 16
        %v1601 = vrot.slane %v1599, 4
        %v1602 = vor.u32 %v1601, %v1597
        %v1603 = vrot.slane %v1602, 4
        %v1605 = vshll.u32 %v1434, 16
        %v1607 = vrot.slane %v1605, 5
        %v1608 = vsel %vm366, %v1603, %v1607
        %v1610 = vshrl.u32 %v1435, 16
        %v1612 = vrot.slane %v1610, 4
        %v1613 = vshll.u32 %v1435, 16
        %v1615 = vrot.slane %v1613, 5
        %v1616 = vor.u32 %v1612, %v1615
        %v1617 = vrot.slane %v1616, 4
        %v1619 = vshll.u32 %v1436, 16
        %v1621 = vrot.slane %v1619, 5
        %v1622 = vsel %vm366, %v1617, %v1621
        %v1623 = vshrl.u32 %v1436, 16
        %v1625 = vrot.slane %v1623, 4
        %v1626 = vor.u32 %v1625, %v1621
        %v1627 = vrot.slane %v1626, 4
        %v1629 = vshll.u32 %v1437, 16
        %v1631 = vrot.slane %v1629, 5
        %v1632 = vsel %vm366, %v1627, %v1631
        %v1634 = vshrl.u32 %v1438, 16
        %v1636 = vrot.slane %v1634, 4
        %v1637 = vshll.u32 %v1438, 16
        %v1639 = vrot.slane %v1637, 5
        %v1640 = vor.u32 %v1636, %v1639
        %v1641 = vrot.slane %v1640, 4
        %v1643 = vshll.u32 %v1439, 16
        %v1645 = vrot.slane %v1643, 5
        %v1646 = vsel %vm366, %v1641, %v1645
        %v1647 = vshrl.u32 %v1439, 16
        %v1649 = vrot.slane %v1647, 4
        %v1650 = vor.u32 %v1649, %v1645
        %v1651 = vrot.slane %v1650, 4
        %v1653 = vshll.u32 %v1440, 16
        %v1655 = vrot.slane %v1653, 5
        %v1656 = vsel %vm366, %v1651, %v1655
        %v1658 = vshrl.u32 %v1441, 16
        %v1660 = vrot.slane %v1658, 4
        %v1661 = vshll.u32 %v1441, 16
        %v1663 = vrot.slane %v1661, 5
        %v1664 = vor.u32 %v1660, %v1663
        %v1665 = vrot.slane %v1664, 4
        %v1667 = vshll.u32 %v1442, 16
        %v1669 = vrot.slane %v1667, 5
        %v1670 = vsel %vm366, %v1665, %v1669
        %v1671 = vshrl.u32 %v1442, 16
        %v1673 = vrot.slane %v1671, 4
        %v1674 = vor.u32 %v1673, %v1669
        %v1675 = vrot.slane %v1674, 4
        %v1677 = vshll.u32 %v1443, 16
        %v1679 = vrot.slane %v1677, 5
        %v1680 = vsel %vm366, %v1675, %v1679
        %v1682 = vshrl.u32 %v1444, 16
        %v1684 = vrot.slane %v1682, 4
        %v1685 = vshll.u32 %v1444, 16
        %v1687 = vrot.slane %v1685, 5
        %v1688 = vor.u32 %v1684, %v1687
        %v1689 = vrot.slane %v1688, 4
        %v1691 = vshll.u32 %v1445, 16
        %v1693 = vrot.slane %v1691, 5
        %v1694 = vsel %vm366, %v1689, %v1693
        %v1695 = vshrl.u32 %v1445, 16
        %v1697 = vrot.slane %v1695, 4
        %v1698 = vor.u32 %v1697, %v1693
        %v1699 = vrot.slane %v1698, 4
        %v1701 = vshll.u32 %v1446, 16
        %v1703 = vrot.slane %v1701, 5
        %v1704 = vsel %vm366, %v1699, %v1703
        %v1706 = vshrl.u32 %v1447, 16
        %v1708 = vrot.slane %v1706, 4
        %v1709 = vshll.u32 %v1447, 16
        %v1711 = vrot.slane %v1709, 5
        %v1712 = vor.u32 %v1708, %v1711
        %v1713 = vrot.slane %v1712, 4
        %v1715 = vshll.u32 %v1448, 16
        %v1717 = vrot.slane %v1715, 5
        %v1718 = vsel %vm366, %v1713, %v1717
        %v1719 = vshrl.u32 %v1448, 16
        %v1721 = vrot.slane %v1719, 4
        %v1722 = vor.u32 %v1721, %v1717
        %v1723 = vrot.slane %v1722, 4
        %v1725 = vshll.u32 %v1449, 16
        %v1727 = vrot.slane %v1725, 5
        %v1728 = vsel %vm366, %v1723, %v1727
        %v1730 = vshrl.u32 %v1450, 16
        %v1732 = vrot.slane %v1730, 4
        %v1733 = vshll.u32 %v1450, 16
        %v1735 = vrot.slane %v1733, 5
        %v1736 = vor.u32 %v1732, %v1735
        %v1737 = vrot.slane %v1736, 4
        %v1739 = vshll.u32 %v1451, 16
        %v1741 = vrot.slane %v1739, 5
        %v1742 = vsel %vm366, %v1737, %v1741
        %v1743 = vshrl.u32 %v1451, 16
        %v1745 = vrot.slane %v1743, 4
        %v1746 = vor.u32 %v1745, %v1741
        %v1747 = vrot.slane %v1746, 4
        %v1749 = vshll.u32 %v1452, 16
        %v1751 = vrot.slane %v1749, 5
        %v1752 = vsel %vm366, %v1747, %v1751
        %v1754 = vshrl.u32 %v1453, 16
        %v1756 = vrot.slane %v1754, 4
        %v1757 = vshll.u32 %v1453, 16
        %v1759 = vrot.slane %v1757, 5
        %v1760 = vor.u32 %v1756, %v1759
        %v1761 = vrot.slane %v1760, 4
        %v1763 = vshll.u32 %v1454, 16
        %v1765 = vrot.slane %v1763, 5
        %v1766 = vsel %vm366, %v1761, %v1765
        %v1767 = vshrl.u32 %v1454, 16
        %v1769 = vrot.slane %v1767, 4
        %v1770 = vor.u32 %v1769, %v1765
        %v1771 = vrot.slane %v1770, 4
        %v1773 = vshll.u32 %v1455, 16
        %v1775 = vrot.slane %v1773, 5
        %v1776 = vsel %vm366, %v1771, %v1775
        %v1778 = vshrl.u32 %v1456, 16
        %v1780 = vrot.slane %v1778, 4
        %v1781 = vshll.u32 %v1456, 16
        %v1783 = vrot.slane %v1781, 5
        %v1784 = vor.u32 %v1780, %v1783
        %v1785 = vrot.slane %v1784, 4
        %v1787 = vshll.u32 %v1457, 16
        %v1789 = vrot.slane %v1787, 5
        %v1790 = vsel %vm366, %v1785, %v1789
        %v1791 = vshrl.u32 %v1457, 16
        %v1793 = vrot.slane %v1791, 4
        %v1794 = vor.u32 %v1793, %v1789
        %v1795 = vrot.slane %v1794, 4
        %v1797 = vshll.u32 %v1458, 16
        %v1799 = vrot.slane %v1797, 5
        %v1800 = vsel %vm366, %v1795, %v1799
        %v1802 = vshrl.u32 %v1459, 16
        %v1804 = vrot.slane %v1802, 4
        %v1805 = vshll.u32 %v1459, 16
        %v1807 = vrot.slane %v1805, 5
        %v1808 = vor.u32 %v1804, %v1807
        %v1809 = vrot.slane %v1808, 4
        %v1811 = vshll.u32 %v1460, 16
        %v1813 = vrot.slane %v1811, 5
        %v1814 = vsel %vm366, %v1809, %v1813
        %v1815 = vshrl.u32 %v1460, 16
        %v1817 = vrot.slane %v1815, 4
        %v1818 = vor.u32 %v1817, %v1813
        %v1819 = vrot.slane %v1818, 4
        %v1821 = vshll.u32 %v1461, 16
        %v1823 = vrot.slane %v1821, 5
        %v1824 = vsel %vm366, %v1819, %v1823
        %v1826 = vshrl.u32 %v1462, 16
        %v1828 = vrot.slane %v1826, 4
        %v1829 = vshll.u32 %v1462, 16
        %v1831 = vrot.slane %v1829, 5
        %v1832 = vor.u32 %v1828, %v1831
        %v1833 = vrot.slane %v1832, 4
        %v1835 = vshll.u32 %v1463, 16
        %v1837 = vrot.slane %v1835, 5
        %v1838 = vsel %vm366, %v1833, %v1837
        %v1839 = vshrl.u32 %v1463, 16
        %v1841 = vrot.slane %v1839, 4
        %v1842 = vor.u32 %v1841, %v1837
        %v1843 = vrot.slane %v1842, 4
        %v1845 = vshll.u32 %v1464, 16
        %v1847 = vrot.slane %v1845, 5
        %v1848 = vsel %vm366, %v1843, %v1847
        %1849 = vrot.lane.b32.xlu0 %v1478, 16
        %v1850 = vpop.permute.xlu0 %1849
        %1851 = vrot.lane.b32.xlu0 %v1488, 16
        %v1852 = vpop.permute.xlu0 %1851
        %1853 = vrot.lane.b32.xlu0 %v1502, 16
        %v1854 = vpop.permute.xlu0 %1853
        %1855 = vrot.lane.b32.xlu0 %v1512, 16
        %v1856 = vpop.permute.xlu0 %1855
        %1857 = vrot.lane.b32.xlu0 %v1526, 16
        %v1858 = vpop.permute.xlu0 %1857
        %1859 = vrot.lane.b32.xlu0 %v1536, 16
        %v1860 = vpop.permute.xlu0 %1859
        %1861 = vrot.lane.b32.xlu0 %v1550, 16
        %v1862 = vpop.permute.xlu0 %1861
        %1863 = vrot.lane.b32.xlu0 %v1560, 16
        %v1864 = vpop.permute.xlu0 %1863
        %1865 = vrot.lane.b32.xlu0 %v1574, 16
        %v1866 = vpop.permute.xlu0 %1865
        %1867 = vrot.lane.b32.xlu0 %v1584, 16
        %v1868 = vpop.permute.xlu0 %1867
        %1869 = vrot.lane.b32.xlu0 %v1598, 16
        %v1870 = vpop.permute.xlu0 %1869
        %1871 = vrot.lane.b32.xlu0 %v1608, 16
        %v1872 = vpop.permute.xlu0 %1871
        %1873 = vrot.lane.b32.xlu0 %v1622, 16
        %v1874 = vpop.permute.xlu0 %1873
        %1875 = vrot.lane.b32.xlu0 %v1632, 16
        %v1876 = vpop.permute.xlu0 %1875
        %1877 = vrot.lane.b32.xlu0 %v1646, 16
        %v1878 = vpop.permute.xlu0 %1877
        %1879 = vrot.lane.b32.xlu0 %v1656, 16
        %v1880 = vpop.permute.xlu0 %1879
        %1881 = vrot.lane.b32.xlu0 %v1670, 16
        %v1882 = vpop.permute.xlu0 %1881
        %1883 = vrot.lane.b32.xlu0 %v1680, 16
        %v1884 = vpop.permute.xlu0 %1883
        %1885 = vrot.lane.b32.xlu0 %v1694, 16
        %v1886 = vpop.permute.xlu0 %1885
        %1887 = vrot.lane.b32.xlu0 %v1704, 16
        %v1888 = vpop.permute.xlu0 %1887
        %1889 = vrot.lane.b32.xlu0 %v1718, 16
        %v1890 = vpop.permute.xlu0 %1889
        %1891 = vrot.lane.b32.xlu0 %v1728, 16
        %v1892 = vpop.permute.xlu0 %1891
        %1893 = vrot.lane.b32.xlu0 %v1742, 16
        %v1894 = vpop.permute.xlu0 %1893
        %1895 = vrot.lane.b32.xlu0 %v1752, 16
        %v1896 = vpop.permute.xlu0 %1895
        %1897 = vrot.lane.b32.xlu0 %v1766, 16
        %v1898 = vpop.permute.xlu0 %1897
        %1899 = vrot.lane.b32.xlu0 %v1776, 16
        %v1900 = vpop.permute.xlu0 %1899
        %1901 = vrot.lane.b32.xlu0 %v1790, 16
        %v1902 = vpop.permute.xlu0 %1901
        %1903 = vrot.lane.b32.xlu0 %v1800, 16
        %v1904 = vpop.permute.xlu0 %1903
        %1905 = vrot.lane.b32.xlu0 %v1814, 16
        %v1906 = vpop.permute.xlu0 %1905
        %1907 = vrot.lane.b32.xlu0 %v1824, 16
        %v1908 = vpop.permute.xlu0 %1907
        %1909 = vrot.lane.b32.xlu0 %v1838, 16
        %v1910 = vpop.permute.xlu0 %1909
        %1911 = vrot.lane.b32.xlu0 %v1848, 16
        %v1912 = vpop.permute.xlu0 %1911
        %vm1945 = vcmask 158848
        %1946 = vst.msk [vmem:[#allocation2] sm:$0xf] %vm1945, %v1850
        %1947 = vst.msk [vmem:[#allocation2 + $0x4] sm:$0xf] %vm1945, %v1852
        %1948 = vst.msk [vmem:[#allocation2 + $0x8] sm:$0xf] %vm1945, %v1854
        %1949 = vst.msk [vmem:[#allocation2 + $0xc] sm:$0xf] %vm1945, %v1856
        %1950 = vst.msk [vmem:[#allocation2 + $0x10] sm:$0xf] %vm1945, %v1858
        %1951 = vst.msk [vmem:[#allocation2 + $0x14] sm:$0xf] %vm1945, %v1860
        %1952 = vst.msk [vmem:[#allocation2 + $0x18] sm:$0xf] %vm1945, %v1862
        %1953 = vst.msk [vmem:[#allocation2 + $0x1c] sm:$0xf] %vm1945, %v1864
        %1954 = vst.msk [vmem:[#allocation2 + $0x20] sm:$0xf] %vm1945, %v1866
        %1955 = vst.msk [vmem:[#allocation2 + $0x24] sm:$0xf] %vm1945, %v1868
        %1956 = vst.msk [vmem:[#allocation2 + $0x28] sm:$0xf] %vm1945, %v1870
        %1957 = vst.msk [vmem:[#allocation2 + $0x2c] sm:$0xf] %vm1945, %v1872
        %1958 = vst.msk [vmem:[#allocation2 + $0x30] sm:$0xf] %vm1945, %v1874
        %1959 = vst.msk [vmem:[#allocation2 + $0x34] sm:$0xf] %vm1945, %v1876
        %1960 = vst.msk [vmem:[#allocation2 + $0x38] sm:$0xf] %vm1945, %v1878
        %1961 = vst.msk [vmem:[#allocation2 + $0x3c] sm:$0xf] %vm1945, %v1880
        %1962 = vst.msk [vmem:[#allocation2 + $0x40] sm:$0xf] %vm1945, %v1882
        %1963 = vst.msk [vmem:[#allocation2 + $0x44] sm:$0xf] %vm1945, %v1884
        %1964 = vst.msk [vmem:[#allocation2 + $0x48] sm:$0xf] %vm1945, %v1886
        %1965 = vst.msk [vmem:[#allocation2 + $0x4c] sm:$0xf] %vm1945, %v1888
        %1966 = vst.msk [vmem:[#allocation2 + $0x50] sm:$0xf] %vm1945, %v1890
        %1967 = vst.msk [vmem:[#allocation2 + $0x54] sm:$0xf] %vm1945, %v1892
        %1968 = vst.msk [vmem:[#allocation2 + $0x58] sm:$0xf] %vm1945, %v1894
        %1969 = vst.msk [vmem:[#allocation2 + $0x5c] sm:$0xf] %vm1945, %v1896
        %1970 = vst.msk [vmem:[#allocation2 + $0x60] sm:$0xf] %vm1945, %v1898
        %1971 = vst.msk [vmem:[#allocation2 + $0x64] sm:$0xf] %vm1945, %v1900
        %1972 = vst.msk [vmem:[#allocation2 + $0x68] sm:$0xf] %vm1945, %v1902
        %1973 = vst.msk [vmem:[#allocation2 + $0x6c] sm:$0xf] %vm1945, %v1904
        %1974 = vst.msk [vmem:[#allocation2 + $0x70] sm:$0xf] %vm1945, %v1906
        %1975 = vst.msk [vmem:[#allocation2 + $0x74] sm:$0xf] %vm1945, %v1908
        %1976 = vst.msk [vmem:[#allocation2 + $0x78] sm:$0xf] %vm1945, %v1910
        %1977 = vst.msk [vmem:[#allocation2 + $0x7c] sm:$0xf] %vm1945, %v1912
        %v1978 = vld [vmem:[%s1223] sm:$0xe]
        %v1979 = vld [vmem:[%s1223 + $0x4] sm:$0xf]
        %v1980 = vld [vmem:[%s1223 + $0x8] sm:$0x1]
        %v1981 = vld [vmem:[%s1223 + $0xc] sm:$0xe]
        %v1982 = vld [vmem:[%s1223 + $0x10] sm:$0xf]
        %v1983 = vld [vmem:[%s1223 + $0x14] sm:$0x1]
        %v1984 = vld [vmem:[%s1223 + $0x18] sm:$0xe]
        %v1985 = vld [vmem:[%s1223 + $0x1c] sm:$0xf]
        %v1986 = vld [vmem:[%s1223 + $0x20] sm:$0x1]
        %v1987 = vld [vmem:[%s1223 + $0x24] sm:$0xe]
        %v1988 = vld [vmem:[%s1223 + $0x28] sm:$0xf]
        %v1989 = vld [vmem:[%s1223 + $0x2c] sm:$0x1]
        %v1990 = vld [vmem:[%s1223 + $0x30] sm:$0xe]
        %v1991 = vld [vmem:[%s1223 + $0x34] sm:$0xf]
        %v1992 = vld [vmem:[%s1223 + $0x38] sm:$0x1]
        %v1993 = vld [vmem:[%s1223 + $0x3c] sm:$0xe]
        %v1994 = vld [vmem:[%s1223 + $0x40] sm:$0xf]
        %v1995 = vld [vmem:[%s1223 + $0x44] sm:$0x1]
        %v1996 = vld [vmem:[%s1223 + $0x48] sm:$0xe]
        %v1997 = vld [vmem:[%s1223 + $0x4c] sm:$0xf]
        %v1998 = vld [vmem:[%s1223 + $0x50] sm:$0x1]
        %v1999 = vld [vmem:[%s1223 + $0x54] sm:$0xe]
        %v2000 = vld [vmem:[%s1223 + $0x58] sm:$0xf]
        %v2001 = vld [vmem:[%s1223 + $0x5c] sm:$0x1]
        %v2002 = vld [vmem:[%s1223 + $0x60] sm:$0xe]
        %v2003 = vld [vmem:[%s1223 + $0x64] sm:$0xf]
        %v2004 = vld [vmem:[%s1223 + $0x68] sm:$0x1]
        %v2005 = vld [vmem:[%s1223 + $0x6c] sm:$0xe]
        %v2006 = vld [vmem:[%s1223 + $0x70] sm:$0xf]
        %v2007 = vld [vmem:[%s1223 + $0x74] sm:$0x1]
        %v2008 = vld [vmem:[%s1223 + $0x78] sm:$0xe]
        %v2009 = vld [vmem:[%s1223 + $0x7c] sm:$0xf]
        %v2010 = vld [vmem:[%s1223 + $0x80] sm:$0x1]
        %v2011 = vld [vmem:[%s1223 + $0x84] sm:$0xe]
        %v2012 = vld [vmem:[%s1223 + $0x88] sm:$0xf]
        %v2013 = vld [vmem:[%s1223 + $0x8c] sm:$0x1]
        %v2014 = vld [vmem:[%s1223 + $0x90] sm:$0xe]
        %v2015 = vld [vmem:[%s1223 + $0x94] sm:$0xf]
        %v2016 = vld [vmem:[%s1223 + $0x98] sm:$0x1]
        %v2017 = vld [vmem:[%s1223 + $0x9c] sm:$0xe]
        %v2018 = vld [vmem:[%s1223 + $0xa0] sm:$0xf]
        %v2019 = vld [vmem:[%s1223 + $0xa4] sm:$0x1]
        %v2020 = vld [vmem:[%s1223 + $0xa8] sm:$0xe]
        %v2021 = vld [vmem:[%s1223 + $0xac] sm:$0xf]
        %v2022 = vld [vmem:[%s1223 + $0xb0] sm:$0x1]
        %v2023 = vld [vmem:[%s1223 + $0xb4] sm:$0xe]
        %v2024 = vld [vmem:[%s1223 + $0xb8] sm:$0xf]
        %v2025 = vld [vmem:[%s1223 + $0xbc] sm:$0x1]
        %v2074 = vrot.slane %v1978, 5
        %v2075 = vrot.slane %v2074, 4
        %v2076 = vrot.slane %v1979, 5
        %v2077 = vsel %vm978, %v2075, %v2076
        %v2078 = vrot.slane %v2076, 4
        %v2079 = vrot.slane %v1980, 5
        %v2080 = vsel %vm978, %v2078, %v2079
        %v2081 = vrot.slane %v1981, 5
        %v2082 = vrot.slane %v2081, 4
        %v2083 = vrot.slane %v1982, 5
        %v2084 = vsel %vm978, %v2082, %v2083
        %v2085 = vrot.slane %v2083, 4
        %v2086 = vrot.slane %v1983, 5
        %v2087 = vsel %vm978, %v2085, %v2086
        %v2088 = vrot.slane %v1984, 5
        %v2089 = vrot.slane %v2088, 4
        %v2090 = vrot.slane %v1985, 5
        %v2091 = vsel %vm978, %v2089, %v2090
        %v2092 = vrot.slane %v2090, 4
        %v2093 = vrot.slane %v1986, 5
        %v2094 = vsel %vm978, %v2092, %v2093
        %v2095 = vrot.slane %v1987, 5
        %v2096 = vrot.slane %v2095, 4
        %v2097 = vrot.slane %v1988, 5
        %v2098 = vsel %vm978, %v2096, %v2097
        %v2099 = vrot.slane %v2097, 4
        %v2100 = vrot.slane %v1989, 5
        %v2101 = vsel %vm978, %v2099, %v2100
        %v2102 = vrot.slane %v1990, 5
        %v2103 = vrot.slane %v2102, 4
        %v2104 = vrot.slane %v1991, 5
        %v2105 = vsel %vm978, %v2103, %v2104
        %v2106 = vrot.slane %v2104, 4
        %v2107 = vrot.slane %v1992, 5
        %v2108 = vsel %vm978, %v2106, %v2107
        %v2109 = vrot.slane %v1993, 5
        %v2110 = vrot.slane %v2109, 4
        %v2111 = vrot.slane %v1994, 5
        %v2112 = vsel %vm978, %v2110, %v2111
        %v2113 = vrot.slane %v2111, 4
        %v2114 = vrot.slane %v1995, 5
        %v2115 = vsel %vm978, %v2113, %v2114
        %v2116 = vrot.slane %v1996, 5
        %v2117 = vrot.slane %v2116, 4
        %v2118 = vrot.slane %v1997, 5
        %v2119 = vsel %vm978, %v2117, %v2118
        %v2120 = vrot.slane %v2118, 4
        %v2121 = vrot.slane %v1998, 5
        %v2122 = vsel %vm978, %v2120, %v2121
        %v2123 = vrot.slane %v1999, 5
        %v2124 = vrot.slane %v2123, 4
        %v2125 = vrot.slane %v2000, 5
        %v2126 = vsel %vm978, %v2124, %v2125
        %v2127 = vrot.slane %v2125, 4
        %v2128 = vrot.slane %v2001, 5
        %v2129 = vsel %vm978, %v2127, %v2128
        %v2130 = vrot.slane %v2002, 5
        %v2131 = vrot.slane %v2130, 4
        %v2132 = vrot.slane %v2003, 5
        %v2133 = vsel %vm978, %v2131, %v2132
        %v2134 = vrot.slane %v2132, 4
        %v2135 = vrot.slane %v2004, 5
        %v2136 = vsel %vm978, %v2134, %v2135
        %v2137 = vrot.slane %v2005, 5
        %v2138 = vrot.slane %v2137, 4
        %v2139 = vrot.slane %v2006, 5
        %v2140 = vsel %vm978, %v2138, %v2139
        %v2141 = vrot.slane %v2139, 4
        %v2142 = vrot.slane %v2007, 5
        %v2143 = vsel %vm978, %v2141, %v2142
        %v2144 = vrot.slane %v2008, 5
        %v2145 = vrot.slane %v2144, 4
        %v2146 = vrot.slane %v2009, 5
        %v2147 = vsel %vm978, %v2145, %v2146
        %v2148 = vrot.slane %v2146, 4
        %v2149 = vrot.slane %v2010, 5
        %v2150 = vsel %vm978, %v2148, %v2149
        %v2151 = vrot.slane %v2011, 5
        %v2152 = vrot.slane %v2151, 4
        %v2153 = vrot.slane %v2012, 5
        %v2154 = vsel %vm978, %v2152, %v2153
        %v2155 = vrot.slane %v2153, 4
        %v2156 = vrot.slane %v2013, 5
        %v2157 = vsel %vm978, %v2155, %v2156
        %v2158 = vrot.slane %v2014, 5
        %v2159 = vrot.slane %v2158, 4
        %v2160 = vrot.slane %v2015, 5
        %v2161 = vsel %vm978, %v2159, %v2160
        %v2162 = vrot.slane %v2160, 4
        %v2163 = vrot.slane %v2016, 5
        %v2164 = vsel %vm978, %v2162, %v2163
        %v2165 = vrot.slane %v2017, 5
        %v2166 = vrot.slane %v2165, 4
        %v2167 = vrot.slane %v2018, 5
        %v2168 = vsel %vm978, %v2166, %v2167
        %v2169 = vrot.slane %v2167, 4
        %v2170 = vrot.slane %v2019, 5
        %v2171 = vsel %vm978, %v2169, %v2170
        %v2172 = vrot.slane %v2020, 5
        %v2173 = vrot.slane %v2172, 4
        %v2174 = vrot.slane %v2021, 5
        %v2175 = vsel %vm978, %v2173, %v2174
        %v2176 = vrot.slane %v2174, 4
        %v2177 = vrot.slane %v2022, 5
        %v2178 = vsel %vm978, %v2176, %v2177
        %v2179 = vrot.slane %v2023, 5
        %v2180 = vrot.slane %v2179, 4
        %v2181 = vrot.slane %v2024, 5
        %v2182 = vsel %vm978, %v2180, %v2181
        %v2183 = vrot.slane %v2181, 4
        %v2184 = vrot.slane %v2025, 5
        %v2185 = vsel %vm978, %v2183, %v2184
        %2186 = vrot.lane.b32.xlu0 %v2077, 20
        %v2187 = vpop.permute.xlu0 %2186
        %2188 = vrot.lane.b32.xlu0 %v2080, 20
        %v2189 = vpop.permute.xlu0 %2188
        %2190 = vrot.lane.b32.xlu0 %v2084, 20
        %v2191 = vpop.permute.xlu0 %2190
        %2192 = vrot.lane.b32.xlu0 %v2087, 20
        %v2193 = vpop.permute.xlu0 %2192
        %2194 = vrot.lane.b32.xlu0 %v2091, 20
        %v2195 = vpop.permute.xlu0 %2194
        %2196 = vrot.lane.b32.xlu0 %v2094, 20
        %v2197 = vpop.permute.xlu0 %2196
        %2198 = vrot.lane.b32.xlu0 %v2098, 20
        %v2199 = vpop.permute.xlu0 %2198
        %2200 = vrot.lane.b32.xlu0 %v2101, 20
        %v2201 = vpop.permute.xlu0 %2200
        %2202 = vrot.lane.b32.xlu0 %v2105, 20
        %v2203 = vpop.permute.xlu0 %2202
        %2204 = vrot.lane.b32.xlu0 %v2108, 20
        %v2205 = vpop.permute.xlu0 %2204
        %2206 = vrot.lane.b32.xlu0 %v2112, 20
        %v2207 = vpop.permute.xlu0 %2206
        %2208 = vrot.lane.b32.xlu0 %v2115, 20
        %v2209 = vpop.permute.xlu0 %2208
        %2210 = vrot.lane.b32.xlu0 %v2119, 20
        %v2211 = vpop.permute.xlu0 %2210
        %2212 = vrot.lane.b32.xlu0 %v2122, 20
        %v2213 = vpop.permute.xlu0 %2212
        %2214 = vrot.lane.b32.xlu0 %v2126, 20
        %v2215 = vpop.permute.xlu0 %2214
        %2216 = vrot.lane.b32.xlu0 %v2129, 20
        %v2217 = vpop.permute.xlu0 %2216
        %2218 = vrot.lane.b32.xlu0 %v2133, 20
        %v2219 = vpop.permute.xlu0 %2218
        %2220 = vrot.lane.b32.xlu0 %v2136, 20
        %v2221 = vpop.permute.xlu0 %2220
        %2222 = vrot.lane.b32.xlu0 %v2140, 20
        %v2223 = vpop.permute.xlu0 %2222
        %2224 = vrot.lane.b32.xlu0 %v2143, 20
        %v2225 = vpop.permute.xlu0 %2224
        %2226 = vrot.lane.b32.xlu0 %v2147, 20
        %v2227 = vpop.permute.xlu0 %2226
        %2228 = vrot.lane.b32.xlu0 %v2150, 20
        %v2229 = vpop.permute.xlu0 %2228
        %2230 = vrot.lane.b32.xlu0 %v2154, 20
        %v2231 = vpop.permute.xlu0 %2230
        %2232 = vrot.lane.b32.xlu0 %v2157, 20
        %v2233 = vpop.permute.xlu0 %2232
        %2234 = vrot.lane.b32.xlu0 %v2161, 20
        %v2235 = vpop.permute.xlu0 %2234
        %2236 = vrot.lane.b32.xlu0 %v2164, 20
        %v2237 = vpop.permute.xlu0 %2236
        %2238 = vrot.lane.b32.xlu0 %v2168, 20
        %v2239 = vpop.permute.xlu0 %2238
        %2240 = vrot.lane.b32.xlu0 %v2171, 20
        %v2241 = vpop.permute.xlu0 %2240
        %2242 = vrot.lane.b32.xlu0 %v2175, 20
        %v2243 = vpop.permute.xlu0 %2242
        %2244 = vrot.lane.b32.xlu0 %v2178, 20
        %v2245 = vpop.permute.xlu0 %2244
        %2246 = vrot.lane.b32.xlu0 %v2182, 20
        %v2247 = vpop.permute.xlu0 %2246
        %2248 = vrot.lane.b32.xlu0 %v2185, 20
        %v2249 = vpop.permute.xlu0 %2248
        %vm2282 = vcmask 191648
        %2283 = vst.msk [vmem:[#allocation2] sm:$0xf] %vm2282, %v2187
        %2284 = vst.msk [vmem:[#allocation2 + $0x4] sm:$0xf] %vm2282, %v2189
        %2285 = vst.msk [vmem:[#allocation2 + $0x8] sm:$0xf] %vm2282, %v2191
        %2286 = vst.msk [vmem:[#allocation2 + $0xc] sm:$0xf] %vm2282, %v2193
        %2287 = vst.msk [vmem:[#allocation2 + $0x10] sm:$0xf] %vm2282, %v2195
        %2288 = vst.msk [vmem:[#allocation2 + $0x14] sm:$0xf] %vm2282, %v2197
        %2289 = vst.msk [vmem:[#allocation2 + $0x18] sm:$0xf] %vm2282, %v2199
        %2290 = vst.msk [vmem:[#allocation2 + $0x1c] sm:$0xf] %vm2282, %v2201
        %2291 = vst.msk [vmem:[#allocation2 + $0x20] sm:$0xf] %vm2282, %v2203
        %2292 = vst.msk [vmem:[#allocation2 + $0x24] sm:$0xf] %vm2282, %v2205
        %2293 = vst.msk [vmem:[#allocation2 + $0x28] sm:$0xf] %vm2282, %v2207
        %2294 = vst.msk [vmem:[#allocation2 + $0x2c] sm:$0xf] %vm2282, %v2209
        %2295 = vst.msk [vmem:[#allocation2 + $0x30] sm:$0xf] %vm2282, %v2211
        %2296 = vst.msk [vmem:[#allocation2 + $0x34] sm:$0xf] %vm2282, %v2213
        %2297 = vst.msk [vmem:[#allocation2 + $0x38] sm:$0xf] %vm2282, %v2215
        %2298 = vst.msk [vmem:[#allocation2 + $0x3c] sm:$0xf] %vm2282, %v2217
        %2299 = vst.msk [vmem:[#allocation2 + $0x40] sm:$0xf] %vm2282, %v2219
        %2300 = vst.msk [vmem:[#allocation2 + $0x44] sm:$0xf] %vm2282, %v2221
        %2301 = vst.msk [vmem:[#allocation2 + $0x48] sm:$0xf] %vm2282, %v2223
        %2302 = vst.msk [vmem:[#allocation2 + $0x4c] sm:$0xf] %vm2282, %v2225
        %2303 = vst.msk [vmem:[#allocation2 + $0x50] sm:$0xf] %vm2282, %v2227
        %2304 = vst.msk [vmem:[#allocation2 + $0x54] sm:$0xf] %vm2282, %v2229
        %2305 = vst.msk [vmem:[#allocation2 + $0x58] sm:$0xf] %vm2282, %v2231
        %2306 = vst.msk [vmem:[#allocation2 + $0x5c] sm:$0xf] %vm2282, %v2233
        %2307 = vst.msk [vmem:[#allocation2 + $0x60] sm:$0xf] %vm2282, %v2235
        %2308 = vst.msk [vmem:[#allocation2 + $0x64] sm:$0xf] %vm2282, %v2237
        %2309 = vst.msk [vmem:[#allocation2 + $0x68] sm:$0xf] %vm2282, %v2239
        %2310 = vst.msk [vmem:[#allocation2 + $0x6c] sm:$0xf] %vm2282, %v2241
        %2311 = vst.msk [vmem:[#allocation2 + $0x70] sm:$0xf] %vm2282, %v2243
        %2312 = vst.msk [vmem:[#allocation2 + $0x74] sm:$0xf] %vm2282, %v2245
        %2313 = vst.msk [vmem:[#allocation2 + $0x78] sm:$0xf] %vm2282, %v2247
        %2314 = vst.msk [vmem:[#allocation2 + $0x7c] sm:$0xf] %vm2282, %v2249
        %s2315 = sadd.s32 %s243, 2
        %s2316 = smul.u32 %s2315, 3
        %s2317 = smul.addr %s2316, 4
        %s2318 = scalar_lea.vmem %s220, %s2317
        %v2319 = vld [vmem:[%s2318] sm:$0xf]
        %v2320 = vld [vmem:[%s2318 + $0x4] sm:$0xf]
        %v2321 = vld [vmem:[%s2318 + $0xc] sm:$0xf]
        %v2322 = vld [vmem:[%s2318 + $0x10] sm:$0xf]
        %v2323 = vld [vmem:[%s2318 + $0x18] sm:$0xf]
        %v2324 = vld [vmem:[%s2318 + $0x1c] sm:$0xf]
        %v2325 = vld [vmem:[%s2318 + $0x24] sm:$0xf]
        %v2326 = vld [vmem:[%s2318 + $0x28] sm:$0xf]
        %v2327 = vld [vmem:[%s2318 + $0x30] sm:$0xf]
        %v2328 = vld [vmem:[%s2318 + $0x34] sm:$0xf]
        %v2329 = vld [vmem:[%s2318 + $0x3c] sm:$0xf]
        %v2330 = vld [vmem:[%s2318 + $0x40] sm:$0xf]
        %v2331 = vld [vmem:[%s2318 + $0x48] sm:$0xf]
        %v2332 = vld [vmem:[%s2318 + $0x4c] sm:$0xf]
        %v2333 = vld [vmem:[%s2318 + $0x54] sm:$0xf]
        %v2334 = vld [vmem:[%s2318 + $0x58] sm:$0xf]
        %v2335 = vld [vmem:[%s2318 + $0x60] sm:$0xf]
        %v2336 = vld [vmem:[%s2318 + $0x64] sm:$0xf]
        %v2337 = vld [vmem:[%s2318 + $0x6c] sm:$0xf]
        %v2338 = vld [vmem:[%s2318 + $0x70] sm:$0xf]
        %v2339 = vld [vmem:[%s2318 + $0x78] sm:$0xf]
        %v2340 = vld [vmem:[%s2318 + $0x7c] sm:$0xf]
        %v2341 = vld [vmem:[%s2318 + $0x84] sm:$0xf]
        %v2342 = vld [vmem:[%s2318 + $0x88] sm:$0xf]
        %v2343 = vld [vmem:[%s2318 + $0x90] sm:$0xf]
        %v2344 = vld [vmem:[%s2318 + $0x94] sm:$0xf]
        %v2345 = vld [vmem:[%s2318 + $0x9c] sm:$0xf]
        %v2346 = vld [vmem:[%s2318 + $0xa0] sm:$0xf]
        %v2347 = vld [vmem:[%s2318 + $0xa8] sm:$0xf]
        %v2348 = vld [vmem:[%s2318 + $0xac] sm:$0xf]
        %v2349 = vld [vmem:[%s2318 + $0xb4] sm:$0xf]
        %v2350 = vld [vmem:[%s2318 + $0xb8] sm:$0xf]
        %2383 = vrot.lane.b32.xlu0 %v2319, 24
        %v2384 = vpop.permute.xlu0 %2383
        %2385 = vrot.lane.b32.xlu0 %v2320, 24
        %v2386 = vpop.permute.xlu0 %2385
        %2387 = vrot.lane.b32.xlu0 %v2321, 24
        %v2388 = vpop.permute.xlu0 %2387
        %2389 = vrot.lane.b32.xlu0 %v2322, 24
        %v2390 = vpop.permute.xlu0 %2389
        %2391 = vrot.lane.b32.xlu0 %v2323, 24
        %v2392 = vpop.permute.xlu0 %2391
        %2393 = vrot.lane.b32.xlu0 %v2324, 24
        %v2394 = vpop.permute.xlu0 %2393
        %2395 = vrot.lane.b32.xlu0 %v2325, 24
        %v2396 = vpop.permute.xlu0 %2395
        %2397 = vrot.lane.b32.xlu0 %v2326, 24
        %v2398 = vpop.permute.xlu0 %2397
        %2399 = vrot.lane.b32.xlu0 %v2327, 24
        %v2400 = vpop.permute.xlu0 %2399
        %2401 = vrot.lane.b32.xlu0 %v2328, 24
        %v2402 = vpop.permute.xlu0 %2401
        %2403 = vrot.lane.b32.xlu0 %v2329, 24
        %v2404 = vpop.permute.xlu0 %2403
        %2405 = vrot.lane.b32.xlu0 %v2330, 24
        %v2406 = vpop.permute.xlu0 %2405
        %2407 = vrot.lane.b32.xlu0 %v2331, 24
        %v2408 = vpop.permute.xlu0 %2407
        %2409 = vrot.lane.b32.xlu0 %v2332, 24
        %v2410 = vpop.permute.xlu0 %2409
        %2411 = vrot.lane.b32.xlu0 %v2333, 24
        %v2412 = vpop.permute.xlu0 %2411
        %2413 = vrot.lane.b32.xlu0 %v2334, 24
        %v2414 = vpop.permute.xlu0 %2413
        %2415 = vrot.lane.b32.xlu0 %v2335, 24
        %v2416 = vpop.permute.xlu0 %2415
        %2417 = vrot.lane.b32.xlu0 %v2336, 24
        %v2418 = vpop.permute.xlu0 %2417
        %2419 = vrot.lane.b32.xlu0 %v2337, 24
        %v2420 = vpop.permute.xlu0 %2419
        %2421 = vrot.lane.b32.xlu0 %v2338, 24
        %v2422 = vpop.permute.xlu0 %2421
        %2423 = vrot.lane.b32.xlu0 %v2339, 24
        %v2424 = vpop.permute.xlu0 %2423
        %2425 = vrot.lane.b32.xlu0 %v2340, 24
        %v2426 = vpop.permute.xlu0 %2425
        %2427 = vrot.lane.b32.xlu0 %v2341, 24
        %v2428 = vpop.permute.xlu0 %2427
        %2429 = vrot.lane.b32.xlu0 %v2342, 24
        %v2430 = vpop.permute.xlu0 %2429
        %2431 = vrot.lane.b32.xlu0 %v2343, 24
        %v2432 = vpop.permute.xlu0 %2431
        %2433 = vrot.lane.b32.xlu0 %v2344, 24
        %v2434 = vpop.permute.xlu0 %2433
        %2435 = vrot.lane.b32.xlu0 %v2345, 24
        %v2436 = vpop.permute.xlu0 %2435
        %2437 = vrot.lane.b32.xlu0 %v2346, 24
        %v2438 = vpop.permute.xlu0 %2437
        %2439 = vrot.lane.b32.xlu0 %v2347, 24
        %v2440 = vpop.permute.xlu0 %2439
        %2441 = vrot.lane.b32.xlu0 %v2348, 24
        %v2442 = vpop.permute.xlu0 %2441
        %2443 = vrot.lane.b32.xlu0 %v2349, 24
        %v2444 = vpop.permute.xlu0 %2443
        %2445 = vrot.lane.b32.xlu0 %v2350, 24
        %v2446 = vpop.permute.xlu0 %2445
        %vm2479 = vcmask 224448
        %2480 = vst.msk [vmem:[#allocation2] sm:$0xf] %vm2479, %v2384
        %2481 = vst.msk [vmem:[#allocation2 + $0x4] sm:$0xf] %vm2479, %v2386
        %2482 = vst.msk [vmem:[#allocation2 + $0x8] sm:$0xf] %vm2479, %v2388
        %2483 = vst.msk [vmem:[#allocation2 + $0xc] sm:$0xf] %vm2479, %v2390
        %2484 = vst.msk [vmem:[#allocation2 + $0x10] sm:$0xf] %vm2479, %v2392
        %2485 = vst.msk [vmem:[#allocation2 + $0x14] sm:$0xf] %vm2479, %v2394
        %2486 = vst.msk [vmem:[#allocation2 + $0x18] sm:$0xf] %vm2479, %v2396
        %2487 = vst.msk [vmem:[#allocation2 + $0x1c] sm:$0xf] %vm2479, %v2398
        %2488 = vst.msk [vmem:[#allocation2 + $0x20] sm:$0xf] %vm2479, %v2400
        %2489 = vst.msk [vmem:[#allocation2 + $0x24] sm:$0xf] %vm2479, %v2402
        %2490 = vst.msk [vmem:[#allocation2 + $0x28] sm:$0xf] %vm2479, %v2404
        %2491 = vst.msk [vmem:[#allocation2 + $0x2c] sm:$0xf] %vm2479, %v2406
        %2492 = vst.msk [vmem:[#allocation2 + $0x30] sm:$0xf] %vm2479, %v2408
        %2493 = vst.msk [vmem:[#allocation2 + $0x34] sm:$0xf] %vm2479, %v2410
        %2494 = vst.msk [vmem:[#allocation2 + $0x38] sm:$0xf] %vm2479, %v2412
        %2495 = vst.msk [vmem:[#allocation2 + $0x3c] sm:$0xf] %vm2479, %v2414
        %2496 = vst.msk [vmem:[#allocation2 + $0x40] sm:$0xf] %vm2479, %v2416
        %2497 = vst.msk [vmem:[#allocation2 + $0x44] sm:$0xf] %vm2479, %v2418
        %2498 = vst.msk [vmem:[#allocation2 + $0x48] sm:$0xf] %vm2479, %v2420
        %2499 = vst.msk [vmem:[#allocation2 + $0x4c] sm:$0xf] %vm2479, %v2422
        %2500 = vst.msk [vmem:[#allocation2 + $0x50] sm:$0xf] %vm2479, %v2424
        %2501 = vst.msk [vmem:[#allocation2 + $0x54] sm:$0xf] %vm2479, %v2426
        %2502 = vst.msk [vmem:[#allocation2 + $0x58] sm:$0xf] %vm2479, %v2428
        %2503 = vst.msk [vmem:[#allocation2 + $0x5c] sm:$0xf] %vm2479, %v2430
        %2504 = vst.msk [vmem:[#allocation2 + $0x60] sm:$0xf] %vm2479, %v2432
        %2505 = vst.msk [vmem:[#allocation2 + $0x64] sm:$0xf] %vm2479, %v2434
        %2506 = vst.msk [vmem:[#allocation2 + $0x68] sm:$0xf] %vm2479, %v2436
        %2507 = vst.msk [vmem:[#allocation2 + $0x6c] sm:$0xf] %vm2479, %v2438
        %2508 = vst.msk [vmem:[#allocation2 + $0x70] sm:$0xf] %vm2479, %v2440
        %2509 = vst.msk [vmem:[#allocation2 + $0x74] sm:$0xf] %vm2479, %v2442
        %2510 = vst.msk [vmem:[#allocation2 + $0x78] sm:$0xf] %vm2479, %v2444
        %2511 = vst.msk [vmem:[#allocation2 + $0x7c] sm:$0xf] %vm2479, %v2446
        %v2512 = vld [vmem:[%s2318] sm:$0xf]
        %v2513 = vld [vmem:[%s2318 + $0x4] sm:$0xf]
        %v2514 = vld [vmem:[%s2318 + $0x8] sm:$0x1]
        %v2515 = vld [vmem:[%s2318 + $0xc] sm:$0xf]
        %v2516 = vld [vmem:[%s2318 + $0x10] sm:$0xf]
        %v2517 = vld [vmem:[%s2318 + $0x14] sm:$0x1]
        %v2518 = vld [vmem:[%s2318 + $0x18] sm:$0xf]
        %v2519 = vld [vmem:[%s2318 + $0x1c] sm:$0xf]
        %v2520 = vld [vmem:[%s2318 + $0x20] sm:$0x1]
        %v2521 = vld [vmem:[%s2318 + $0x24] sm:$0xf]
        %v2522 = vld [vmem:[%s2318 + $0x28] sm:$0xf]
        %v2523 = vld [vmem:[%s2318 + $0x2c] sm:$0x1]
        %v2524 = vld [vmem:[%s2318 + $0x30] sm:$0xf]
        %v2525 = vld [vmem:[%s2318 + $0x34] sm:$0xf]
        %v2526 = vld [vmem:[%s2318 + $0x38] sm:$0x1]
        %v2527 = vld [vmem:[%s2318 + $0x3c] sm:$0xf]
        %v2528 = vld [vmem:[%s2318 + $0x40] sm:$0xf]
        %v2529 = vld [vmem:[%s2318 + $0x44] sm:$0x1]
        %v2530 = vld [vmem:[%s2318 + $0x48] sm:$0xf]
        %v2531 = vld [vmem:[%s2318 + $0x4c] sm:$0xf]
        %v2532 = vld [vmem:[%s2318 + $0x50] sm:$0x1]
        %v2533 = vld [vmem:[%s2318 + $0x54] sm:$0xf]
        %v2534 = vld [vmem:[%s2318 + $0x58] sm:$0xf]
        %v2535 = vld [vmem:[%s2318 + $0x5c] sm:$0x1]
        %v2536 = vld [vmem:[%s2318 + $0x60] sm:$0xf]
        %v2537 = vld [vmem:[%s2318 + $0x64] sm:$0xf]
        %v2538 = vld [vmem:[%s2318 + $0x68] sm:$0x1]
        %v2539 = vld [vmem:[%s2318 + $0x6c] sm:$0xf]
        %v2540 = vld [vmem:[%s2318 + $0x70] sm:$0xf]
        %v2541 = vld [vmem:[%s2318 + $0x74] sm:$0x1]
        %v2542 = vld [vmem:[%s2318 + $0x78] sm:$0xf]
        %v2543 = vld [vmem:[%s2318 + $0x7c] sm:$0xf]
        %v2544 = vld [vmem:[%s2318 + $0x80] sm:$0x1]
        %v2545 = vld [vmem:[%s2318 + $0x84] sm:$0xf]
        %v2546 = vld [vmem:[%s2318 + $0x88] sm:$0xf]
        %v2547 = vld [vmem:[%s2318 + $0x8c] sm:$0x1]
        %v2548 = vld [vmem:[%s2318 + $0x90] sm:$0xf]
        %v2549 = vld [vmem:[%s2318 + $0x94] sm:$0xf]
        %v2550 = vld [vmem:[%s2318 + $0x98] sm:$0x1]
        %v2551 = vld [vmem:[%s2318 + $0x9c] sm:$0xf]
        %v2552 = vld [vmem:[%s2318 + $0xa0] sm:$0xf]
        %v2553 = vld [vmem:[%s2318 + $0xa4] sm:$0x1]
        %v2554 = vld [vmem:[%s2318 + $0xa8] sm:$0xf]
        %v2555 = vld [vmem:[%s2318 + $0xac] sm:$0xf]
        %v2556 = vld [vmem:[%s2318 + $0xb0] sm:$0x1]
        %v2557 = vld [vmem:[%s2318 + $0xb4] sm:$0xf]
        %v2558 = vld [vmem:[%s2318 + $0xb8] sm:$0xf]
        %v2559 = vld [vmem:[%s2318 + $0xbc] sm:$0x1]
        %v2561 = vshrl.u32 %v2512, 16
        %v2563 = vrot.slane %v2561, 4
        %v2564 = vshll.u32 %v2512, 16
        %v2566 = vrot.slane %v2564, 5
        %v2567 = vor.u32 %v2563, %v2566
        %v2568 = vrot.slane %v2567, 4
        %v2570 = vshll.u32 %v2513, 16
        %v2572 = vrot.slane %v2570, 5
        %v2573 = vsel %vm366, %v2568, %v2572
        %v2574 = vshrl.u32 %v2513, 16
        %v2576 = vrot.slane %v2574, 4
        %v2577 = vor.u32 %v2576, %v2572
        %v2578 = vrot.slane %v2577, 4
        %v2580 = vshll.u32 %v2514, 16
        %v2582 = vrot.slane %v2580, 5
        %v2583 = vsel %vm366, %v2578, %v2582
        %v2585 = vshrl.u32 %v2515, 16
        %v2587 = vrot.slane %v2585, 4
        %v2588 = vshll.u32 %v2515, 16
        %v2590 = vrot.slane %v2588, 5
        %v2591 = vor.u32 %v2587, %v2590
        %v2592 = vrot.slane %v2591, 4
        %v2594 = vshll.u32 %v2516, 16
        %v2596 = vrot.slane %v2594, 5
        %v2597 = vsel %vm366, %v2592, %v2596
        %v2598 = vshrl.u32 %v2516, 16
        %v2600 = vrot.slane %v2598, 4
        %v2601 = vor.u32 %v2600, %v2596
        %v2602 = vrot.slane %v2601, 4
        %v2604 = vshll.u32 %v2517, 16
        %v2606 = vrot.slane %v2604, 5
        %v2607 = vsel %vm366, %v2602, %v2606
        %v2609 = vshrl.u32 %v2518, 16
        %v2611 = vrot.slane %v2609, 4
        %v2612 = vshll.u32 %v2518, 16
        %v2614 = vrot.slane %v2612, 5
        %v2615 = vor.u32 %v2611, %v2614
        %v2616 = vrot.slane %v2615, 4
        %v2618 = vshll.u32 %v2519, 16
        %v2620 = vrot.slane %v2618, 5
        %v2621 = vsel %vm366, %v2616, %v2620
        %v2622 = vshrl.u32 %v2519, 16
        %v2624 = vrot.slane %v2622, 4
        %v2625 = vor.u32 %v2624, %v2620
        %v2626 = vrot.slane %v2625, 4
        %v2628 = vshll.u32 %v2520, 16
        %v2630 = vrot.slane %v2628, 5
        %v2631 = vsel %vm366, %v2626, %v2630
        %v2633 = vshrl.u32 %v2521, 16
        %v2635 = vrot.slane %v2633, 4
        %v2636 = vshll.u32 %v2521, 16
        %v2638 = vrot.slane %v2636, 5
        %v2639 = vor.u32 %v2635, %v2638
        %v2640 = vrot.slane %v2639, 4
        %v2642 = vshll.u32 %v2522, 16
        %v2644 = vrot.slane %v2642, 5
        %v2645 = vsel %vm366, %v2640, %v2644
        %v2646 = vshrl.u32 %v2522, 16
        %v2648 = vrot.slane %v2646, 4
        %v2649 = vor.u32 %v2648, %v2644
        %v2650 = vrot.slane %v2649, 4
        %v2652 = vshll.u32 %v2523, 16
        %v2654 = vrot.slane %v2652, 5
        %v2655 = vsel %vm366, %v2650, %v2654
        %v2657 = vshrl.u32 %v2524, 16
        %v2659 = vrot.slane %v2657, 4
        %v2660 = vshll.u32 %v2524, 16
        %v2662 = vrot.slane %v2660, 5
        %v2663 = vor.u32 %v2659, %v2662
        %v2664 = vrot.slane %v2663, 4
        %v2666 = vshll.u32 %v2525, 16
        %v2668 = vrot.slane %v2666, 5
        %v2669 = vsel %vm366, %v2664, %v2668
        %v2670 = vshrl.u32 %v2525, 16
        %v2672 = vrot.slane %v2670, 4
        %v2673 = vor.u32 %v2672, %v2668
        %v2674 = vrot.slane %v2673, 4
        %v2676 = vshll.u32 %v2526, 16
        %v2678 = vrot.slane %v2676, 5
        %v2679 = vsel %vm366, %v2674, %v2678
        %v2681 = vshrl.u32 %v2527, 16
        %v2683 = vrot.slane %v2681, 4
        %v2684 = vshll.u32 %v2527, 16
        %v2686 = vrot.slane %v2684, 5
        %v2687 = vor.u32 %v2683, %v2686
        %v2688 = vrot.slane %v2687, 4
        %v2690 = vshll.u32 %v2528, 16
        %v2692 = vrot.slane %v2690, 5
        %v2693 = vsel %vm366, %v2688, %v2692
        %v2694 = vshrl.u32 %v2528, 16
        %v2696 = vrot.slane %v2694, 4
        %v2697 = vor.u32 %v2696, %v2692
        %v2698 = vrot.slane %v2697, 4
        %v2700 = vshll.u32 %v2529, 16
        %v2702 = vrot.slane %v2700, 5
        %v2703 = vsel %vm366, %v2698, %v2702
        %v2705 = vshrl.u32 %v2530, 16
        %v2707 = vrot.slane %v2705, 4
        %v2708 = vshll.u32 %v2530, 16
        %v2710 = vrot.slane %v2708, 5
        %v2711 = vor.u32 %v2707, %v2710
        %v2712 = vrot.slane %v2711, 4
        %v2714 = vshll.u32 %v2531, 16
        %v2716 = vrot.slane %v2714, 5
        %v2717 = vsel %vm366, %v2712, %v2716
        %v2718 = vshrl.u32 %v2531, 16
        %v2720 = vrot.slane %v2718, 4
        %v2721 = vor.u32 %v2720, %v2716
        %v2722 = vrot.slane %v2721, 4
        %v2724 = vshll.u32 %v2532, 16
        %v2726 = vrot.slane %v2724, 5
        %v2727 = vsel %vm366, %v2722, %v2726
        %v2729 = vshrl.u32 %v2533, 16
        %v2731 = vrot.slane %v2729, 4
        %v2732 = vshll.u32 %v2533, 16
        %v2734 = vrot.slane %v2732, 5
        %v2735 = vor.u32 %v2731, %v2734
        %v2736 = vrot.slane %v2735, 4
        %v2738 = vshll.u32 %v2534, 16
        %v2740 = vrot.slane %v2738, 5
        %v2741 = vsel %vm366, %v2736, %v2740
        %v2742 = vshrl.u32 %v2534, 16
        %v2744 = vrot.slane %v2742, 4
        %v2745 = vor.u32 %v2744, %v2740
        %v2746 = vrot.slane %v2745, 4
        %v2748 = vshll.u32 %v2535, 16
        %v2750 = vrot.slane %v2748, 5
        %v2751 = vsel %vm366, %v2746, %v2750
        %v2753 = vshrl.u32 %v2536, 16
        %v2755 = vrot.slane %v2753, 4
        %v2756 = vshll.u32 %v2536, 16
        %v2758 = vrot.slane %v2756, 5
        %v2759 = vor.u32 %v2755, %v2758
        %v2760 = vrot.slane %v2759, 4
        %v2762 = vshll.u32 %v2537, 16
        %v2764 = vrot.slane %v2762, 5
        %v2765 = vsel %vm366, %v2760, %v2764
        %v2766 = vshrl.u32 %v2537, 16
        %v2768 = vrot.slane %v2766, 4
        %v2769 = vor.u32 %v2768, %v2764
        %v2770 = vrot.slane %v2769, 4
        %v2772 = vshll.u32 %v2538, 16
        %v2774 = vrot.slane %v2772, 5
        %v2775 = vsel %vm366, %v2770, %v2774
        %v2777 = vshrl.u32 %v2539, 16
        %v2779 = vrot.slane %v2777, 4
        %v2780 = vshll.u32 %v2539, 16
        %v2782 = vrot.slane %v2780, 5
        %v2783 = vor.u32 %v2779, %v2782
        %v2784 = vrot.slane %v2783, 4
        %v2786 = vshll.u32 %v2540, 16
        %v2788 = vrot.slane %v2786, 5
        %v2789 = vsel %vm366, %v2784, %v2788
        %v2790 = vshrl.u32 %v2540, 16
        %v2792 = vrot.slane %v2790, 4
        %v2793 = vor.u32 %v2792, %v2788
        %v2794 = vrot.slane %v2793, 4
        %v2796 = vshll.u32 %v2541, 16
        %v2798 = vrot.slane %v2796, 5
        %v2799 = vsel %vm366, %v2794, %v2798
        %v2801 = vshrl.u32 %v2542, 16
        %v2803 = vrot.slane %v2801, 4
        %v2804 = vshll.u32 %v2542, 16
        %v2806 = vrot.slane %v2804, 5
        %v2807 = vor.u32 %v2803, %v2806
        %v2808 = vrot.slane %v2807, 4
        %v2810 = vshll.u32 %v2543, 16
        %v2812 = vrot.slane %v2810, 5
        %v2813 = vsel %vm366, %v2808, %v2812
        %v2814 = vshrl.u32 %v2543, 16
        %v2816 = vrot.slane %v2814, 4
        %v2817 = vor.u32 %v2816, %v2812
        %v2818 = vrot.slane %v2817, 4
        %v2820 = vshll.u32 %v2544, 16
        %v2822 = vrot.slane %v2820, 5
        %v2823 = vsel %vm366, %v2818, %v2822
        %v2825 = vshrl.u32 %v2545, 16
        %v2827 = vrot.slane %v2825, 4
        %v2828 = vshll.u32 %v2545, 16
        %v2830 = vrot.slane %v2828, 5
        %v2831 = vor.u32 %v2827, %v2830
        %v2832 = vrot.slane %v2831, 4
        %v2834 = vshll.u32 %v2546, 16
        %v2836 = vrot.slane %v2834, 5
        %v2837 = vsel %vm366, %v2832, %v2836
        %v2838 = vshrl.u32 %v2546, 16
        %v2840 = vrot.slane %v2838, 4
        %v2841 = vor.u32 %v2840, %v2836
        %v2842 = vrot.slane %v2841, 4
        %v2844 = vshll.u32 %v2547, 16
        %v2846 = vrot.slane %v2844, 5
        %v2847 = vsel %vm366, %v2842, %v2846
        %v2849 = vshrl.u32 %v2548, 16
        %v2851 = vrot.slane %v2849, 4
        %v2852 = vshll.u32 %v2548, 16
        %v2854 = vrot.slane %v2852, 5
        %v2855 = vor.u32 %v2851, %v2854
        %v2856 = vrot.slane %v2855, 4
        %v2858 = vshll.u32 %v2549, 16
        %v2860 = vrot.slane %v2858, 5
        %v2861 = vsel %vm366, %v2856, %v2860
        %v2862 = vshrl.u32 %v2549, 16
        %v2864 = vrot.slane %v2862, 4
        %v2865 = vor.u32 %v2864, %v2860
        %v2866 = vrot.slane %v2865, 4
        %v2868 = vshll.u32 %v2550, 16
        %v2870 = vrot.slane %v2868, 5
        %v2871 = vsel %vm366, %v2866, %v2870
        %v2873 = vshrl.u32 %v2551, 16
        %v2875 = vrot.slane %v2873, 4
        %v2876 = vshll.u32 %v2551, 16
        %v2878 = vrot.slane %v2876, 5
        %v2879 = vor.u32 %v2875, %v2878
        %v2880 = vrot.slane %v2879, 4
        %v2882 = vshll.u32 %v2552, 16
        %v2884 = vrot.slane %v2882, 5
        %v2885 = vsel %vm366, %v2880, %v2884
        %v2886 = vshrl.u32 %v2552, 16
        %v2888 = vrot.slane %v2886, 4
        %v2889 = vor.u32 %v2888, %v2884
        %v2890 = vrot.slane %v2889, 4
        %v2892 = vshll.u32 %v2553, 16
        %v2894 = vrot.slane %v2892, 5
        %v2895 = vsel %vm366, %v2890, %v2894
        %v2897 = vshrl.u32 %v2554, 16
        %v2899 = vrot.slane %v2897, 4
        %v2900 = vshll.u32 %v2554, 16
        %v2902 = vrot.slane %v2900, 5
        %v2903 = vor.u32 %v2899, %v2902
        %v2904 = vrot.slane %v2903, 4
        %v2906 = vshll.u32 %v2555, 16
        %v2908 = vrot.slane %v2906, 5
        %v2909 = vsel %vm366, %v2904, %v2908
        %v2910 = vshrl.u32 %v2555, 16
        %v2912 = vrot.slane %v2910, 4
        %v2913 = vor.u32 %v2912, %v2908
        %v2914 = vrot.slane %v2913, 4
        %v2916 = vshll.u32 %v2556, 16
        %v2918 = vrot.slane %v2916, 5
        %v2919 = vsel %vm366, %v2914, %v2918
        %v2921 = vshrl.u32 %v2557, 16
        %v2923 = vrot.slane %v2921, 4
        %v2924 = vshll.u32 %v2557, 16
        %v2926 = vrot.slane %v2924, 5
        %v2927 = vor.u32 %v2923, %v2926
        %v2928 = vrot.slane %v2927, 4
        %v2930 = vshll.u32 %v2558, 16
        %v2932 = vrot.slane %v2930, 5
        %v2933 = vsel %vm366, %v2928, %v2932
        %v2934 = vshrl.u32 %v2558, 16
        %v2936 = vrot.slane %v2934, 4
        %v2937 = vor.u32 %v2936, %v2932
        %v2938 = vrot.slane %v2937, 4
        %v2940 = vshll.u32 %v2559, 16
        %v2942 = vrot.slane %v2940, 5
        %v2943 = vsel %vm366, %v2938, %v2942
        %2944 = vrot.lane.b32.xlu0 %v2573, 28
        %v2945 = vpop.permute.xlu0 %2944
        %2946 = vrot.lane.b32.xlu0 %v2583, 28
        %v2947 = vpop.permute.xlu0 %2946
        %2948 = vrot.lane.b32.xlu0 %v2597, 28
        %v2949 = vpop.permute.xlu0 %2948
        %2950 = vrot.lane.b32.xlu0 %v2607, 28
        %v2951 = vpop.permute.xlu0 %2950
        %2952 = vrot.lane.b32.xlu0 %v2621, 28
        %v2953 = vpop.permute.xlu0 %2952
        %2954 = vrot.lane.b32.xlu0 %v2631, 28
        %v2955 = vpop.permute.xlu0 %2954
        %2956 = vrot.lane.b32.xlu0 %v2645, 28
        %v2957 = vpop.permute.xlu0 %2956
        %2958 = vrot.lane.b32.xlu0 %v2655, 28
        %v2959 = vpop.permute.xlu0 %2958
        %2960 = vrot.lane.b32.xlu0 %v2669, 28
        %v2961 = vpop.permute.xlu0 %2960
        %2962 = vrot.lane.b32.xlu0 %v2679, 28
        %v2963 = vpop.permute.xlu0 %2962
        %2964 = vrot.lane.b32.xlu0 %v2693, 28
        %v2965 = vpop.permute.xlu0 %2964
        %2966 = vrot.lane.b32.xlu0 %v2703, 28
        %v2967 = vpop.permute.xlu0 %2966
        %2968 = vrot.lane.b32.xlu0 %v2717, 28
        %v2969 = vpop.permute.xlu0 %2968
        %2970 = vrot.lane.b32.xlu0 %v2727, 28
        %v2971 = vpop.permute.xlu0 %2970
        %2972 = vrot.lane.b32.xlu0 %v2741, 28
        %v2973 = vpop.permute.xlu0 %2972
        %2974 = vrot.lane.b32.xlu0 %v2751, 28
        %v2975 = vpop.permute.xlu0 %2974
        %2976 = vrot.lane.b32.xlu0 %v2765, 28
        %v2977 = vpop.permute.xlu0 %2976
        %2978 = vrot.lane.b32.xlu0 %v2775, 28
        %v2979 = vpop.permute.xlu0 %2978
        %2980 = vrot.lane.b32.xlu0 %v2789, 28
        %v2981 = vpop.permute.xlu0 %2980
        %2982 = vrot.lane.b32.xlu0 %v2799, 28
        %v2983 = vpop.permute.xlu0 %2982
        %2984 = vrot.lane.b32.xlu0 %v2813, 28
        %v2985 = vpop.permute.xlu0 %2984
        %2986 = vrot.lane.b32.xlu0 %v2823, 28
        %v2987 = vpop.permute.xlu0 %2986
        %2988 = vrot.lane.b32.xlu0 %v2837, 28
        %v2989 = vpop.permute.xlu0 %2988
        %2990 = vrot.lane.b32.xlu0 %v2847, 28
        %v2991 = vpop.permute.xlu0 %2990
        %2992 = vrot.lane.b32.xlu0 %v2861, 28
        %v2993 = vpop.permute.xlu0 %2992
        %2994 = vrot.lane.b32.xlu0 %v2871, 28
        %v2995 = vpop.permute.xlu0 %2994
        %2996 = vrot.lane.b32.xlu0 %v2885, 28
        %v2997 = vpop.permute.xlu0 %2996
        %2998 = vrot.lane.b32.xlu0 %v2895, 28
        %v2999 = vpop.permute.xlu0 %2998
        %3000 = vrot.lane.b32.xlu0 %v2909, 28
        %v3001 = vpop.permute.xlu0 %3000
        %3002 = vrot.lane.b32.xlu0 %v2919, 28
        %v3003 = vpop.permute.xlu0 %3002
        %3004 = vrot.lane.b32.xlu0 %v2933, 28
        %v3005 = vpop.permute.xlu0 %3004
        %3006 = vrot.lane.b32.xlu0 %v2943, 28
        %v3007 = vpop.permute.xlu0 %3006
        %vm3040 = vcmask 257248
        %3041 = vst.msk [vmem:[#allocation2] sm:$0xf] %vm3040, %v2945
        %3042 = vst.msk [vmem:[#allocation2 + $0x4] sm:$0xf] %vm3040, %v2947
        %3043 = vst.msk [vmem:[#allocation2 + $0x8] sm:$0xf] %vm3040, %v2949
        %3044 = vst.msk [vmem:[#allocation2 + $0xc] sm:$0xf] %vm3040, %v2951
        %3045 = vst.msk [vmem:[#allocation2 + $0x10] sm:$0xf] %vm3040, %v2953
        %3046 = vst.msk [vmem:[#allocation2 + $0x14] sm:$0xf] %vm3040, %v2955
        %3047 = vst.msk [vmem:[#allocation2 + $0x18] sm:$0xf] %vm3040, %v2957
        %3048 = vst.msk [vmem:[#allocation2 + $0x1c] sm:$0xf] %vm3040, %v2959
        %3049 = vst.msk [vmem:[#allocation2 + $0x20] sm:$0xf] %vm3040, %v2961
        %3050 = vst.msk [vmem:[#allocation2 + $0x24] sm:$0xf] %vm3040, %v2963
        %3051 = vst.msk [vmem:[#allocation2 + $0x28] sm:$0xf] %vm3040, %v2965
        %3052 = vst.msk [vmem:[#allocation2 + $0x2c] sm:$0xf] %vm3040, %v2967
        %3053 = vst.msk [vmem:[#allocation2 + $0x30] sm:$0xf] %vm3040, %v2969
        %3054 = vst.msk [vmem:[#allocation2 + $0x34] sm:$0xf] %vm3040, %v2971
        %3055 = vst.msk [vmem:[#allocation2 + $0x38] sm:$0xf] %vm3040, %v2973
        %3056 = vst.msk [vmem:[#allocation2 + $0x3c] sm:$0xf] %vm3040, %v2975
        %3057 = vst.msk [vmem:[#allocation2 + $0x40] sm:$0xf] %vm3040, %v2977
        %3058 = vst.msk [vmem:[#allocation2 + $0x44] sm:$0xf] %vm3040, %v2979
        %3059 = vst.msk [vmem:[#allocation2 + $0x48] sm:$0xf] %vm3040, %v2981
        %3060 = vst.msk [vmem:[#allocation2 + $0x4c] sm:$0xf] %vm3040, %v2983
        %3061 = vst.msk [vmem:[#allocation2 + $0x50] sm:$0xf] %vm3040, %v2985
        %3062 = vst.msk [vmem:[#allocation2 + $0x54] sm:$0xf] %vm3040, %v2987
        %3063 = vst.msk [vmem:[#allocation2 + $0x58] sm:$0xf] %vm3040, %v2989
        %3064 = vst.msk [vmem:[#allocation2 + $0x5c] sm:$0xf] %vm3040, %v2991
        %3065 = vst.msk [vmem:[#allocation2 + $0x60] sm:$0xf] %vm3040, %v2993
        %3066 = vst.msk [vmem:[#allocation2 + $0x64] sm:$0xf] %vm3040, %v2995
        %3067 = vst.msk [vmem:[#allocation2 + $0x68] sm:$0xf] %vm3040, %v2997
        %3068 = vst.msk [vmem:[#allocation2 + $0x6c] sm:$0xf] %vm3040, %v2999
        %3069 = vst.msk [vmem:[#allocation2 + $0x70] sm:$0xf] %vm3040, %v3001
        %3070 = vst.msk [vmem:[#allocation2 + $0x74] sm:$0xf] %vm3040, %v3003
        %3071 = vst.msk [vmem:[#allocation2 + $0x78] sm:$0xf] %vm3040, %v3005
        %3072 = vst.msk [vmem:[#allocation2 + $0x7c] sm:$0xf] %vm3040, %v3007
        %v3073 = vld [vmem:[%s2318] sm:$0xe]
        %v3074 = vld [vmem:[%s2318 + $0x4] sm:$0xf]
        %v3075 = vld [vmem:[%s2318 + $0x8] sm:$0x1]
        %v3076 = vld [vmem:[%s2318 + $0xc] sm:$0xe]
        %v3077 = vld [vmem:[%s2318 + $0x10] sm:$0xf]
        %v3078 = vld [vmem:[%s2318 + $0x14] sm:$0x1]
        %v3079 = vld [vmem:[%s2318 + $0x18] sm:$0xe]
        %v3080 = vld [vmem:[%s2318 + $0x1c] sm:$0xf]
        %v3081 = vld [vmem:[%s2318 + $0x20] sm:$0x1]
        %v3082 = vld [vmem:[%s2318 + $0x24] sm:$0xe]
        %v3083 = vld [vmem:[%s2318 + $0x28] sm:$0xf]
        %v3084 = vld [vmem:[%s2318 + $0x2c] sm:$0x1]
        %v3085 = vld [vmem:[%s2318 + $0x30] sm:$0xe]
        %v3086 = vld [vmem:[%s2318 + $0x34] sm:$0xf]
        %v3087 = vld [vmem:[%s2318 + $0x38] sm:$0x1]
        %v3088 = vld [vmem:[%s2318 + $0x3c] sm:$0xe]
        %v3089 = vld [vmem:[%s2318 + $0x40] sm:$0xf]
        %v3090 = vld [vmem:[%s2318 + $0x44] sm:$0x1]
        %v3091 = vld [vmem:[%s2318 + $0x48] sm:$0xe]
        %v3092 = vld [vmem:[%s2318 + $0x4c] sm:$0xf]
        %v3093 = vld [vmem:[%s2318 + $0x50] sm:$0x1]
        %v3094 = vld [vmem:[%s2318 + $0x54] sm:$0xe]
        %v3095 = vld [vmem:[%s2318 + $0x58] sm:$0xf]
        %v3096 = vld [vmem:[%s2318 + $0x5c] sm:$0x1]
        %v3097 = vld [vmem:[%s2318 + $0x60] sm:$0xe]
        %v3098 = vld [vmem:[%s2318 + $0x64] sm:$0xf]
        %v3099 = vld [vmem:[%s2318 + $0x68] sm:$0x1]
        %v3100 = vld [vmem:[%s2318 + $0x6c] sm:$0xe]
        %v3101 = vld [vmem:[%s2318 + $0x70] sm:$0xf]
        %v3102 = vld [vmem:[%s2318 + $0x74] sm:$0x1]
        %v3103 = vld [vmem:[%s2318 + $0x78] sm:$0xe]
        %v3104 = vld [vmem:[%s2318 + $0x7c] sm:$0xf]
        %v3105 = vld [vmem:[%s2318 + $0x80] sm:$0x1]
        %v3106 = vld [vmem:[%s2318 + $0x84] sm:$0xe]
        %v3107 = vld [vmem:[%s2318 + $0x88] sm:$0xf]
        %v3108 = vld [vmem:[%s2318 + $0x8c] sm:$0x1]
        %v3109 = vld [vmem:[%s2318 + $0x90] sm:$0xe]
        %v3110 = vld [vmem:[%s2318 + $0x94] sm:$0xf]
        %v3111 = vld [vmem:[%s2318 + $0x98] sm:$0x1]
        %v3112 = vld [vmem:[%s2318 + $0x9c] sm:$0xe]
        %v3113 = vld [vmem:[%s2318 + $0xa0] sm:$0xf]
        %v3114 = vld [vmem:[%s2318 + $0xa4] sm:$0x1]
        %v3115 = vld [vmem:[%s2318 + $0xa8] sm:$0xe]
        %v3116 = vld [vmem:[%s2318 + $0xac] sm:$0xf]
        %v3117 = vld [vmem:[%s2318 + $0xb0] sm:$0x1]
        %v3118 = vld [vmem:[%s2318 + $0xb4] sm:$0xe]
        %v3119 = vld [vmem:[%s2318 + $0xb8] sm:$0xf]
        %v3120 = vld [vmem:[%s2318 + $0xbc] sm:$0x1]
        %v3169 = vrot.slane %v3073, 5
        %v3170 = vrot.slane %v3169, 4
        %v3171 = vrot.slane %v3074, 5
        %v3172 = vsel %vm978, %v3170, %v3171
        %v3173 = vrot.slane %v3171, 4
        %v3174 = vrot.slane %v3075, 5
        %v3175 = vsel %vm978, %v3173, %v3174
        %v3176 = vrot.slane %v3076, 5
        %v3177 = vrot.slane %v3176, 4
        %v3178 = vrot.slane %v3077, 5
        %v3179 = vsel %vm978, %v3177, %v3178
        %v3180 = vrot.slane %v3178, 4
        %v3181 = vrot.slane %v3078, 5
        %v3182 = vsel %vm978, %v3180, %v3181
        %v3183 = vrot.slane %v3079, 5
        %v3184 = vrot.slane %v3183, 4
        %v3185 = vrot.slane %v3080, 5
        %v3186 = vsel %vm978, %v3184, %v3185
        %v3187 = vrot.slane %v3185, 4
        %v3188 = vrot.slane %v3081, 5
        %v3189 = vsel %vm978, %v3187, %v3188
        %v3190 = vrot.slane %v3082, 5
        %v3191 = vrot.slane %v3190, 4
        %v3192 = vrot.slane %v3083, 5
        %v3193 = vsel %vm978, %v3191, %v3192
        %v3194 = vrot.slane %v3192, 4
        %v3195 = vrot.slane %v3084, 5
        %v3196 = vsel %vm978, %v3194, %v3195
        %v3197 = vrot.slane %v3085, 5
        %v3198 = vrot.slane %v3197, 4
        %v3199 = vrot.slane %v3086, 5
        %v3200 = vsel %vm978, %v3198, %v3199
        %v3201 = vrot.slane %v3199, 4
        %v3202 = vrot.slane %v3087, 5
        %v3203 = vsel %vm978, %v3201, %v3202
        %v3204 = vrot.slane %v3088, 5
        %v3205 = vrot.slane %v3204, 4
        %v3206 = vrot.slane %v3089, 5
        %v3207 = vsel %vm978, %v3205, %v3206
        %v3208 = vrot.slane %v3206, 4
        %v3209 = vrot.slane %v3090, 5
        %v3210 = vsel %vm978, %v3208, %v3209
        %v3211 = vrot.slane %v3091, 5
        %v3212 = vrot.slane %v3211, 4
        %v3213 = vrot.slane %v3092, 5
        %v3214 = vsel %vm978, %v3212, %v3213
        %v3215 = vrot.slane %v3213, 4
        %v3216 = vrot.slane %v3093, 5
        %v3217 = vsel %vm978, %v3215, %v3216
        %v3218 = vrot.slane %v3094, 5
        %v3219 = vrot.slane %v3218, 4
        %v3220 = vrot.slane %v3095, 5
        %v3221 = vsel %vm978, %v3219, %v3220
        %v3222 = vrot.slane %v3220, 4
        %v3223 = vrot.slane %v3096, 5
        %v3224 = vsel %vm978, %v3222, %v3223
        %v3225 = vrot.slane %v3097, 5
        %v3226 = vrot.slane %v3225, 4
        %v3227 = vrot.slane %v3098, 5
        %v3228 = vsel %vm978, %v3226, %v3227
        %v3229 = vrot.slane %v3227, 4
        %v3230 = vrot.slane %v3099, 5
        %v3231 = vsel %vm978, %v3229, %v3230
        %v3232 = vrot.slane %v3100, 5
        %v3233 = vrot.slane %v3232, 4
        %v3234 = vrot.slane %v3101, 5
        %v3235 = vsel %vm978, %v3233, %v3234
        %v3236 = vrot.slane %v3234, 4
        %v3237 = vrot.slane %v3102, 5
        %v3238 = vsel %vm978, %v3236, %v3237
        %v3239 = vrot.slane %v3103, 5
        %v3240 = vrot.slane %v3239, 4
        %v3241 = vrot.slane %v3104, 5
        %v3242 = vsel %vm978, %v3240, %v3241
        %v3243 = vrot.slane %v3241, 4
        %v3244 = vrot.slane %v3105, 5
        %v3245 = vsel %vm978, %v3243, %v3244
        %v3246 = vrot.slane %v3106, 5
        %v3247 = vrot.slane %v3246, 4
        %v3248 = vrot.slane %v3107, 5
        %v3249 = vsel %vm978, %v3247, %v3248
        %v3250 = vrot.slane %v3248, 4
        %v3251 = vrot.slane %v3108, 5
        %v3252 = vsel %vm978, %v3250, %v3251
        %v3253 = vrot.slane %v3109, 5
        %v3254 = vrot.slane %v3253, 4
        %v3255 = vrot.slane %v3110, 5
        %v3256 = vsel %vm978, %v3254, %v3255
        %v3257 = vrot.slane %v3255, 4
        %v3258 = vrot.slane %v3111, 5
        %v3259 = vsel %vm978, %v3257, %v3258
        %v3260 = vrot.slane %v3112, 5
        %v3261 = vrot.slane %v3260, 4
        %v3262 = vrot.slane %v3113, 5
        %v3263 = vsel %vm978, %v3261, %v3262
        %v3264 = vrot.slane %v3262, 4
        %v3265 = vrot.slane %v3114, 5
        %v3266 = vsel %vm978, %v3264, %v3265
        %v3267 = vrot.slane %v3115, 5
        %v3268 = vrot.slane %v3267, 4
        %v3269 = vrot.slane %v3116, 5
        %v3270 = vsel %vm978, %v3268, %v3269
        %v3271 = vrot.slane %v3269, 4
        %v3272 = vrot.slane %v3117, 5
        %v3273 = vsel %vm978, %v3271, %v3272
        %v3274 = vrot.slane %v3118, 5
        %v3275 = vrot.slane %v3274, 4
        %v3276 = vrot.slane %v3119, 5
        %v3277 = vsel %vm978, %v3275, %v3276
        %v3278 = vrot.slane %v3276, 4
        %v3279 = vrot.slane %v3120, 5
        %v3280 = vsel %vm978, %v3278, %v3279
        %3281 = vrot.lane.b32.xlu0 %v3172, 32
        %v3282 = vpop.permute.xlu0 %3281
        %3283 = vrot.lane.b32.xlu0 %v3175, 32
        %v3284 = vpop.permute.xlu0 %3283
        %3285 = vrot.lane.b32.xlu0 %v3179, 32
        %v3286 = vpop.permute.xlu0 %3285
        %3287 = vrot.lane.b32.xlu0 %v3182, 32
        %v3288 = vpop.permute.xlu0 %3287
        %3289 = vrot.lane.b32.xlu0 %v3186, 32
        %v3290 = vpop.permute.xlu0 %3289
        %3291 = vrot.lane.b32.xlu0 %v3189, 32
        %v3292 = vpop.permute.xlu0 %3291
        %3293 = vrot.lane.b32.xlu0 %v3193, 32
        %v3294 = vpop.permute.xlu0 %3293
        %3295 = vrot.lane.b32.xlu0 %v3196, 32
        %v3296 = vpop.permute.xlu0 %3295
        %3297 = vrot.lane.b32.xlu0 %v3200, 32
        %v3298 = vpop.permute.xlu0 %3297
        %3299 = vrot.lane.b32.xlu0 %v3203, 32
        %v3300 = vpop.permute.xlu0 %3299
        %3301 = vrot.lane.b32.xlu0 %v3207, 32
        %v3302 = vpop.permute.xlu0 %3301
        %3303 = vrot.lane.b32.xlu0 %v3210, 32
        %v3304 = vpop.permute.xlu0 %3303
        %3305 = vrot.lane.b32.xlu0 %v3214, 32
        %v3306 = vpop.permute.xlu0 %3305
        %3307 = vrot.lane.b32.xlu0 %v3217, 32
        %v3308 = vpop.permute.xlu0 %3307
        %3309 = vrot.lane.b32.xlu0 %v3221, 32
        %v3310 = vpop.permute.xlu0 %3309
        %3311 = vrot.lane.b32.xlu0 %v3224, 32
        %v3312 = vpop.permute.xlu0 %3311
        %3313 = vrot.lane.b32.xlu0 %v3228, 32
        %v3314 = vpop.permute.xlu0 %3313
        %3315 = vrot.lane.b32.xlu0 %v3231, 32
        %v3316 = vpop.permute.xlu0 %3315
        %3317 = vrot.lane.b32.xlu0 %v3235, 32
        %v3318 = vpop.permute.xlu0 %3317
        %3319 = vrot.lane.b32.xlu0 %v3238, 32
        %v3320 = vpop.permute.xlu0 %3319
        %3321 = vrot.lane.b32.xlu0 %v3242, 32
        %v3322 = vpop.permute.xlu0 %3321
        %3323 = vrot.lane.b32.xlu0 %v3245, 32
        %v3324 = vpop.permute.xlu0 %3323
        %3325 = vrot.lane.b32.xlu0 %v3249, 32
        %v3326 = vpop.permute.xlu0 %3325
        %3327 = vrot.lane.b32.xlu0 %v3252, 32
        %v3328 = vpop.permute.xlu0 %3327
        %3329 = vrot.lane.b32.xlu0 %v3256, 32
        %v3330 = vpop.permute.xlu0 %3329
        %3331 = vrot.lane.b32.xlu0 %v3259, 32
        %v3332 = vpop.permute.xlu0 %3331
        %3333 = vrot.lane.b32.xlu0 %v3263, 32
        %v3334 = vpop.permute.xlu0 %3333
        %3335 = vrot.lane.b32.xlu0 %v3266, 32
        %v3336 = vpop.permute.xlu0 %3335
        %3337 = vrot.lane.b32.xlu0 %v3270, 32
        %v3338 = vpop.permute.xlu0 %3337
        %3339 = vrot.lane.b32.xlu0 %v3273, 32
        %v3340 = vpop.permute.xlu0 %3339
        %3341 = vrot.lane.b32.xlu0 %v3277, 32
        %v3342 = vpop.permute.xlu0 %3341
        %3343 = vrot.lane.b32.xlu0 %v3280, 32
        %v3344 = vpop.permute.xlu0 %3343
        %vm3377 = vcmask 290048
        %3378 = vst.msk [vmem:[#allocation2] sm:$0xf] %vm3377, %v3282
        %3379 = vst.msk [vmem:[#allocation2 + $0x4] sm:$0xf] %vm3377, %v3284
        %3380 = vst.msk [vmem:[#allocation2 + $0x8] sm:$0xf] %vm3377, %v3286
        %3381 = vst.msk [vmem:[#allocation2 + $0xc] sm:$0xf] %vm3377, %v3288
        %3382 = vst.msk [vmem:[#allocation2 + $0x10] sm:$0xf] %vm3377, %v3290
        %3383 = vst.msk [vmem:[#allocation2 + $0x14] sm:$0xf] %vm3377, %v3292
        %3384 = vst.msk [vmem:[#allocation2 + $0x18] sm:$0xf] %vm3377, %v3294
        %3385 = vst.msk [vmem:[#allocation2 + $0x1c] sm:$0xf] %vm3377, %v3296
        %3386 = vst.msk [vmem:[#allocation2 + $0x20] sm:$0xf] %vm3377, %v3298
        %3387 = vst.msk [vmem:[#allocation2 + $0x24] sm:$0xf] %vm3377, %v3300
        %3388 = vst.msk [vmem:[#allocation2 + $0x28] sm:$0xf] %vm3377, %v3302
        %3389 = vst.msk [vmem:[#allocation2 + $0x2c] sm:$0xf] %vm3377, %v3304
        %3390 = vst.msk [vmem:[#allocation2 + $0x30] sm:$0xf] %vm3377, %v3306
        %3391 = vst.msk [vmem:[#allocation2 + $0x34] sm:$0xf] %vm3377, %v3308
        %3392 = vst.msk [vmem:[#allocation2 + $0x38] sm:$0xf] %vm3377, %v3310
        %3393 = vst.msk [vmem:[#allocation2 + $0x3c] sm:$0xf] %vm3377, %v3312
        %3394 = vst.msk [vmem:[#allocation2 + $0x40] sm:$0xf] %vm3377, %v3314
        %3395 = vst.msk [vmem:[#allocation2 + $0x44] sm:$0xf] %vm3377, %v3316
        %3396 = vst.msk [vmem:[#allocation2 + $0x48] sm:$0xf] %vm3377, %v3318
        %3397 = vst.msk [vmem:[#allocation2 + $0x4c] sm:$0xf] %vm3377, %v3320
        %3398 = vst.msk [vmem:[#allocation2 + $0x50] sm:$0xf] %vm3377, %v3322
        %3399 = vst.msk [vmem:[#allocation2 + $0x54] sm:$0xf] %vm3377, %v3324
        %3400 = vst.msk [vmem:[#allocation2 + $0x58] sm:$0xf] %vm3377, %v3326
        %3401 = vst.msk [vmem:[#allocation2 + $0x5c] sm:$0xf] %vm3377, %v3328
        %3402 = vst.msk [vmem:[#allocation2 + $0x60] sm:$0xf] %vm3377, %v3330
        %3403 = vst.msk [vmem:[#allocation2 + $0x64] sm:$0xf] %vm3377, %v3332
        %3404 = vst.msk [vmem:[#allocation2 + $0x68] sm:$0xf] %vm3377, %v3334
        %3405 = vst.msk [vmem:[#allocation2 + $0x6c] sm:$0xf] %vm3377, %v3336
        %3406 = vst.msk [vmem:[#allocation2 + $0x70] sm:$0xf] %vm3377, %v3338
        %3407 = vst.msk [vmem:[#allocation2 + $0x74] sm:$0xf] %vm3377, %v3340
        %3408 = vst.msk [vmem:[#allocation2 + $0x78] sm:$0xf] %vm3377, %v3342
        %3409 = vst.msk [vmem:[#allocation2 + $0x7c] sm:$0xf] %vm3377, %v3344
      $region36: #{prunable_conv2d_pallas.1} parent=31 // pred_fallthru
        _
      %v3410 = vld [vmem:[#allocation2] sm:$0xf]
      %v3411 = vld [vmem:[#allocation2 + $0x4] sm:$0xf]
      %v3412 = vld [vmem:[#allocation2 + $0x8] sm:$0xf]
      %v3413 = vld [vmem:[#allocation2 + $0xc] sm:$0xf]
      %v3414 = vld [vmem:[#allocation2 + $0x10] sm:$0xf]
      %v3415 = vld [vmem:[#allocation2 + $0x14] sm:$0xf]
      %v3416 = vld [vmem:[#allocation2 + $0x18] sm:$0xf]
      %v3417 = vld [vmem:[#allocation2 + $0x1c] sm:$0xf]
      %v3418 = vld [vmem:[#allocation2 + $0x20] sm:$0xf]
      %v3419 = vld [vmem:[#allocation2 + $0x24] sm:$0xf]
      %v3420 = vld [vmem:[#allocation2 + $0x28] sm:$0xf]
      %v3421 = vld [vmem:[#allocation2 + $0x2c] sm:$0xf]
      %v3422 = vld [vmem:[#allocation2 + $0x30] sm:$0xf]
      %v3423 = vld [vmem:[#allocation2 + $0x34] sm:$0xf]
      %v3424 = vld [vmem:[#allocation2 + $0x38] sm:$0xf]
      %v3425 = vld [vmem:[#allocation2 + $0x3c] sm:$0xf]
      %v3426 = vld [vmem:[#allocation2 + $0x40] sm:$0xf]
      %v3427 = vld [vmem:[#allocation2 + $0x44] sm:$0xf]
      %v3428 = vld [vmem:[#allocation2 + $0x48] sm:$0xf]
      %v3429 = vld [vmem:[#allocation2 + $0x4c] sm:$0xf]
      %v3430 = vld [vmem:[#allocation2 + $0x50] sm:$0xf]
      %v3431 = vld [vmem:[#allocation2 + $0x54] sm:$0xf]
      %v3432 = vld [vmem:[#allocation2 + $0x58] sm:$0xf]
      %v3433 = vld [vmem:[#allocation2 + $0x5c] sm:$0xf]
      %v3434 = vld [vmem:[#allocation2 + $0x60] sm:$0xf]
      %v3435 = vld [vmem:[#allocation2 + $0x64] sm:$0xf]
      %v3436 = vld [vmem:[#allocation2 + $0x68] sm:$0xf]
      %v3437 = vld [vmem:[#allocation2 + $0x6c] sm:$0xf]
      %v3438 = vld [vmem:[#allocation2 + $0x70] sm:$0xf]
      %v3439 = vld [vmem:[#allocation2 + $0x74] sm:$0xf]
      %v3440 = vld [vmem:[#allocation2 + $0x78] sm:$0xf]
      %v3441 = vld [vmem:[#allocation2 + $0x7c] sm:$0xf]
      %v3442 = vld [vmem:[%s224] sm:$0xf]
      %v3443 = vld [vmem:[%s224 + $0x4] sm:$0xf]
      %v3444 = vld [vmem:[%s224 + $0x8] sm:$0xf]
      %v3445 = vld [vmem:[%s224 + $0xc] sm:$0xf]
      %v3446 = vld [vmem:[%s224 + $0x10] sm:$0x3]
      %v3447 = vld [vmem:[%s227] sm:$0x1]
      %v3449 = vperm.slane %v3447, 0
      %v3483 = vunpack.c.l.b16 %v3410
      %v3484 = vunpack.c.l.b16 %v3411
      %v3485 = vunpack.c.l.b16 %v3412
      %v3486 = vunpack.c.l.b16 %v3413
      %v3487 = vunpack.c.l.b16 %v3414
      %v3488 = vunpack.c.l.b16 %v3415
      %v3489 = vunpack.c.l.b16 %v3416
      %v3490 = vunpack.c.l.b16 %v3417
      %v3491 = vunpack.c.l.b16 %v3418
      %v3492 = vunpack.c.l.b16 %v3419
      %v3493 = vunpack.c.l.b16 %v3420
      %v3494 = vunpack.c.l.b16 %v3421
      %v3495 = vunpack.c.l.b16 %v3422
      %v3496 = vunpack.c.l.b16 %v3423
      %v3497 = vunpack.c.l.b16 %v3424
      %v3498 = vunpack.c.l.b16 %v3425
      %v3499 = vunpack.c.l.b16 %v3426
      %v3500 = vunpack.c.l.b16 %v3427
      %v3501 = vunpack.c.l.b16 %v3428
      %v3502 = vunpack.c.l.b16 %v3429
      %v3503 = vunpack.c.l.b16 %v3430
      %v3504 = vunpack.c.l.b16 %v3431
      %v3505 = vunpack.c.l.b16 %v3432
      %v3506 = vunpack.c.l.b16 %v3433
      %v3507 = vunpack.c.l.b16 %v3434
      %v3508 = vunpack.c.l.b16 %v3435
      %v3509 = vunpack.c.l.b16 %v3436
      %v3510 = vunpack.c.l.b16 %v3437
      %v3511 = vunpack.c.l.b16 %v3438
      %v3512 = vunpack.c.l.b16 %v3439
      %v3513 = vunpack.c.l.b16 %v3440
      %v3514 = vunpack.c.l.b16 %v3441
      %v3515 = vpack.c.b16 %v3484, %v3483
      %v3516 = vpack.c.b16 %v3486, %v3485
      %v3517 = vpack.c.b16 %v3488, %v3487
      %v3518 = vpack.c.b16 %v3490, %v3489
      %v3519 = vpack.c.b16 %v3492, %v3491
      %v3520 = vpack.c.b16 %v3494, %v3493
      %v3521 = vpack.c.b16 %v3496, %v3495
      %v3522 = vpack.c.b16 %v3498, %v3497
      %v3523 = vpack.c.b16 %v3500, %v3499
      %v3524 = vpack.c.b16 %v3502, %v3501
      %v3525 = vpack.c.b16 %v3504, %v3503
      %v3526 = vpack.c.b16 %v3506, %v3505
      %v3527 = vpack.c.b16 %v3508, %v3507
      %v3528 = vpack.c.b16 %v3510, %v3509
      %v3529 = vpack.c.b16 %v3512, %v3511
      %v3530 = vpack.c.b16 %v3514, %v3513
      %v3536 = vunpack.c.l.b16 %v3442
      %v3537 = vunpack.c.l.b16 %v3443
      %v3538 = vunpack.c.l.b16 %v3444
      %v3539 = vunpack.c.l.b16 %v3445
      %v3540 = vunpack.c.l.b16 %v3446
      %v3541 = vpack.c.b16 %v3537, %v3536
      %v3542 = vpack.c.b16 %v3539, %v3538
      %v3543 = vpack.c.b16 %v3540, %v3540
      %vm3546 = vcmask 293888
      %v3548 = vsel %vm3546, %v3515, 0
      %v3551 = vsel %vm3546, %v3516, 0
      %v3554 = vsel %vm3546, %v3517, 0
      %v3557 = vsel %vm3546, %v3518, 0
      %v3560 = vsel %vm3546, %v3519, 0
      %v3563 = vsel %vm3546, %v3520, 0
      %v3566 = vsel %vm3546, %v3521, 0
      %v3569 = vsel %vm3546, %v3522, 0
      %v3572 = vsel %vm3546, %v3523, 0
      %v3575 = vsel %vm3546, %v3524, 0
      %v3578 = vsel %vm3546, %v3525, 0
      %v3581 = vsel %vm3546, %v3526, 0
      %v3584 = vsel %vm3546, %v3527, 0
      %v3587 = vsel %vm3546, %v3528, 0
      %v3590 = vsel %vm3546, %v3529, 0
      %v3593 = vsel %vm3546, %v3530, 0
      %vm3595 = vcmask 1041408
      %v3597 = vsel %vm3595, %v3543, 0
      %3599 = vmatpush.bf16.msra.mxu0 0
      %3600 = vmatpush.bf16.msra.mxu0 0
      %3601 = vmatpush.bf16.msra.mxu0 0
      %3602 = vmatpush.bf16.msra.mxu0 0
      %3603 = vmatpush.bf16.msra.mxu0 0
      %3604 = vmatpush.bf16.msra.mxu0 %v3597
      %3605 = vmatpush.bf16.msra.mxu0 %v3542
      %3606 = vmatpush.bf16.msra.mxu0 %v3541
      %3607 = vmatmul.bf16.gmra.mxu0 %v3548
      %v3608 = vpop.f32.mrf.mxu0
      %v3609 = vadd.f32 %v3449, %v3608
      %v3610 = vpop.f32.mrf.mxu0
      %v3611 = vadd.f32 %v3449, %v3610
      %3612 = vmatmul.bf16.gmra.mxu0 %v3551
      %v3613 = vpop.f32.mrf.mxu0
      %v3614 = vadd.f32 %v3449, %v3613
      %v3615 = vpop.f32.mrf.mxu0
      %v3616 = vadd.f32 %v3449, %v3615
      %3617 = vmatmul.bf16.gmra.mxu0 %v3554
      %v3618 = vpop.f32.mrf.mxu0
      %v3619 = vadd.f32 %v3449, %v3618
      %v3620 = vpop.f32.mrf.mxu0
      %v3621 = vadd.f32 %v3449, %v3620
      %3622 = vmatmul.bf16.gmra.mxu0 %v3557
      %v3623 = vpop.f32.mrf.mxu0
      %v3624 = vadd.f32 %v3449, %v3623
      %v3625 = vpop.f32.mrf.mxu0
      %v3626 = vadd.f32 %v3449, %v3625
      %3627 = vmatmul.bf16.gmra.mxu0 %v3560
      %v3628 = vpop.f32.mrf.mxu0
      %v3629 = vadd.f32 %v3449, %v3628
      %v3630 = vpop.f32.mrf.mxu0
      %v3631 = vadd.f32 %v3449, %v3630
      %3632 = vmatmul.bf16.gmra.mxu0 %v3563
      %v3633 = vpop.f32.mrf.mxu0
      %v3634 = vadd.f32 %v3449, %v3633
      %v3635 = vpop.f32.mrf.mxu0
      %v3636 = vadd.f32 %v3449, %v3635
      %3637 = vmatmul.bf16.gmra.mxu0 %v3566
      %v3638 = vpop.f32.mrf.mxu0
      %v3639 = vadd.f32 %v3449, %v3638
      %v3640 = vpop.f32.mrf.mxu0
      %v3641 = vadd.f32 %v3449, %v3640
      %3642 = vmatmul.bf16.gmra.mxu0 %v3569
      %v3643 = vpop.f32.mrf.mxu0
      %v3644 = vadd.f32 %v3449, %v3643
      %v3645 = vpop.f32.mrf.mxu0
      %v3646 = vadd.f32 %v3449, %v3645
      %3647 = vmatmul.bf16.gmra.mxu0 %v3572
      %v3648 = vpop.f32.mrf.mxu0
      %v3649 = vadd.f32 %v3449, %v3648
      %v3650 = vpop.f32.mrf.mxu0
      %v3651 = vadd.f32 %v3449, %v3650
      %3652 = vmatmul.bf16.gmra.mxu0 %v3575
      %v3653 = vpop.f32.mrf.mxu0
      %v3654 = vadd.f32 %v3449, %v3653
      %v3655 = vpop.f32.mrf.mxu0
      %v3656 = vadd.f32 %v3449, %v3655
      %3657 = vmatmul.bf16.gmra.mxu0 %v3578
      %v3658 = vpop.f32.mrf.mxu0
      %v3659 = vadd.f32 %v3449, %v3658
      %v3660 = vpop.f32.mrf.mxu0
      %v3661 = vadd.f32 %v3449, %v3660
      %3662 = vmatmul.bf16.gmra.mxu0 %v3581
      %v3663 = vpop.f32.mrf.mxu0
      %v3664 = vadd.f32 %v3449, %v3663
      %v3665 = vpop.f32.mrf.mxu0
      %v3666 = vadd.f32 %v3449, %v3665
      %3667 = vmatmul.bf16.gmra.mxu0 %v3584
      %v3668 = vpop.f32.mrf.mxu0
      %v3669 = vadd.f32 %v3449, %v3668
      %v3670 = vpop.f32.mrf.mxu0
      %v3671 = vadd.f32 %v3449, %v3670
      %3672 = vmatmul.bf16.gmra.mxu0 %v3587
      %v3673 = vpop.f32.mrf.mxu0
      %v3674 = vadd.f32 %v3449, %v3673
      %v3675 = vpop.f32.mrf.mxu0
      %v3676 = vadd.f32 %v3449, %v3675
      %3677 = vmatmul.bf16.gmra.mxu0 %v3590
      %v3678 = vpop.f32.mrf.mxu0
      %v3679 = vadd.f32 %v3449, %v3678
      %v3680 = vpop.f32.mrf.mxu0
      %v3681 = vadd.f32 %v3449, %v3680
      %3682 = vmatmul.bf16.gmra.mxu0 %v3593
      %v3683 = vpop.f32.mrf.mxu0
      %v3684 = vadd.f32 %v3449, %v3683
      %v3685 = vpop.f32.mrf.mxu0
      %v3686 = vadd.f32 %v3449, %v3685
      %3687 = vdwg.mxu0
      %v3688 = vpack.c.bf16 %v3609, %v3609
      %v3689 = vpack.c.bf16 %v3611, %v3611
      %v3690 = vpack.c.bf16 %v3614, %v3614
      %v3691 = vpack.c.bf16 %v3616, %v3616
      %v3692 = vpack.c.bf16 %v3619, %v3619
      %v3693 = vpack.c.bf16 %v3621, %v3621
      %v3694 = vpack.c.bf16 %v3624, %v3624
      %v3695 = vpack.c.bf16 %v3626, %v3626
      %v3696 = vpack.c.bf16 %v3629, %v3629
      %v3697 = vpack.c.bf16 %v3631, %v3631
      %v3698 = vpack.c.bf16 %v3634, %v3634
      %v3699 = vpack.c.bf16 %v3636, %v3636
      %v3700 = vpack.c.bf16 %v3639, %v3639
      %v3701 = vpack.c.bf16 %v3641, %v3641
      %v3702 = vpack.c.bf16 %v3644, %v3644
      %v3703 = vpack.c.bf16 %v3646, %v3646
      %v3704 = vpack.c.bf16 %v3649, %v3649
      %v3705 = vpack.c.bf16 %v3651, %v3651
      %v3706 = vpack.c.bf16 %v3654, %v3654
      %v3707 = vpack.c.bf16 %v3656, %v3656
      %v3708 = vpack.c.bf16 %v3659, %v3659
      %v3709 = vpack.c.bf16 %v3661, %v3661
      %v3710 = vpack.c.bf16 %v3664, %v3664
      %v3711 = vpack.c.bf16 %v3666, %v3666
      %v3712 = vpack.c.bf16 %v3669, %v3669
      %v3713 = vpack.c.bf16 %v3671, %v3671
      %v3714 = vpack.c.bf16 %v3674, %v3674
      %v3715 = vpack.c.bf16 %v3676, %v3676
      %v3716 = vpack.c.bf16 %v3679, %v3679
      %v3717 = vpack.c.bf16 %v3681, %v3681
      %v3718 = vpack.c.bf16 %v3684, %v3684
      %v3719 = vpack.c.bf16 %v3686, %v3686
      %3720 = vst [vmem:[%s240] sm:$0xf] %v3688
      %3721 = vst [vmem:[%s240 + $0x4] sm:$0xf] %v3689
      %3722 = vst [vmem:[%s240 + $0x8] sm:$0xf] %v3690
      %3723 = vst [vmem:[%s240 + $0xc] sm:$0xf] %v3691
      %3724 = vst [vmem:[%s240 + $0x10] sm:$0xf] %v3692
      %3725 = vst [vmem:[%s240 + $0x14] sm:$0xf] %v3693
      %3726 = vst [vmem:[%s240 + $0x18] sm:$0xf] %v3694
      %3727 = vst [vmem:[%s240 + $0x1c] sm:$0xf] %v3695
      %3728 = vst [vmem:[%s240 + $0x20] sm:$0xf] %v3696
      %3729 = vst [vmem:[%s240 + $0x24] sm:$0xf] %v3697
      %3730 = vst [vmem:[%s240 + $0x28] sm:$0xf] %v3698
      %3731 = vst [vmem:[%s240 + $0x2c] sm:$0xf] %v3699
      %3732 = vst [vmem:[%s240 + $0x30] sm:$0xf] %v3700
      %3733 = vst [vmem:[%s240 + $0x34] sm:$0xf] %v3701
      %3734 = vst [vmem:[%s240 + $0x38] sm:$0xf] %v3702
      %3735 = vst [vmem:[%s240 + $0x3c] sm:$0xf] %v3703
      %3736 = vst [vmem:[%s240 + $0x40] sm:$0xf] %v3704
      %3737 = vst [vmem:[%s240 + $0x44] sm:$0xf] %v3705
      %3738 = vst [vmem:[%s240 + $0x48] sm:$0xf] %v3706
      %3739 = vst [vmem:[%s240 + $0x4c] sm:$0xf] %v3707
      %3740 = vst [vmem:[%s240 + $0x50] sm:$0xf] %v3708
      %3741 = vst [vmem:[%s240 + $0x54] sm:$0xf] %v3709
      %3742 = vst [vmem:[%s240 + $0x58] sm:$0xf] %v3710
      %3743 = vst [vmem:[%s240 + $0x5c] sm:$0xf] %v3711
      %3744 = vst [vmem:[%s240 + $0x60] sm:$0xf] %v3712
      %3745 = vst [vmem:[%s240 + $0x64] sm:$0xf] %v3713
      %3746 = vst [vmem:[%s240 + $0x68] sm:$0xf] %v3714
      %3747 = vst [vmem:[%s240 + $0x6c] sm:$0xf] %v3715
      %3748 = vst [vmem:[%s240 + $0x70] sm:$0xf] %v3716
      %3749 = vst [vmem:[%s240 + $0x74] sm:$0xf] %v3717
      %3750 = vst [vmem:[%s240 + $0x78] sm:$0xf] %v3718
      %3751 = vst [vmem:[%s240 + $0x7c] sm:$0xf] %v3719
      %s3752 = smul.u32 16, %s20
      %p3753 = scmp.lt.s32.totalorder %s19, 1
      %s3754 = scalar_select %p3753, %s19, 1
      %p3755 = scmp.lt.s32.totalorder %s3752, 15
      %s3756 = scalar_select %p3755, %s3752, 15
      %p3757 = scmp.lt.s32.totalorder %s21, 0
      %s3758 = scalar_select %p3757, %s21, 0
      %s3759 = smul.addr %s3756, 2
      %s3760 = sadd.s32 %s3758, %s3759
      %s3761 = smul.addr %s3754, 32
      %s3762 = sadd.s32 %s3760, %s3761
      %s3763 = smul.addr %s3762, 4
      %s3764 = scalar_lea.vmem %s3, %s3763
      // Predicated region
      $region37: #{prunable_conv2d_pallas.1} parent=31 // pred_check
        %p3765 = pneg %p133
      $region38: #{prunable_conv2d_pallas.1} parent=31 // pred_check_branch
        %3767 = sbr.rel (%p3765) target = $region40
      $region39: #{prunable_conv2d_pallas.1} parent=31 // pred_region
        %s3768 = smul.u32 16, %s20
      $region40: #{prunable_conv2d_pallas.1} parent=31 // pred_fallthru
        _
    $region32: #{prunable_conv2d_pallas.1} parent=5 // pred_fallthru
      _
    %p3769 = scmp.le.s32.totalorder 2, %s9
    // Predicated region
    $region41: #{prunable_conv2d_pallas.1} parent=5 // pred_check
      %p3770 = pneg %p3769
    $region42: #{prunable_conv2d_pallas.1} parent=5 // pred_check_branch
      %3772 = sbr.rel (%p3770) target = $region44
    $region43: #{prunable_conv2d_pallas.1} parent=5 // pred_region
      %s3773 = ssub.s32 %s9, 2
      // Predicated region
      $region45: #{prunable_conv2d_pallas.1} parent=43 // pred_check
        %p3774 = pneg %p139
      $region46: #{prunable_conv2d_pallas.1} parent=43 // pred_check_branch
        %3776 = sbr.rel (%p3774) target = $region48
      $region47: #{prunable_conv2d_pallas.1} parent=43 // pred_region
        %s3777 = smul.u32 16, %s23
        %p3778 = scmp.lt.s32.totalorder %s22, 1
        %s3779 = scalar_select %p3778, %s22, 1
        %p3780 = scmp.lt.s32.totalorder %s3777, 15
        %s3781 = scalar_select %p3780, %s3777, 15
        %p3782 = scmp.lt.s32.totalorder %s24, 0
        %s3783 = scalar_select %p3782, %s24, 0
        %s3784 = smul.addr %s3781, 2
        %s3785 = sadd.s32 %s3783, %s3784
        %s3786 = smul.addr %s3779, 32
        %s3787 = sadd.s32 %s3785, %s3786
        %s3788 = smul.addr %s3787, 4
        %s3789 = scalar_lea.vmem %s3, %s3788
      $region48: #{prunable_conv2d_pallas.1} parent=43 // pred_fallthru
        _
    $region44: #{prunable_conv2d_pallas.1} parent=5 // pred_fallthru
      _
  $region6: #{prunable_conv2d_pallas.1} parent=0 // loop_footer
    %s13 = sadd.s32 1, %s9
  $region7: #{prunable_conv2d_pallas.1} parent=0 // loop_footer_branch
    %8 = sbr.rel target = $region3
  $region8: #{prunable_conv2d_pallas.1} parent=0 // loop_exit
    _

</llo_original>
